<compile_context>
chip_gen: v7x
topology: tpu7x:2x2x1
jax: 0.10.0
libtpu: 0.0.40
codegen_flags: <defaults>
</compile_context>

<pallas_src>
import functools

import jax
import jax.numpy as jnp
import numpy as np
from jax.experimental import pallas as pl
from jax.experimental.pallas import tpu as pltpu

NEG_SLOPE = 0.2
BN_EPS = 1e-5
LANE = 128                       # GEMM-N (output channel) padding target
ROW_TILE = 512                   # M tile
MAX_RESIDENT_K = 4096            # keep the whole weight resident up to this K
K_SPLIT_CANDIDATES = (4096, 2048, 1024, 512, 256, 128)
VMEM_LIMIT_BYTES = 32 * 1024 * 1024   # explicit scoped-VMEM limit (v5e/v6e/v7x safe)


def _round_up(x, m):
    return (x + m - 1) // m * m


# ----------------------------- Pallas kernels ------------------------------ #

def _conv_gemm_kernel(x_ref, w_ref, *refs, act, with_stats, multi_k):
    """(TM, TK) @ (TK, TN) block GEMM.

    If the K grid has several steps, accumulate in an f32 VMEM scratch; with a
    single K step, write the f32 dot result directly (no scratch, no copy).
    The epilogue optionally emits per-channel sum / sum-of-squares (BatchNorm
    statistics taken while the f32 tile is still in VMEM) and optionally fuses
    LeakyReLU(0.2).  Output lanes are a multiple of 128 -> unmasked stores.
    """
    if with_stats:
        if multi_k:
            y_ref, sum_ref, sq_ref, acc_ref = refs
        else:
            y_ref, sum_ref, sq_ref = refs
            acc_ref = None
    else:
        if multi_k:
            y_ref, acc_ref = refs
        else:
            (y_ref,) = refs
            acc_ref = None
        sum_ref = sq_ref = None

    def finalize(y):
        if with_stats:
            sum_ref[...] = jnp.sum(y, axis=0).reshape(1, 1, -1)
            sq_ref[...] = jnp.sum(y * y, axis=0).reshape(1, 1, -1)
        if act:
            y = jnp.where(y > 0, y, NEG_SLOPE * y)
        y_ref[...] = y.astype(y_ref.dtype)

    if multi_k:
        k = pl.program_id(2)

        @pl.when(k == 0)
        def _():
            acc_ref[...] = jnp.zeros_like(acc_ref)

        acc_ref[...] += jnp.dot(x_ref[...], w_ref[...],
                                preferred_element_type=jnp.float32)

        @pl.when(k == pl.num_programs(2) - 1)
        def _():
            finalize(acc_ref[...])
    else:
        finalize(jnp.dot(x_ref[...], w_ref[...],
                         preferred_element_type=jnp.float32))


def conv_gemm(patches, w2d, *, act, with_stats, out_dtype):
    """patches: (M, K) bf16 im2col matrix (K = 16*Cin, true channels).
    w2d: (K, Cp) bf16 with Cp = round_up(Cout, 128); padded Cout columns are 0.
    Returns (y, stats) where y is (Mp, Cp) and stats (sum, sumsq) per channel.
    """
    M, K = patches.shape
    Cp = w2d.shape[1]

    # N tile: 256-wide where possible (full MXU width on v6e/v7x), else 128.
    if Cp % 256 == 0:
        TN = 256
    elif Cp % 128 == 0:
        TN = 128
    else:
        TN = Cp

    TM = min(ROW_TILE, _round_up(M, 16))          # 16: bf16 sublane packing
    Mp = _round_up(M, TM)
    if Mp != M:                                   # zero rows: stats unaffected
        patches = jnp.pad(patches, ((0, Mp - M), (0, 0)))

    # Resident weight (TK = K) unless K is very large; then split at a 128-multiple.
    if K <= MAX_RESIDENT_K:
        TK = K
    else:
        TK = K
        for cand in K_SPLIT_CANDIDATES:
            if K % cand == 0:
                TK = cand
                break

    gm, gn, gk = Mp // TM, Cp // TN, K // TK
    multi_k = gk > 1

    in_specs = [
        pl.BlockSpec((TM, TK), lambda i, j, k: (i, k)),
        pl.BlockSpec((TK, TN), lambda i, j, k: (k, j)),
    ]
    y_spec = pl.BlockSpec((TM, TN), lambda i, j, k: (i, j))

    if with_stats:
        out_shape = (
            jax.ShapeDtypeStruct((Mp, Cp), out_dtype),
            jax.ShapeDtypeStruct((gm, 1, Cp), jnp.float32),
            jax.ShapeDtypeStruct((gm, 1, Cp), jnp.float32),
        )
        out_specs = (
            y_spec,
            pl.BlockSpec((1, 1, TN), lambda i, j, k: (i, 0, j)),
            pl.BlockSpec((1, 1, TN), lambda i, j, k: (i, 0, j)),
        )
    else:
        out_shape = jax.ShapeDtypeStruct((Mp, Cp), out_dtype)
        out_specs = y_spec

    scratch = [pltpu.VMEM((TM, TN), jnp.float32)] if multi_k else []

    res = pl.pallas_call(
        functools.partial(_conv_gemm_kernel, act=act, with_stats=with_stats,
                          multi_k=multi_k),
        out_shape=out_shape,
        grid=(gm, gn, gk),
        in_specs=in_specs,
        out_specs=out_specs,
        scratch_shapes=scratch,
        compiler_params=pltpu.CompilerParams(
            dimension_semantics=("parallel", "parallel", "arbitrary"),
            vmem_limit_bytes=VMEM_LIMIT_BYTES),
    )(patches, w2d)

    if with_stats:
        y, s, q = res
        return y, (s, q)
    return res, None


# ------------------------------- JAX glue ---------------------------------- #

def _bn_scale_shift(sums, sqs, gamma, beta, m, cout):
    """Fold GEMM-epilogue batch statistics into per-channel scale/shift."""
    s = jnp.sum(sums, axis=(0, 1))[:cout]
    q = jnp.sum(sqs, axis=(0, 1))[:cout]
    mean = s / m
    var = jnp.maximum(q / m - mean * mean, 0.0)   # biased batch variance
    scale = gamma * jax.lax.rsqrt(var + BN_EPS)
    shift = beta - mean * scale
    return scale, shift


def im2col(x_nhwc, kh, kw, stride, pad):
    """Extract 4x4 patches; feature order (kh, kw, cin) matches HWIO flatten."""
    # TODO(synk): form the patches in VMEM inside the GEMM kernel (halo /
    # space-to-depth tap reads of the NHWC tile) instead of materializing the
    # 16x-window patch matrix in HBM.
    N, H, W, C = x_nhwc.shape
    xp = jnp.pad(x_nhwc, ((0, 0), (pad, pad), (pad, pad), (0, 0)))
    OH = (H + 2 * pad - kh) // stride + 1
    OW = (W + 2 * pad - kw) // stride + 1
    cols = []
    for i in range(kh):
        for j in range(kw):
            cols.append(xp[:, i:i + stride * OH:stride, j:j + stride * OW:stride, :])
    patches = jnp.concatenate(cols, axis=-1)      # (N, OH, OW, 16*C)
    return patches.reshape(N * OH * OW, kh * kw * C), (N, OH, OW)


def init_params(key, nc, nef, nBottleneck, fineSize):
    conv_specs = [("conv1", nc, nef)]
    if fineSize == 128:
        conv_specs.append(("conv2", nef, nef))
    conv_specs += [("conv3", nef, nef * 2), ("conv4", nef * 2, nef * 4),
                   ("conv5", nef * 4, nef * 8), ("conv6", nef * 8, nBottleneck)]
    params = {}
    for name, cin, cout in conv_specs:
        key, sub = jax.random.split(key)
        # weights stored in HWIO layout (KH, KW, Cin, Cout)
        params[name] = 0.05 * jax.random.normal(sub, (4, 4, cin, cout), jnp.float32)
    bn_specs = ([("bn2", nef)] if fineSize == 128 else []) + \
               [("bn3", nef * 2), ("bn4", nef * 4), ("bn5", nef * 8)]
    for name, c in bn_specs:
        params[name + "_g"] = jnp.ones((c,), jnp.float32)   # default BatchNorm2d init
        params[name + "_b"] = jnp.zeros((c,), jnp.float32)
    return params


def net_e_forward(params, x_nchw, *, fineSize):
    x = jnp.transpose(x_nchw, (0, 2, 3, 1)).astype(jnp.bfloat16)   # NCHW -> NHWC

    layers = [("conv1", None, 2, 1)]
    if fineSize == 128:
        layers.append(("conv2", "bn2", 2, 1))
    layers += [("conv3", "bn3", 2, 1), ("conv4", "bn4", 2, 1),
               ("conv5", "bn5", 2, 1), ("conv6", None, 1, 0)]

    for idx, (cname, bname, stride, pad) in enumerate(layers):
        w = params[cname]                         # (4, 4, cin, cout) HWIO
        cin, cout = w.shape[2], w.shape[3]
        cout_pad = _round_up(cout, LANE)
        last = idx == len(layers) - 1

        # Only the GEMM N dimension is padded (zero columns -> padded output
        # lanes are exactly zero and are sliced off below).  Cin is unpadded.
        w2d = jnp.pad(w.reshape(16 * cin, cout),
                      ((0, 0), (0, cout_pad - cout))).astype(jnp.bfloat16)

        patches, (N, OH, OW) = im2col(x, 4, 4, stride, pad)
        m = N * OH * OW

        if bname is None:
            # conv1: fused LeakyReLU in the epilogue, bf16 out.
            # conv6: plain GEMM, f32 out.
            y, _ = conv_gemm(patches, w2d, act=not last, with_stats=False,
                             out_dtype=jnp.float32 if last else jnp.bfloat16)
            if last:
                out = y[:m, :cout].reshape(N, OH, OW, cout)
                return jnp.transpose(out, (0, 3, 1, 2))            # NHWC -> NCHW
            x = y[:m, :cout].reshape(N, OH, OW, cout)
        else:
            # conv + BN stats in the GEMM epilogue (bf16 activations out).
            y, (sums, sqs) = conv_gemm(patches, w2d, act=False, with_stats=True,
                                       out_dtype=jnp.bfloat16)
            scale, shift = _bn_scale_shift(sums, sqs, params[bname + "_g"],
                                           params[bname + "_b"], m, cout)
            # Scale/shift + LeakyReLU in plain jnp: XLA fuses this with the
            # next layer's im2col slice/pad/concat (no extra HBM round trip).
            a = y[:m, :cout].astype(jnp.float32) * scale + shift
            a = jnp.where(a > 0, a, NEG_SLOPE * a)
            x = a.astype(jnp.bfloat16).reshape(N, OH, OW, cout)


# --------------------------- pure-JAX reference ----------------------------- #

def reference_forward(params, x_nchw, *, fineSize):
    x = jnp.transpose(x_nchw, (0, 2, 3, 1))
    dn = ("NHWC", "HWIO", "NHWC")

    def conv(x, w, stride, pad):
        return jax.lax.conv_general_dilated(
            x, w, (stride, stride), [(pad, pad), (pad, pad)], dimension_numbers=dn)

    def lrelu(x):
        return jnp.where(x > 0, x, NEG_SLOPE * x)

    def bn_lrelu_ref(x, g, b):
        mean = jnp.mean(x, axis=(0, 1, 2), keepdims=True)
        var = jnp.mean((x - mean) ** 2, axis=(0, 1, 2), keepdims=True)
        y = (x - mean) * jax.lax.rsqrt(var + BN_EPS) * g + b
        return lrelu(y)

    x = lrelu(conv(x, params["conv1"], 2, 1))
    if fineSize == 128:
        x = bn_lrelu_ref(conv(x, params["conv2"], 2, 1), params["bn2_g"], params["bn2_b"])
    x = bn_lrelu_ref(conv(x, params["conv3"], 2, 1), params["bn3_g"], params["bn3_b"])
    x = bn_lrelu_ref(conv(x, params["conv4"], 2, 1), params["bn4_g"], params["bn4_b"])
    x = bn_lrelu_ref(conv(x, params["conv5"], 2, 1), params["bn5_g"], params["bn5_b"])
    x = conv(x, params["conv6"], 1, 0)
    return jnp.transpose(x, (0, 3, 1, 2))


# --------------------------------- main ------------------------------------ #

if __name__ == "__main__":
    # Small configuration consistent with the module: fineSize=128 exercises the
    # conv2/bn2 branch; channel widths kept small.
    batch, nc, nef, fineSize, nBottleneck = 2, 3, 8, 128, 16

    key = jax.random.PRNGKey(0)
    kx, kp = jax.random.split(key)
    x = jax.random.normal(kx, (batch, nc, fineSize, fineSize), jnp.float32)
    params = init_params(kp, nc, nef, nBottleneck, fineSize)

    fwd = jax.jit(functools.partial(net_e_forward, fineSize=fineSize))
    out = jax.block_until_ready(fwd(params, x))
    assert out.shape == (batch, nBottleneck, 1, 1), out.shape

    ref = jax.block_until_ready(reference_forward(params, x, fineSize=fineSize))
    # Tolerance relaxed vs a pure-f32 path: MXU inputs are bf16 (f32 accumulation)
    # and intermediate activations are carried in bf16.
    np.testing.assert_allclose(np.asarray(out, dtype=np.float32), np.asarray(ref),
                               rtol=2.5e-2, atol=2.5e-2)

    print("KERNEL_OK")
</pallas_src>

<mosaic_0001>
module attributes {stable_mosaic.version = 11 : i64} {
  func.func @_conv_gemm_kernel(%arg0: i32, %arg1: i32, %arg2: i32, %arg3: memref<512x48xbf16, #tpu.memory_space<vmem>>, %arg4: memref<48x128xbf16, #tpu.memory_space<vmem>>, %arg5: memref<512x128xbf16, #tpu.memory_space<vmem>>) attributes {dimension_semantics = [#tpu.dimension_semantics<parallel>, #tpu.dimension_semantics<parallel>, #tpu.dimension_semantics<arbitrary>], iteration_bounds = array<i64: 16, 1, 1>, scalar_prefetch = 0 : i64, scratch_operands = 0 : i64, tpu.core_type = #tpu.core_type<tc>, window_params = [{transform_indices = @transform_0, window_bounds = array<i64: 512, 48>}, {transform_indices = @transform_1, window_bounds = array<i64: 48, 128>}, {transform_indices = @transform_2, window_bounds = array<i64: 512, 128>}]} {
    %c0 = arith.constant 0 : index
    %c0_0 = arith.constant 0 : index
    %0 = vector.load %arg3[%c0, %c0_0] : memref<512x48xbf16, #tpu.memory_space<vmem>>, vector<512x48xbf16>
    %c0_1 = arith.constant 0 : index
    %c0_2 = arith.constant 0 : index
    %1 = vector.load %arg4[%c0_1, %c0_2] : memref<48x128xbf16, #tpu.memory_space<vmem>>, vector<48x128xbf16>
    %cst = arith.constant dense<0.000000e+00> : vector<512x128xf32>
    %2 = tpu.matmul %0, %1, %cst {dimension_numbers = #tpu.dot_dimension_numbers<[1], [0], [0], [1], [0, 0, 1, 1], [], []>} : vector<512x48xbf16>, vector<48x128xbf16>, vector<512x128xf32> -> vector<512x128xf32>
    %cst_3 = arith.constant 0.000000e+00 : f32
    %3 = vector.broadcast %cst_3 : f32 to vector<512x128xf32>
    %4 = arith.cmpf ogt, %2, %3 : vector<512x128xf32>
    %cst_4 = arith.constant 2.000000e-01 : f32
    %5 = vector.broadcast %cst_4 : f32 to vector<512x128xf32>
    %6 = arith.mulf %5, %2 : vector<512x128xf32>
    %7 = arith.select %4, %2, %6 : vector<512x128xi1>, vector<512x128xf32>
    %8 = arith.truncf %7 : vector<512x128xf32> to vector<512x128xbf16>
    %c0_5 = arith.constant 0 : index
    %c0_6 = arith.constant 0 : index
    %9 = vector.load %arg5[%c0_5, %c0_6] : memref<512x128xbf16, #tpu.memory_space<vmem>>, vector<512x128xbf16>
    tpu.vector_store %arg5[%c0_5, %c0_6], %8 {strides = array<i32>} : memref<512x128xbf16, #tpu.memory_space<vmem>>, vector<512x128xbf16>,
    return
  }
  func.func @transform_0(%arg0: i32, %arg1: i32, %arg2: i32) -> (i32, i32) {
    %c0_i32 = arith.constant 0 : i32
    return %arg0, %arg2 : i32, i32
  }
  func.func @transform_1(%arg0: i32, %arg1: i32, %arg2: i32) -> (i32, i32) {
    %c0_i32 = arith.constant 0 : i32
    return %arg2, %arg1 : i32, i32
  }
  func.func @transform_2(%arg0: i32, %arg1: i32, %arg2: i32) -> (i32, i32) {
    %c0_i32 = arith.constant 0 : i32
    return %arg0, %arg1 : i32, i32
  }
}

module attributes {stable_mosaic.version = 11 : i64} {
  func.func @_conv_gemm_kernel(%arg0: i32, %arg1: i32, %arg2: i32, %arg3: memref<512x128xbf16, #tpu.memory_space<vmem>>, %arg4: memref<128x128xbf16, #tpu.memory_space<vmem>>, %arg5: memref<512x128xbf16, #tpu.memory_space<vmem>>, %arg6: memref<1x1x128xf32, #tpu.memory_space<vmem>>, %arg7: memref<1x1x128xf32, #tpu.memory_space<vmem>>) attributes {dimension_semantics = [#tpu.dimension_semantics<parallel>, #tpu.dimension_semantics<parallel>, #tpu.dimension_semantics<arbitrary>], iteration_bounds = array<i64: 4, 1, 1>, scalar_prefetch = 0 : i64, scratch_operands = 0 : i64, tpu.core_type = #tpu.core_type<tc>, window_params = [{transform_indices = @transform_0, window_bounds = array<i64: 512, 128>}, {transform_indices = @transform_1, window_bounds = array<i64: 128, 128>}, {transform_indices = @transform_2, window_bounds = array<i64: 512, 128>}, {transform_indices = @transform_3, window_bounds = array<i64: 1, 1, 128>}, {transform_indices = @transform_4, window_bounds = array<i64: 1, 1, 128>}]} {
    %c0 = arith.constant 0 : index
    %c0_0 = arith.constant 0 : index
    %0 = vector.load %arg3[%c0, %c0_0] : memref<512x128xbf16, #tpu.memory_space<vmem>>, vector<512x128xbf16>
    %c0_1 = arith.constant 0 : index
    %c0_2 = arith.constant 0 : index
    %1 = vector.load %arg4[%c0_1, %c0_2] : memref<128x128xbf16, #tpu.memory_space<vmem>>, vector<128x128xbf16>
    %cst = arith.constant dense<0.000000e+00> : vector<512x128xf32>
    %2 = tpu.matmul %0, %1, %cst {dimension_numbers = #tpu.dot_dimension_numbers<[1], [0], [0], [1], [0, 0, 1, 1], [], []>} : vector<512x128xbf16>, vector<128x128xbf16>, vector<512x128xf32> -> vector<512x128xf32>
    %cst_3 = arith.constant dense<0.000000e+00> : vector<128xf32>
    %3 = vector.multi_reduction <add>, %2, %cst_3 [0] : vector<512x128xf32> to vector<128xf32>
    %4 = vector.shape_cast %3 : vector<128xf32> to vector<1x1x128xf32>
    %c0_4 = arith.constant 0 : index
    %c0_5 = arith.constant 0 : index
    %c0_6 = arith.constant 0 : index
    %5 = vector.load %arg6[%c0_4, %c0_5, %c0_6] : memref<1x1x128xf32, #tpu.memory_space<vmem>>, vector<1x1x128xf32>
    tpu.vector_store %arg6[%c0_4, %c0_5, %c0_6], %4 {strides = array<i32>} : memref<1x1x128xf32, #tpu.memory_space<vmem>>, vector<1x1x128xf32>,
    %6 = arith.mulf %2, %2 : vector<512x128xf32>
    %cst_7 = arith.constant dense<0.000000e+00> : vector<128xf32>
    %7 = vector.multi_reduction <add>, %6, %cst_7 [0] : vector<512x128xf32> to vector<128xf32>
    %8 = vector.shape_cast %7 : vector<128xf32> to vector<1x1x128xf32>
    %c0_8 = arith.constant 0 : index
    %c0_9 = arith.constant 0 : index
    %c0_10 = arith.constant 0 : index
    %9 = vector.load %arg7[%c0_8, %c0_9, %c0_10] : memref<1x1x128xf32, #tpu.memory_space<vmem>>, vector<1x1x128xf32>
    tpu.vector_store %arg7[%c0_8, %c0_9, %c0_10], %8 {strides = array<i32>} : memref<1x1x128xf32, #tpu.memory_space<vmem>>, vector<1x1x128xf32>,
    %10 = arith.truncf %2 : vector<512x128xf32> to vector<512x128xbf16>
    %c0_11 = arith.constant 0 : index
    %c0_12 = arith.constant 0 : index
    %11 = vector.load %arg5[%c0_11, %c0_12] : memref<512x128xbf16, #tpu.memory_space<vmem>>, vector<512x128xbf16>
    tpu.vector_store %arg5[%c0_11, %c0_12], %10 {strides = array<i32>} : memref<512x128xbf16, #tpu.memory_space<vmem>>, vector<512x128xbf16>,
    return
  }
  func.func @transform_0(%arg0: i32, %arg1: i32, %arg2: i32) -> (i32, i32) {
    %c0_i32 = arith.constant 0 : i32
    return %arg0, %arg2 : i32, i32
  }
  func.func @transform_1(%arg0: i32, %arg1: i32, %arg2: i32) -> (i32, i32) {
    %c0_i32 = arith.constant 0 : i32
    return %arg2, %arg1 : i32, i32
  }
  func.func @transform_2(%arg0: i32, %arg1: i32, %arg2: i32) -> (i32, i32) {
    %c0_i32 = arith.constant 0 : i32
    return %arg0, %arg1 : i32, i32
  }
  func.func @transform_3(%arg0: i32, %arg1: i32, %arg2: i32) -> (i32, i32, i32) {
    %c0_i32 = arith.constant 0 : i32
    %c0_i32_0 = arith.constant 0 : i32
    return %arg0, %c0_i32, %arg1 : i32, i32, i32
  }
  func.func @transform_4(%arg0: i32, %arg1: i32, %arg2: i32) -> (i32, i32, i32) {
    %c0_i32 = arith.constant 0 : i32
    %c0_i32_0 = arith.constant 0 : i32
    return %arg0, %c0_i32, %arg1 : i32, i32, i32
  }
}

module attributes {stable_mosaic.version = 11 : i64} {
  func.func @_conv_gemm_kernel(%arg0: i32, %arg1: i32, %arg2: i32, %arg3: memref<512x128xbf16, #tpu.memory_space<vmem>>, %arg4: memref<128x128xbf16, #tpu.memory_space<vmem>>, %arg5: memref<512x128xbf16, #tpu.memory_space<vmem>>, %arg6: memref<1x1x128xf32, #tpu.memory_space<vmem>>, %arg7: memref<1x1x128xf32, #tpu.memory_space<vmem>>) attributes {dimension_semantics = [#tpu.dimension_semantics<parallel>, #tpu.dimension_semantics<parallel>, #tpu.dimension_semantics<arbitrary>], iteration_bounds = array<i64: 1, 1, 1>, scalar_prefetch = 0 : i64, scratch_operands = 0 : i64, tpu.core_type = #tpu.core_type<tc>, window_params = [{transform_indices = @transform_0, window_bounds = array<i64: 512, 128>}, {transform_indices = @transform_1, window_bounds = array<i64: 128, 128>}, {transform_indices = @transform_2, window_bounds = array<i64: 512, 128>}, {transform_indices = @transform_3, window_bounds = array<i64: 1, 1, 128>}, {transform_indices = @transform_4, window_bounds = array<i64: 1, 1, 128>}]} {
    %c0 = arith.constant 0 : index
    %c0_0 = arith.constant 0 : index
    %0 = vector.load %arg3[%c0, %c0_0] : memref<512x128xbf16, #tpu.memory_space<vmem>>, vector<512x128xbf16>
    %c0_1 = arith.constant 0 : index
    %c0_2 = arith.constant 0 : index
    %1 = vector.load %arg4[%c0_1, %c0_2] : memref<128x128xbf16, #tpu.memory_space<vmem>>, vector<128x128xbf16>
    %cst = arith.constant dense<0.000000e+00> : vector<512x128xf32>
    %2 = tpu.matmul %0, %1, %cst {dimension_numbers = #tpu.dot_dimension_numbers<[1], [0], [0], [1], [0, 0, 1, 1], [], []>} : vector<512x128xbf16>, vector<128x128xbf16>, vector<512x128xf32> -> vector<512x128xf32>
    %cst_3 = arith.constant dense<0.000000e+00> : vector<128xf32>
    %3 = vector.multi_reduction <add>, %2, %cst_3 [0] : vector<512x128xf32> to vector<128xf32>
    %4 = vector.shape_cast %3 : vector<128xf32> to vector<1x1x128xf32>
    %c0_4 = arith.constant 0 : index
    %c0_5 = arith.constant 0 : index
    %c0_6 = arith.constant 0 : index
    %5 = vector.load %arg6[%c0_4, %c0_5, %c0_6] : memref<1x1x128xf32, #tpu.memory_space<vmem>>, vector<1x1x128xf32>
    tpu.vector_store %arg6[%c0_4, %c0_5, %c0_6], %4 {strides = array<i32>} : memref<1x1x128xf32, #tpu.memory_space<vmem>>, vector<1x1x128xf32>,
    %6 = arith.mulf %2, %2 : vector<512x128xf32>
    %cst_7 = arith.constant dense<0.000000e+00> : vector<128xf32>
    %7 = vector.multi_reduction <add>, %6, %cst_7 [0] : vector<512x128xf32> to vector<128xf32>
    %8 = vector.shape_cast %7 : vector<128xf32> to vector<1x1x128xf32>
    %c0_8 = arith.constant 0 : index
    %c0_9 = arith.constant 0 : index
    %c0_10 = arith.constant 0 : index
    %9 = vector.load %arg7[%c0_8, %c0_9, %c0_10] : memref<1x1x128xf32, #tpu.memory_space<vmem>>, vector<1x1x128xf32>
    tpu.vector_store %arg7[%c0_8, %c0_9, %c0_10], %8 {strides = array<i32>} : memref<1x1x128xf32, #tpu.memory_space<vmem>>, vector<1x1x128xf32>,
    %10 = arith.truncf %2 : vector<512x128xf32> to vector<512x128xbf16>
    %c0_11 = arith.constant 0 : index
    %c0_12 = arith.constant 0 : index
    %11 = vector.load %arg5[%c0_11, %c0_12] : memref<512x128xbf16, #tpu.memory_space<vmem>>, vector<512x128xbf16>
    tpu.vector_store %arg5[%c0_11, %c0_12], %10 {strides = array<i32>} : memref<512x128xbf16, #tpu.memory_space<vmem>>, vector<512x128xbf16>,
    return
  }
  func.func @transform_0(%arg0: i32, %arg1: i32, %arg2: i32) -> (i32, i32) {
    %c0_i32 = arith.constant 0 : i32
    return %arg0, %arg2 : i32, i32
  }
  func.func @transform_1(%arg0: i32, %arg1: i32, %arg2: i32) -> (i32, i32) {
    %c0_i32 = arith.constant 0 : i32
    return %arg2, %arg1 : i32, i32
  }
  func.func @transform_2(%arg0: i32, %arg1: i32, %arg2: i32) -> (i32, i32) {
    %c0_i32 = arith.constant 0 : i32
    return %arg0, %arg1 : i32, i32
  }
  func.func @transform_3(%arg0: i32, %arg1: i32, %arg2: i32) -> (i32, i32, i32) {
    %c0_i32 = arith.constant 0 : i32
    %c0_i32_0 = arith.constant 0 : i32
    return %arg0, %c0_i32, %arg1 : i32, i32, i32
  }
  func.func @transform_4(%arg0: i32, %arg1: i32, %arg2: i32) -> (i32, i32, i32) {
    %c0_i32 = arith.constant 0 : i32
    %c0_i32_0 = arith.constant 0 : i32
    return %arg0, %c0_i32, %arg1 : i32, i32, i32
  }
}

module attributes {stable_mosaic.version = 11 : i64} {
  func.func @_conv_gemm_kernel(%arg0: i32, %arg1: i32, %arg2: i32, %arg3: memref<128x256xbf16, #tpu.memory_space<vmem>>, %arg4: memref<256x128xbf16, #tpu.memory_space<vmem>>, %arg5: memref<128x128xbf16, #tpu.memory_space<vmem>>, %arg6: memref<1x1x128xf32, #tpu.memory_space<vmem>>, %arg7: memref<1x1x128xf32, #tpu.memory_space<vmem>>) attributes {dimension_semantics = [#tpu.dimension_semantics<parallel>, #tpu.dimension_semantics<parallel>, #tpu.dimension_semantics<arbitrary>], iteration_bounds = array<i64: 1, 1, 1>, scalar_prefetch = 0 : i64, scratch_operands = 0 : i64, tpu.core_type = #tpu.core_type<tc>, window_params = [{transform_indices = @transform_0, window_bounds = array<i64: 128, 256>}, {transform_indices = @transform_1, window_bounds = array<i64: 256, 128>}, {transform_indices = @transform_2, window_bounds = array<i64: 128, 128>}, {transform_indices = @transform_3, window_bounds = array<i64: 1, 1, 128>}, {transform_indices = @transform_4, window_bounds = array<i64: 1, 1, 128>}]} {
    %c0 = arith.constant 0 : index
    %c0_0 = arith.constant 0 : index
    %0 = vector.load %arg3[%c0, %c0_0] : memref<128x256xbf16, #tpu.memory_space<vmem>>, vector<128x256xbf16>
    %c0_1 = arith.constant 0 : index
    %c0_2 = arith.constant 0 : index
    %1 = vector.load %arg4[%c0_1, %c0_2] : memref<256x128xbf16, #tpu.memory_space<vmem>>, vector<256x128xbf16>
    %cst = arith.constant dense<0.000000e+00> : vector<128x128xf32>
    %2 = tpu.matmul %0, %1, %cst {dimension_numbers = #tpu.dot_dimension_numbers<[1], [0], [0], [1], [0, 0, 1, 1], [], []>} : vector<128x256xbf16>, vector<256x128xbf16>, vector<128x128xf32> -> vector<128x128xf32>
    %cst_3 = arith.constant dense<0.000000e+00> : vector<128xf32>
    %3 = vector.multi_reduction <add>, %2, %cst_3 [0] : vector<128x128xf32> to vector<128xf32>
    %4 = vector.shape_cast %3 : vector<128xf32> to vector<1x1x128xf32>
    %c0_4 = arith.constant 0 : index
    %c0_5 = arith.constant 0 : index
    %c0_6 = arith.constant 0 : index
    %5 = vector.load %arg6[%c0_4, %c0_5, %c0_6] : memref<1x1x128xf32, #tpu.memory_space<vmem>>, vector<1x1x128xf32>
    tpu.vector_store %arg6[%c0_4, %c0_5, %c0_6], %4 {strides = array<i32>} : memref<1x1x128xf32, #tpu.memory_space<vmem>>, vector<1x1x128xf32>,
    %6 = arith.mulf %2, %2 : vector<128x128xf32>
    %cst_7 = arith.constant dense<0.000000e+00> : vector<128xf32>
    %7 = vector.multi_reduction <add>, %6, %cst_7 [0] : vector<128x128xf32> to vector<128xf32>
    %8 = vector.shape_cast %7 : vector<128xf32> to vector<1x1x128xf32>
    %c0_8 = arith.constant 0 : index
    %c0_9 = arith.constant 0 : index
    %c0_10 = arith.constant 0 : index
    %9 = vector.load %arg7[%c0_8, %c0_9, %c0_10] : memref<1x1x128xf32, #tpu.memory_space<vmem>>, vector<1x1x128xf32>
    tpu.vector_store %arg7[%c0_8, %c0_9, %c0_10], %8 {strides = array<i32>} : memref<1x1x128xf32, #tpu.memory_space<vmem>>, vector<1x1x128xf32>,
    %10 = arith.truncf %2 : vector<128x128xf32> to vector<128x128xbf16>
    %c0_11 = arith.constant 0 : index
    %c0_12 = arith.constant 0 : index
    %11 = vector.load %arg5[%c0_11, %c0_12] : memref<128x128xbf16, #tpu.memory_space<vmem>>, vector<128x128xbf16>
    tpu.vector_store %arg5[%c0_11, %c0_12], %10 {strides = array<i32>} : memref<128x128xbf16, #tpu.memory_space<vmem>>, vector<128x128xbf16>,
    return
  }
  func.func @transform_0(%arg0: i32, %arg1: i32, %arg2: i32) -> (i32, i32) {
    %c0_i32 = arith.constant 0 : i32
    return %arg0, %arg2 : i32, i32
  }
  func.func @transform_1(%arg0: i32, %arg1: i32, %arg2: i32) -> (i32, i32) {
    %c0_i32 = arith.constant 0 : i32
    return %arg2, %arg1 : i32, i32
  }
  func.func @transform_2(%arg0: i32, %arg1: i32, %arg2: i32) -> (i32, i32) {
    %c0_i32 = arith.constant 0 : i32
    return %arg0, %arg1 : i32, i32
  }
  func.func @transform_3(%arg0: i32, %arg1: i32, %arg2: i32) -> (i32, i32, i32) {
    %c0_i32 = arith.constant 0 : i32
    %c0_i32_0 = arith.constant 0 : i32
    return %arg0, %c0_i32, %arg1 : i32, i32, i32
  }
  func.func @transform_4(%arg0: i32, %arg1: i32, %arg2: i32) -> (i32, i32, i32) {
    %c0_i32 = arith.constant 0 : i32
    %c0_i32_0 = arith.constant 0 : i32
    return %arg0, %c0_i32, %arg1 : i32, i32, i32
  }
}

module attributes {stable_mosaic.version = 11 : i64} {
  func.func @_conv_gemm_kernel(%arg0: i32, %arg1: i32, %arg2: i32, %arg3: memref<32x512xbf16, #tpu.memory_space<vmem>>, %arg4: memref<512x128xbf16, #tpu.memory_space<vmem>>, %arg5: memref<32x128xbf16, #tpu.memory_space<vmem>>, %arg6: memref<1x1x128xf32, #tpu.memory_space<vmem>>, %arg7: memref<1x1x128xf32, #tpu.memory_space<vmem>>) attributes {dimension_semantics = [#tpu.dimension_semantics<parallel>, #tpu.dimension_semantics<parallel>, #tpu.dimension_semantics<arbitrary>], iteration_bounds = array<i64: 1, 1, 1>, scalar_prefetch = 0 : i64, scratch_operands = 0 : i64, tpu.core_type = #tpu.core_type<tc>, window_params = [{transform_indices = @transform_0, window_bounds = array<i64: 32, 512>}, {transform_indices = @transform_1, window_bounds = array<i64: 512, 128>}, {transform_indices = @transform_2, window_bounds = array<i64: 32, 128>}, {transform_indices = @transform_3, window_bounds = array<i64: 1, 1, 128>}, {transform_indices = @transform_4, window_bounds = array<i64: 1, 1, 128>}]} {
    %c0 = arith.constant 0 : index
    %c0_0 = arith.constant 0 : index
    %0 = vector.load %arg3[%c0, %c0_0] : memref<32x512xbf16, #tpu.memory_space<vmem>>, vector<32x512xbf16>
    %c0_1 = arith.constant 0 : index
    %c0_2 = arith.constant 0 : index
    %1 = vector.load %arg4[%c0_1, %c0_2] : memref<512x128xbf16, #tpu.memory_space<vmem>>, vector<512x128xbf16>
    %cst = arith.constant dense<0.000000e+00> : vector<32x128xf32>
    %2 = tpu.matmul %0, %1, %cst {dimension_numbers = #tpu.dot_dimension_numbers<[1], [0], [0], [1], [0, 0, 1, 1], [], []>} : vector<32x512xbf16>, vector<512x128xbf16>, vector<32x128xf32> -> vector<32x128xf32>
    %cst_3 = arith.constant dense<0.000000e+00> : vector<128xf32>
    %3 = vector.multi_reduction <add>, %2, %cst_3 [0] : vector<32x128xf32> to vector<128xf32>
    %4 = vector.shape_cast %3 : vector<128xf32> to vector<1x1x128xf32>
    %c0_4 = arith.constant 0 : index
    %c0_5 = arith.constant 0 : index
    %c0_6 = arith.constant 0 : index
    %5 = vector.load %arg6[%c0_4, %c0_5, %c0_6] : memref<1x1x128xf32, #tpu.memory_space<vmem>>, vector<1x1x128xf32>
    tpu.vector_store %arg6[%c0_4, %c0_5, %c0_6], %4 {strides = array<i32>} : memref<1x1x128xf32, #tpu.memory_space<vmem>>, vector<1x1x128xf32>,
    %6 = arith.mulf %2, %2 : vector<32x128xf32>
    %cst_7 = arith.constant dense<0.000000e+00> : vector<128xf32>
    %7 = vector.multi_reduction <add>, %6, %cst_7 [0] : vector<32x128xf32> to vector<128xf32>
    %8 = vector.shape_cast %7 : vector<128xf32> to vector<1x1x128xf32>
    %c0_8 = arith.constant 0 : index
    %c0_9 = arith.constant 0 : index
    %c0_10 = arith.constant 0 : index
    %9 = vector.load %arg7[%c0_8, %c0_9, %c0_10] : memref<1x1x128xf32, #tpu.memory_space<vmem>>, vector<1x1x128xf32>
    tpu.vector_store %arg7[%c0_8, %c0_9, %c0_10], %8 {strides = array<i32>} : memref<1x1x128xf32, #tpu.memory_space<vmem>>, vector<1x1x128xf32>,
    %10 = arith.truncf %2 : vector<32x128xf32> to vector<32x128xbf16>
    %c0_11 = arith.constant 0 : index
    %c0_12 = arith.constant 0 : index
    %11 = vector.load %arg5[%c0_11, %c0_12] : memref<32x128xbf16, #tpu.memory_space<vmem>>, vector<32x128xbf16>
    tpu.vector_store %arg5[%c0_11, %c0_12], %10 {strides = array<i32>} : memref<32x128xbf16, #tpu.memory_space<vmem>>, vector<32x128xbf16>,
    return
  }
  func.func @transform_0(%arg0: i32, %arg1: i32, %arg2: i32) -> (i32, i32) {
    %c0_i32 = arith.constant 0 : i32
    return %arg0, %arg2 : i32, i32
  }
  func.func @transform_1(%arg0: i32, %arg1: i32, %arg2: i32) -> (i32, i32) {
    %c0_i32 = arith.constant 0 : i32
    return %arg2, %arg1 : i32, i32
  }
  func.func @transform_2(%arg0: i32, %arg1: i32, %arg2: i32) -> (i32, i32) {
    %c0_i32 = arith.constant 0 : i32
    return %arg0, %arg1 : i32, i32
  }
  func.func @transform_3(%arg0: i32, %arg1: i32, %arg2: i32) -> (i32, i32, i32) {
    %c0_i32 = arith.constant 0 : i32
    %c0_i32_0 = arith.constant 0 : i32
    return %arg0, %c0_i32, %arg1 : i32, i32, i32
  }
  func.func @transform_4(%arg0: i32, %arg1: i32, %arg2: i32) -> (i32, i32, i32) {
    %c0_i32 = arith.constant 0 : i32
    %c0_i32_0 = arith.constant 0 : i32
    return %arg0, %c0_i32, %arg1 : i32, i32, i32
  }
}

module attributes {stable_mosaic.version = 11 : i64} {
  func.func @_conv_gemm_kernel(%arg0: i32, %arg1: i32, %arg2: i32, %arg3: memref<16x1024xbf16, #tpu.memory_space<vmem>>, %arg4: memref<1024x128xbf16, #tpu.memory_space<vmem>>, %arg5: memref<16x128xf32, #tpu.memory_space<vmem>>) attributes {dimension_semantics = [#tpu.dimension_semantics<parallel>, #tpu.dimension_semantics<parallel>, #tpu.dimension_semantics<arbitrary>], iteration_bounds = array<i64: 1, 1, 1>, scalar_prefetch = 0 : i64, scratch_operands = 0 : i64, tpu.core_type = #tpu.core_type<tc>, window_params = [{transform_indices = @transform_0, window_bounds = array<i64: 16, 1024>}, {transform_indices = @transform_1, window_bounds = array<i64: 1024, 128>}, {transform_indices = @transform_2, window_bounds = array<i64: 16, 128>}]} {
    %c0 = arith.constant 0 : index
    %c0_0 = arith.constant 0 : index
    %0 = vector.load %arg3[%c0, %c0_0] : memref<16x1024xbf16, #tpu.memory_space<vmem>>, vector<16x1024xbf16>
    %c0_1 = arith.constant 0 : index
    %c0_2 = arith.constant 0 : index
    %1 = vector.load %arg4[%c0_1, %c0_2] : memref<1024x128xbf16, #tpu.memory_space<vmem>>, vector<1024x128xbf16>
    %cst = arith.constant dense<0.000000e+00> : vector<16x128xf32>
    %2 = tpu.matmul %0, %1, %cst {dimension_numbers = #tpu.dot_dimension_numbers<[1], [0], [0], [1], [0, 0, 1, 1], [], []>} : vector<16x1024xbf16>, vector<1024x128xbf16>, vector<16x128xf32> -> vector<16x128xf32>
    %c0_3 = arith.constant 0 : index
    %c0_4 = arith.constant 0 : index
    %3 = vector.load %arg5[%c0_3, %c0_4] : memref<16x128xf32, #tpu.memory_space<vmem>>, vector<16x128xf32>
    tpu.vector_store %arg5[%c0_3, %c0_4], %2 {strides = array<i32>} : memref<16x128xf32, #tpu.memory_space<vmem>>, vector<16x128xf32>,
    return
  }
  func.func @transform_0(%arg0: i32, %arg1: i32, %arg2: i32) -> (i32, i32) {
    %c0_i32 = arith.constant 0 : i32
    return %arg0, %arg2 : i32, i32
  }
  func.func @transform_1(%arg0: i32, %arg1: i32, %arg2: i32) -> (i32, i32) {
    %c0_i32 = arith.constant 0 : i32
    return %arg2, %arg1 : i32, i32
  }
  func.func @transform_2(%arg0: i32, %arg1: i32, %arg2: i32) -> (i32, i32) {
    %c0_i32 = arith.constant 0 : i32
    return %arg0, %arg1 : i32, i32
  }
}

</mosaic_0001>

<llo_original>
// kernel: net_e_forward.6
$region0: #{net_e_forward.6}
  #allocation0 [shape = 'u32[]', space=smem, size = 0x4, offset = 0x4, fixed_abs, tag = 'smem constant byte address 0x4 - core index']
  #allocation1 [shape = 'u32[144,128]{1,0:T(1,128)}', space=vmem, size = 0x12000, scoped, tag = 'internal scratch']
  %s0 = inlined_call_operand.vmem [shape: bf16[8192,48], index: 0, kind: input, shape index: {}]
  %s1 = inlined_call_operand.vmem [shape: bf16[48,128], index: 1, kind: input, shape index: {}]
  %s2 = inlined_call_operand.vmem [shape: bf16[8192,128], index: 2, kind: output, shape index: {}]
  %s3 = sld [smem:[#allocation0]]
  $region41: #{net_e_forward.6} parent=0
    _
  %s5 = ssub.s32 1, %s3
  %s6 = scalar_select 0, %s5, %s3
  loop: start=0, step=1, limit=18
  $region2: #{net_e_forward.6} parent=0 // loop_pre_header
    _
  $region3: #{net_e_forward.6} parent=0 // loop_header
    %s8 = sphi 0, %s12
    %p9 = scmp.ge.s32.totalorder %s8, 18
    %s15 = sphi 0, %s34
    %s16 = sphi 0, %s30
    %s17 = sphi 0, %s26
    %s18 = sphi 0, %s15
    %s19 = sphi 0, %s16
    %s20 = sphi 0, %s17
    %s21 = sphi 0, %s18
    %s22 = sphi 0, %s19
    %s23 = sphi 0, %s20
    %s39 = sphi 0, %s41
    %s42 = sphi 0, %s39
    %s43 = sphi 0, %s42
    %s59 = sphi 0, %s43
    %s67 = sphi 0, %s69
    %s70 = sphi 0, %s67
    %s71 = sphi 0, %s70
    %s87 = sphi 0, %s71
    %s95 = sphi 0, %s97
    %s98 = sphi 0, %s95
    %s99 = sphi 0, %s98
    %s115 = sphi 0, %s99
  $region4: #{net_e_forward.6} parent=0 // loop_header_branch
    %11 = sbr.rel (%p9) target = $region8
  $region5: #{net_e_forward.6} parent=0 // loop_body
    %s13 = ssub.s32 %s8, 1
    %s14 = ssub.s32 %s8, 2
    %s24 = sadd.s32 1, %s17
    %p25 = scmp.ge.s32.totalorder %s24, 1
    %s26 = scalar_select %p25, 0, %s24
    %s27 = sadd.s32 1, %s16
    %s28 = scalar_select %p25, %s27, %s16
    %p29 = scmp.ge.s32.totalorder %s28, 1
    %s30 = scalar_select %p29, 0, %s28
    %s31 = sadd.s32 1, %s15
    %s32 = scalar_select %p29, %s31, %s15
    %p33 = scmp.ge.s32.totalorder %s32, 16
    %s34 = scalar_select %p33, 0, %s32
    %s35 = ssub.s32 %s15, %s34
    %s36 = ssub.s32 %s17, %s26
    %s37 = sor.u32 %s35, %s36
    %p38 = scmp.eq.s32.totalorder %s37, 0
    %s40 = sadd.s32 %s39, 1
    %s41 = scalar_select %p38, %s39, %s40
    %p44 = pneg %p38
    %p45 = scmp.eq.s32.totalorder %s8, 15
    %p46 = por %p44, %p45
    %p47 = scmp.ne.s32.totalorder %s39, %s42
    %p48 = scmp.eq.s32.totalorder %s8, 0
    %p49 = por %p47, %p48
    %p50 = scmp.ne.s32.totalorder %s39, %s42
    %p51 = scmp.eq.s32.totalorder %s13, 15
    %p52 = por %p50, %p51
    %p53 = scmp.ne.s32.totalorder %s42, %s43
    %p54 = scmp.eq.s32.totalorder %s13, 0
    %p55 = por %p53, %p54
    %p56 = scmp.ne.s32.totalorder %s42, %s43
    %p57 = scmp.eq.s32.totalorder %s14, 15
    %p58 = por %p56, %p57
    %p60 = scmp.ne.s32.totalorder %s43, %s59
    %p61 = scmp.eq.s32.totalorder %s14, 0
    %p62 = por %p60, %p61
    %s63 = ssub.s32 %s17, %s26
    %s64 = ssub.s32 %s16, %s30
    %s65 = sor.u32 %s63, %s64
    %p66 = scmp.eq.s32.totalorder %s65, 0
    %s68 = sadd.s32 %s67, 1
    %s69 = scalar_select %p66, %s67, %s68
    %p72 = pneg %p66
    %p73 = scmp.eq.s32.totalorder %s8, 15
    %p74 = por %p72, %p73
    %p75 = scmp.ne.s32.totalorder %s67, %s70
    %p76 = scmp.eq.s32.totalorder %s8, 0
    %p77 = por %p75, %p76
    %p78 = scmp.ne.s32.totalorder %s67, %s70
    %p79 = scmp.eq.s32.totalorder %s13, 15
    %p80 = por %p78, %p79
    %p81 = scmp.ne.s32.totalorder %s70, %s71
    %p82 = scmp.eq.s32.totalorder %s13, 0
    %p83 = por %p81, %p82
    %p84 = scmp.ne.s32.totalorder %s70, %s71
    %p85 = scmp.eq.s32.totalorder %s14, 15
    %p86 = por %p84, %p85
    %p88 = scmp.ne.s32.totalorder %s71, %s87
    %p89 = scmp.eq.s32.totalorder %s14, 0
    %p90 = por %p88, %p89
    %s91 = ssub.s32 %s15, %s34
    %s92 = ssub.s32 %s16, %s30
    %s93 = sor.u32 %s91, %s92
    %p94 = scmp.eq.s32.totalorder %s93, 0
    %s96 = sadd.s32 %s95, 1
    %s97 = scalar_select %p94, %s95, %s96
    %p100 = pneg %p94
    %p101 = scmp.eq.s32.totalorder %s8, 15
    %p102 = por %p100, %p101
    %p103 = scmp.ne.s32.totalorder %s95, %s98
    %p104 = scmp.eq.s32.totalorder %s8, 0
    %p105 = por %p103, %p104
    %p106 = scmp.ne.s32.totalorder %s95, %s98
    %p107 = scmp.eq.s32.totalorder %s13, 15
    %p108 = por %p106, %p107
    %p109 = scmp.ne.s32.totalorder %s98, %s99
    %p110 = scmp.eq.s32.totalorder %s13, 0
    %p111 = por %p109, %p110
    %p112 = scmp.ne.s32.totalorder %s98, %s99
    %p113 = scmp.eq.s32.totalorder %s14, 15
    %p114 = por %p112, %p113
    %p116 = scmp.ne.s32.totalorder %s99, %s115
    %p117 = scmp.eq.s32.totalorder %s14, 0
    %p118 = por %p116, %p117
    %p119 = scmp.le.s32.totalorder 1, %s8
    %p120 = scmp.lt.s32.totalorder %s8, 17
    %p121 = pnand %p119, %p120
    %p122 = pneg %p121
    // Predicated region
    $region9: #{net_e_forward.6} parent=5 // pred_check
      _
    $region10: #{net_e_forward.6} parent=5 // pred_check_branch
      %124 = sbr.rel (%p121) target = $region12
    $region11: #{net_e_forward.6} parent=5 // pred_region
      %s125 = ssub.s32 %s8, 1
      // Predicated region
      $region13: #{net_e_forward.6} parent=11 // pred_check
        %p126 = pneg %p83
      $region14: #{net_e_forward.6} parent=11 // pred_check_branch
        %128 = sbr.rel (%p126) target = $region16
      $region15: #{net_e_forward.6} parent=11 // pred_region
        %s129 = smul.u32 6, %s20
        %p130 = scmp.lt.s32.totalorder %s129, 5
        %s131 = scalar_select %p130, %s129, 5
        %p132 = scmp.lt.s32.totalorder %s19, 0
        %s133 = scalar_select %p132, %s19, 0
        %s134 = sadd.s32 %s133, %s131
        %s135 = smul.addr %s134, 4
        %s136 = scalar_lea.vmem %s1, %s135
        %s137 = smul.u32 6, %s20
      $region16: #{net_e_forward.6} parent=11 // pred_fallthru
        _
    $region12: #{net_e_forward.6} parent=5 // pred_fallthru
      _
    %p138 = scmp.lt.s32.totalorder %s8, 16
    // Predicated region
    $region17: #{net_e_forward.6} parent=5 // pred_check
      %p139 = pneg %p138
    $region18: #{net_e_forward.6} parent=5 // pred_check_branch
      %141 = sbr.rel (%p139) target = $region20
    $region19: #{net_e_forward.6} parent=5 // pred_region
      // Predicated region
      $region21: #{net_e_forward.6} parent=19 // pred_check
        %p142 = pneg %p49
      $region22: #{net_e_forward.6} parent=19 // pred_check_branch
        %144 = sbr.rel (%p142) target = $region24
      $region23: #{net_e_forward.6} parent=19 // pred_region
        %s145 = smul.u32 64, %s15
        %p146 = scmp.lt.s32.totalorder %s145, 1023
        %s147 = scalar_select %p146, %s145, 1023
        %p148 = scmp.lt.s32.totalorder %s17, 0
        %s149 = scalar_select %p148, %s17, 0
        %s150 = sadd.s32 %s149, %s147
        %s151 = smul.addr %s150, 4
        %s152 = scalar_lea.vmem %s0, %s151
        %s153 = smul.u32 64, %s15
      $region24: #{net_e_forward.6} parent=19 // pred_fallthru
        _
    $region20: #{net_e_forward.6} parent=5 // pred_fallthru
      _
    %p154 = scmp.le.s32.totalorder 1, %s8
    %p155 = scmp.lt.s32.totalorder %s8, 17
    %p156 = pnand %p154, %p155
    %p157 = pneg %p156
    // Predicated region
    $region25: #{net_e_forward.6} parent=5 // pred_check
      _
    $region26: #{net_e_forward.6} parent=5 // pred_check_branch
      %159 = sbr.rel (%p156) target = $region28
    $region27: #{net_e_forward.6} parent=5 // pred_region
      %s160 = ssub.s32 %s8, 1
      %s161 = smul.u32 64, %s18
      %p162 = scmp.lt.s32.totalorder %s161, 1023
      %s163 = scalar_select %p162, %s161, 1023
      %p164 = scmp.lt.s32.totalorder %s20, 0
      %s165 = scalar_select %p164, %s20, 0
      %s166 = sadd.s32 %s165, %s163
      %s167 = smul.addr %s166, 4
      %s168 = scalar_lea.vmem %s0, %s167
      %p169 = pneg %p55
      %p170 = pneg %p52
      %s171 = smul.u32 6, %s20
      %p172 = scmp.lt.s32.totalorder %s171, 5
      %s173 = scalar_select %p172, %s171, 5
      %p174 = scmp.lt.s32.totalorder %s19, 0
      %s175 = scalar_select %p174, %s19, 0
      %s176 = sadd.s32 %s175, %s173
      %s177 = smul.addr %s176, 4
      %s178 = scalar_lea.vmem %s1, %s177
      %p179 = pneg %p83
      %p180 = pneg %p80
      %p181 = pneg %p111
      %p182 = pneg %p108
      %s183 = smul.u32 64, %s18
      %p184 = scmp.lt.s32.totalorder %s183, 1023
      %s185 = scalar_select %p184, %s183, 1023
      %p186 = scmp.lt.s32.totalorder %s19, 0
      %s187 = scalar_select %p186, %s19, 0
      %s188 = sadd.s32 %s187, %s185
      %s189 = smul.addr %s188, 4
      %s190 = scalar_lea.vmem %s2, %s189
      %s191 = smul.u32 64, %s18
      %p192 = scmp.lt.s32.totalorder %s191, 1023
      %s193 = scalar_select %p192, %s191, 1023
      %p194 = scmp.lt.s32.totalorder %s20, 0
      %s195 = scalar_select %p194, %s20, 0
      %s196 = sadd.s32 %s195, %s193
      %s197 = smul.addr %s196, 4
      %s198 = scalar_lea.vmem %s0, %s197
      %s199 = smul.u32 64, %s18
      %s200 = smul.u32 6, %s20
      %p201 = scmp.lt.s32.totalorder %s200, 5
      %s202 = scalar_select %p201, %s200, 5
      %p203 = scmp.lt.s32.totalorder %s19, 0
      %s204 = scalar_select %p203, %s19, 0
      %s205 = sadd.s32 %s204, %s202
      %s206 = smul.addr %s205, 4
      %s207 = scalar_lea.vmem %s1, %s206
      %s208 = smul.u32 6, %s20
      %s209 = smul.u32 64, %s18
      %p210 = scmp.lt.s32.totalorder %s209, 1023
      %s211 = scalar_select %p210, %s209, 1023
      %p212 = scmp.lt.s32.totalorder %s19, 0
      %s213 = scalar_select %p212, %s19, 0
      %s214 = sadd.s32 %s213, %s211
      %s215 = smul.addr %s214, 4
      %s216 = scalar_lea.vmem %s2, %s215
      %s217 = smul.u32 64, %s18
      %v219 = vld [vmem:[%s198] sm:$0xf]
      %v220 = vld [vmem:[%s198 + $0x4] sm:$0xf]
      %v221 = vld [vmem:[%s198 + $0x8] sm:$0xf]
      %v222 = vld [vmem:[%s198 + $0xc] sm:$0xf]
      %v223 = vld [vmem:[%s198 + $0x10] sm:$0xf]
      %v224 = vld [vmem:[%s198 + $0x14] sm:$0xf]
      %v225 = vld [vmem:[%s198 + $0x18] sm:$0xf]
      %v226 = vld [vmem:[%s198 + $0x1c] sm:$0xf]
      %v227 = vld [vmem:[%s198 + $0x20] sm:$0xf]
      %v228 = vld [vmem:[%s198 + $0x24] sm:$0xf]
      %v229 = vld [vmem:[%s198 + $0x28] sm:$0xf]
      %v230 = vld [vmem:[%s198 + $0x2c] sm:$0xf]
      %v231 = vld [vmem:[%s198 + $0x30] sm:$0xf]
      %v232 = vld [vmem:[%s198 + $0x34] sm:$0xf]
      %v233 = vld [vmem:[%s198 + $0x38] sm:$0xf]
      %v234 = vld [vmem:[%s198 + $0x3c] sm:$0xf]
      %v235 = vld [vmem:[%s198 + $0x40] sm:$0xf]
      %v236 = vld [vmem:[%s198 + $0x44] sm:$0xf]
      %v237 = vld [vmem:[%s198 + $0x48] sm:$0xf]
      %v238 = vld [vmem:[%s198 + $0x4c] sm:$0xf]
      %v239 = vld [vmem:[%s198 + $0x50] sm:$0xf]
      %v240 = vld [vmem:[%s198 + $0x54] sm:$0xf]
      %v241 = vld [vmem:[%s198 + $0x58] sm:$0xf]
      %v242 = vld [vmem:[%s198 + $0x5c] sm:$0xf]
      %v243 = vld [vmem:[%s198 + $0x60] sm:$0xf]
      %v244 = vld [vmem:[%s198 + $0x64] sm:$0xf]
      %v245 = vld [vmem:[%s198 + $0x68] sm:$0xf]
      %v246 = vld [vmem:[%s198 + $0x6c] sm:$0xf]
      %v247 = vld [vmem:[%s198 + $0x70] sm:$0xf]
      %v248 = vld [vmem:[%s198 + $0x74] sm:$0xf]
      %v249 = vld [vmem:[%s198 + $0x78] sm:$0xf]
      %v250 = vld [vmem:[%s198 + $0x7c] sm:$0xf]
      %v251 = vld [vmem:[%s198 + $0x80] sm:$0xf]
      %v252 = vld [vmem:[%s198 + $0x84] sm:$0xf]
      %v253 = vld [vmem:[%s198 + $0x88] sm:$0xf]
      %v254 = vld [vmem:[%s198 + $0x8c] sm:$0xf]
      %v255 = vld [vmem:[%s198 + $0x90] sm:$0xf]
      %v256 = vld [vmem:[%s198 + $0x94] sm:$0xf]
      %v257 = vld [vmem:[%s198 + $0x98] sm:$0xf]
      %v258 = vld [vmem:[%s198 + $0x9c] sm:$0xf]
      %v259 = vld [vmem:[%s198 + $0xa0] sm:$0xf]
      %v260 = vld [vmem:[%s198 + $0xa4] sm:$0xf]
      %v261 = vld [vmem:[%s198 + $0xa8] sm:$0xf]
      %v262 = vld [vmem:[%s198 + $0xac] sm:$0xf]
      %v263 = vld [vmem:[%s198 + $0xb0] sm:$0xf]
      %v264 = vld [vmem:[%s198 + $0xb4] sm:$0xf]
      %v265 = vld [vmem:[%s198 + $0xb8] sm:$0xf]
      %v266 = vld [vmem:[%s198 + $0xbc] sm:$0xf]
      %v267 = vld [vmem:[%s198 + $0xc0] sm:$0xf]
      %v268 = vld [vmem:[%s198 + $0xc4] sm:$0xf]
      %v269 = vld [vmem:[%s198 + $0xc8] sm:$0xf]
      %v270 = vld [vmem:[%s198 + $0xcc] sm:$0xf]
      %v271 = vld [vmem:[%s198 + $0xd0] sm:$0xf]
      %v272 = vld [vmem:[%s198 + $0xd4] sm:$0xf]
      %v273 = vld [vmem:[%s198 + $0xd8] sm:$0xf]
      %v274 = vld [vmem:[%s198 + $0xdc] sm:$0xf]
      %v275 = vld [vmem:[%s198 + $0xe0] sm:$0xf]
      %v276 = vld [vmem:[%s198 + $0xe4] sm:$0xf]
      %v277 = vld [vmem:[%s198 + $0xe8] sm:$0xf]
      %v278 = vld [vmem:[%s198 + $0xec] sm:$0xf]
      %v279 = vld [vmem:[%s198 + $0xf0] sm:$0xf]
      %v280 = vld [vmem:[%s198 + $0xf4] sm:$0xf]
      %v281 = vld [vmem:[%s198 + $0xf8] sm:$0xf]
      %v282 = vld [vmem:[%s198 + $0xfc] sm:$0xf]
      %v283 = vld [vmem:[%s207] sm:$0xf]
      %v284 = vld [vmem:[%s207 + $0x4] sm:$0xf]
      %v285 = vld [vmem:[%s207 + $0x8] sm:$0xf]
      %v286 = vld [vmem:[%s207 + $0xc] sm:$0xf]
      %v287 = vld [vmem:[%s207 + $0x10] sm:$0xf]
      %v288 = vld [vmem:[%s207 + $0x14] sm:$0xf]
      %v353 = vunpack.c.l.b16 %v219
      %v354 = vunpack.c.l.b16 %v220
      %v355 = vunpack.c.l.b16 %v221
      %v356 = vunpack.c.l.b16 %v222
      %v357 = vunpack.c.l.b16 %v223
      %v358 = vunpack.c.l.b16 %v224
      %v359 = vunpack.c.l.b16 %v225
      %v360 = vunpack.c.l.b16 %v226
      %v361 = vunpack.c.l.b16 %v227
      %v362 = vunpack.c.l.b16 %v228
      %v363 = vunpack.c.l.b16 %v229
      %v364 = vunpack.c.l.b16 %v230
      %v365 = vunpack.c.l.b16 %v231
      %v366 = vunpack.c.l.b16 %v232
      %v367 = vunpack.c.l.b16 %v233
      %v368 = vunpack.c.l.b16 %v234
      %v369 = vunpack.c.l.b16 %v235
      %v370 = vunpack.c.l.b16 %v236
      %v371 = vunpack.c.l.b16 %v237
      %v372 = vunpack.c.l.b16 %v238
      %v373 = vunpack.c.l.b16 %v239
      %v374 = vunpack.c.l.b16 %v240
      %v375 = vunpack.c.l.b16 %v241
      %v376 = vunpack.c.l.b16 %v242
      %v377 = vunpack.c.l.b16 %v243
      %v378 = vunpack.c.l.b16 %v244
      %v379 = vunpack.c.l.b16 %v245
      %v380 = vunpack.c.l.b16 %v246
      %v381 = vunpack.c.l.b16 %v247
      %v382 = vunpack.c.l.b16 %v248
      %v383 = vunpack.c.l.b16 %v249
      %v384 = vunpack.c.l.b16 %v250
      %v385 = vunpack.c.l.b16 %v251
      %v386 = vunpack.c.l.b16 %v252
      %v387 = vunpack.c.l.b16 %v253
      %v388 = vunpack.c.l.b16 %v254
      %v389 = vunpack.c.l.b16 %v255
      %v390 = vunpack.c.l.b16 %v256
      %v391 = vunpack.c.l.b16 %v257
      %v392 = vunpack.c.l.b16 %v258
      %v393 = vunpack.c.l.b16 %v259
      %v394 = vunpack.c.l.b16 %v260
      %v395 = vunpack.c.l.b16 %v261
      %v396 = vunpack.c.l.b16 %v262
      %v397 = vunpack.c.l.b16 %v263
      %v398 = vunpack.c.l.b16 %v264
      %v399 = vunpack.c.l.b16 %v265
      %v400 = vunpack.c.l.b16 %v266
      %v401 = vunpack.c.l.b16 %v267
      %v402 = vunpack.c.l.b16 %v268
      %v403 = vunpack.c.l.b16 %v269
      %v404 = vunpack.c.l.b16 %v270
      %v405 = vunpack.c.l.b16 %v271
      %v406 = vunpack.c.l.b16 %v272
      %v407 = vunpack.c.l.b16 %v273
      %v408 = vunpack.c.l.b16 %v274
      %v409 = vunpack.c.l.b16 %v275
      %v410 = vunpack.c.l.b16 %v276
      %v411 = vunpack.c.l.b16 %v277
      %v412 = vunpack.c.l.b16 %v278
      %v413 = vunpack.c.l.b16 %v279
      %v414 = vunpack.c.l.b16 %v280
      %v415 = vunpack.c.l.b16 %v281
      %v416 = vunpack.c.l.b16 %v282
      %v417 = vpack.c.b16 %v354, %v353
      %v418 = vpack.c.b16 %v356, %v355
      %v419 = vpack.c.b16 %v358, %v357
      %v420 = vpack.c.b16 %v360, %v359
      %v421 = vpack.c.b16 %v362, %v361
      %v422 = vpack.c.b16 %v364, %v363
      %v423 = vpack.c.b16 %v366, %v365
      %v424 = vpack.c.b16 %v368, %v367
      %v425 = vpack.c.b16 %v370, %v369
      %v426 = vpack.c.b16 %v372, %v371
      %v427 = vpack.c.b16 %v374, %v373
      %v428 = vpack.c.b16 %v376, %v375
      %v429 = vpack.c.b16 %v378, %v377
      %v430 = vpack.c.b16 %v380, %v379
      %v431 = vpack.c.b16 %v382, %v381
      %v432 = vpack.c.b16 %v384, %v383
      %v433 = vpack.c.b16 %v386, %v385
      %v434 = vpack.c.b16 %v388, %v387
      %v435 = vpack.c.b16 %v390, %v389
      %v436 = vpack.c.b16 %v392, %v391
      %v437 = vpack.c.b16 %v394, %v393
      %v438 = vpack.c.b16 %v396, %v395
      %v439 = vpack.c.b16 %v398, %v397
      %v440 = vpack.c.b16 %v400, %v399
      %v441 = vpack.c.b16 %v402, %v401
      %v442 = vpack.c.b16 %v404, %v403
      %v443 = vpack.c.b16 %v406, %v405
      %v444 = vpack.c.b16 %v408, %v407
      %v445 = vpack.c.b16 %v410, %v409
      %v446 = vpack.c.b16 %v412, %v411
      %v447 = vpack.c.b16 %v414, %v413
      %v448 = vpack.c.b16 %v416, %v415
      %v455 = vunpack.c.l.b16 %v283
      %v456 = vunpack.c.l.b16 %v284
      %v457 = vunpack.c.l.b16 %v285
      %v458 = vunpack.c.l.b16 %v286
      %v459 = vunpack.c.l.b16 %v287
      %v460 = vunpack.c.l.b16 %v288
      %v461 = vpack.c.b16 %v456, %v455
      %v462 = vpack.c.b16 %v458, %v457
      %v463 = vpack.c.b16 %v460, %v459
      %vm467 = vcmask 392192
      %v469 = vsel %vm467, %v417, 0
      %v472 = vsel %vm467, %v418, 0
      %v475 = vsel %vm467, %v419, 0
      %v478 = vsel %vm467, %v420, 0
      %v481 = vsel %vm467, %v421, 0
      %v484 = vsel %vm467, %v422, 0
      %v487 = vsel %vm467, %v423, 0
      %v490 = vsel %vm467, %v424, 0
      %v493 = vsel %vm467, %v425, 0
      %v496 = vsel %vm467, %v426, 0
      %v499 = vsel %vm467, %v427, 0
      %v502 = vsel %vm467, %v428, 0
      %v505 = vsel %vm467, %v429, 0
      %v508 = vsel %vm467, %v430, 0
      %v511 = vsel %vm467, %v431, 0
      %v514 = vsel %vm467, %v432, 0
      %v517 = vsel %vm467, %v433, 0
      %v520 = vsel %vm467, %v434, 0
      %v523 = vsel %vm467, %v435, 0
      %v526 = vsel %vm467, %v436, 0
      %v529 = vsel %vm467, %v437, 0
      %v532 = vsel %vm467, %v438, 0
      %v535 = vsel %vm467, %v439, 0
      %v538 = vsel %vm467, %v440, 0
      %v541 = vsel %vm467, %v441, 0
      %v544 = vsel %vm467, %v442, 0
      %v547 = vsel %vm467, %v443, 0
      %v550 = vsel %vm467, %v444, 0
      %v553 = vsel %vm467, %v445, 0
      %v556 = vsel %vm467, %v446, 0
      %v559 = vsel %vm467, %v447, 0
      %v562 = vsel %vm467, %v448, 0
      %564 = vmatprep.subr.bf16.mxu0 0
      %565 = vmatpush1.bf16.msra.mxu0 %v461
      %566 = vmatprep.subr.bf16.mxu0 0
      %567 = vmatpush1.bf16.msra.mxu0 %v462
      %568 = vmatprep.subr.bf16.mxu0 0
      %569 = vmatpush1.bf16.msra.mxu0 %v463
      %570 = vmatprep.subr.bf16.mxu0 0
      %571 = vmatpush1.bf16.msra.mxu0 0
      %572 = vmatprep.subr.bf16.mxu0 0
      %573 = vmatpush1.bf16.msra.mxu0 0
      %574 = vmatprep.subr.bf16.mxu0 0
      %575 = vmatpush1.bf16.msra.mxu0 0
      %576 = vmatprep.subr.bf16.mxu0 0
      %577 = vmatpush1.bf16.msra.mxu0 0
      %578 = vmatprep.subr.bf16.mxu0 0
      %579 = vmatpush1.bf16.msra.mxu0 0
      %580 = vmatprep.subr.bf16.mxu0 0
      %581 = vmatpush1.bf16.msra.mxu0 0
      %582 = vmatprep.subr.bf16.mxu0 0
      %583 = vmatpush1.bf16.msra.mxu0 0
      %584 = vmatprep.subr.bf16.mxu0 0
      %585 = vmatpush1.bf16.msra.mxu0 0
      %586 = vmatprep.subr.bf16.mxu0 0
      %587 = vmatpush1.bf16.msra.mxu0 0
      %588 = vmatprep.subr.bf16.mxu0 0
      %589 = vmatpush1.bf16.msra.mxu0 0
      %590 = vmatprep.subr.bf16.mxu0 0
      %591 = vmatpush1.bf16.msra.mxu0 0
      %592 = vmatprep.subr.bf16.mxu0 0
      %593 = vmatpush1.bf16.msra.mxu0 0
      %594 = vmatprep.subr.bf16.mxu0 0
      %595 = vmatpush1.bf16.msra.mxu0 0
      %596 = vmatprep.mubr.bf16.mxu0 0
      %597 = vmatmul.mubr.bf16.gmra.mrb[0].mxu0 %v469
      %v598 = vpop.f32.mrb[0].mxu0
      %v599 = vadd.f32 0.0, %v598
      %v600 = vpop.f32.mrb[0].mxu0
      %v601 = vpop.f32.mrb[0].mxu0
      %v602 = vadd.f32 0.0, %v601
      %v603 = vpop.f32.mrb[0].mxu0
      %604 = vmatprep.mubr.bf16.mxu0 0
      %605 = vmatmul.mubr.bf16.gmra.mrb[0].mxu0 %v472
      %v606 = vpop.f32.mrb[0].mxu0
      %v607 = vadd.f32 0.0, %v606
      %v608 = vpop.f32.mrb[0].mxu0
      %v609 = vpop.f32.mrb[0].mxu0
      %v610 = vadd.f32 0.0, %v609
      %v611 = vpop.f32.mrb[0].mxu0
      %612 = vmatprep.mubr.bf16.mxu0 0
      %613 = vmatmul.mubr.bf16.gmra.mrb[0].mxu0 %v475
      %v614 = vpop.f32.mrb[0].mxu0
      %v615 = vadd.f32 0.0, %v614
      %v616 = vpop.f32.mrb[0].mxu0
      %v617 = vpop.f32.mrb[0].mxu0
      %v618 = vadd.f32 0.0, %v617
      %v619 = vpop.f32.mrb[0].mxu0
      %620 = vmatprep.mubr.bf16.mxu0 0
      %621 = vmatmul.mubr.bf16.gmra.mrb[0].mxu0 %v478
      %v622 = vpop.f32.mrb[0].mxu0
      %v623 = vadd.f32 0.0, %v622
      %v624 = vpop.f32.mrb[0].mxu0
      %v625 = vpop.f32.mrb[0].mxu0
      %v626 = vadd.f32 0.0, %v625
      %v627 = vpop.f32.mrb[0].mxu0
      %628 = vmatprep.mubr.bf16.mxu0 0
      %629 = vmatmul.mubr.bf16.gmra.mrb[0].mxu0 %v481
      %v630 = vpop.f32.mrb[0].mxu0
      %v631 = vadd.f32 0.0, %v630
      %v632 = vpop.f32.mrb[0].mxu0
      %v633 = vpop.f32.mrb[0].mxu0
      %v634 = vadd.f32 0.0, %v633
      %v635 = vpop.f32.mrb[0].mxu0
      %636 = vmatprep.mubr.bf16.mxu0 0
      %637 = vmatmul.mubr.bf16.gmra.mrb[0].mxu0 %v484
      %v638 = vpop.f32.mrb[0].mxu0
      %v639 = vadd.f32 0.0, %v638
      %v640 = vpop.f32.mrb[0].mxu0
      %v641 = vpop.f32.mrb[0].mxu0
      %v642 = vadd.f32 0.0, %v641
      %v643 = vpop.f32.mrb[0].mxu0
      %644 = vmatprep.mubr.bf16.mxu0 0
      %645 = vmatmul.mubr.bf16.gmra.mrb[0].mxu0 %v487
      %v646 = vpop.f32.mrb[0].mxu0
      %v647 = vadd.f32 0.0, %v646
      %v648 = vpop.f32.mrb[0].mxu0
      %v649 = vpop.f32.mrb[0].mxu0
      %v650 = vadd.f32 0.0, %v649
      %v651 = vpop.f32.mrb[0].mxu0
      %652 = vmatprep.mubr.bf16.mxu0 0
      %653 = vmatmul.mubr.bf16.gmra.mrb[0].mxu0 %v490
      %v654 = vpop.f32.mrb[0].mxu0
      %v655 = vadd.f32 0.0, %v654
      %v656 = vpop.f32.mrb[0].mxu0
      %v657 = vpop.f32.mrb[0].mxu0
      %v658 = vadd.f32 0.0, %v657
      %v659 = vpop.f32.mrb[0].mxu0
      %660 = vmatprep.mubr.bf16.mxu0 0
      %661 = vmatmul.mubr.bf16.gmra.mrb[0].mxu0 %v493
      %v662 = vpop.f32.mrb[0].mxu0
      %v663 = vadd.f32 0.0, %v662
      %v664 = vpop.f32.mrb[0].mxu0
      %v665 = vpop.f32.mrb[0].mxu0
      %v666 = vadd.f32 0.0, %v665
      %v667 = vpop.f32.mrb[0].mxu0
      %668 = vmatprep.mubr.bf16.mxu0 0
      %669 = vmatmul.mubr.bf16.gmra.mrb[0].mxu0 %v496
      %v670 = vpop.f32.mrb[0].mxu0
      %v671 = vadd.f32 0.0, %v670
      %v672 = vpop.f32.mrb[0].mxu0
      %v673 = vpop.f32.mrb[0].mxu0
      %v674 = vadd.f32 0.0, %v673
      %v675 = vpop.f32.mrb[0].mxu0
      %676 = vmatprep.mubr.bf16.mxu0 0
      %677 = vmatmul.mubr.bf16.gmra.mrb[0].mxu0 %v499
      %v678 = vpop.f32.mrb[0].mxu0
      %v679 = vadd.f32 0.0, %v678
      %v680 = vpop.f32.mrb[0].mxu0
      %v681 = vpop.f32.mrb[0].mxu0
      %v682 = vadd.f32 0.0, %v681
      %v683 = vpop.f32.mrb[0].mxu0
      %684 = vmatprep.mubr.bf16.mxu0 0
      %685 = vmatmul.mubr.bf16.gmra.mrb[0].mxu0 %v502
      %v686 = vpop.f32.mrb[0].mxu0
      %v687 = vadd.f32 0.0, %v686
      %v688 = vpop.f32.mrb[0].mxu0
      %v689 = vpop.f32.mrb[0].mxu0
      %v690 = vadd.f32 0.0, %v689
      %v691 = vpop.f32.mrb[0].mxu0
      %692 = vmatprep.mubr.bf16.mxu0 0
      %693 = vmatmul.mubr.bf16.gmra.mrb[0].mxu0 %v505
      %v694 = vpop.f32.mrb[0].mxu0
      %v695 = vadd.f32 0.0, %v694
      %v696 = vpop.f32.mrb[0].mxu0
      %v697 = vpop.f32.mrb[0].mxu0
      %v698 = vadd.f32 0.0, %v697
      %v699 = vpop.f32.mrb[0].mxu0
      %700 = vmatprep.mubr.bf16.mxu0 0
      %701 = vmatmul.mubr.bf16.gmra.mrb[0].mxu0 %v508
      %v702 = vpop.f32.mrb[0].mxu0
      %v703 = vadd.f32 0.0, %v702
      %v704 = vpop.f32.mrb[0].mxu0
      %v705 = vpop.f32.mrb[0].mxu0
      %v706 = vadd.f32 0.0, %v705
      %v707 = vpop.f32.mrb[0].mxu0
      %708 = vmatprep.mubr.bf16.mxu0 0
      %709 = vmatmul.mubr.bf16.gmra.mrb[0].mxu0 %v511
      %v710 = vpop.f32.mrb[0].mxu0
      %v711 = vadd.f32 0.0, %v710
      %v712 = vpop.f32.mrb[0].mxu0
      %v713 = vpop.f32.mrb[0].mxu0
      %v714 = vadd.f32 0.0, %v713
      %v715 = vpop.f32.mrb[0].mxu0
      %716 = vmatprep.mubr.bf16.mxu0 0
      %717 = vmatmul.mubr.bf16.gmra.mrb[0].mxu0 %v514
      %v718 = vpop.f32.mrb[0].mxu0
      %v719 = vadd.f32 0.0, %v718
      %v720 = vpop.f32.mrb[0].mxu0
      %v721 = vpop.f32.mrb[0].mxu0
      %v722 = vadd.f32 0.0, %v721
      %v723 = vpop.f32.mrb[0].mxu0
      %724 = vmatprep.mubr.bf16.mxu0 0
      %725 = vmatmul.mubr.bf16.gmra.mrb[0].mxu0 %v517
      %v726 = vpop.f32.mrb[0].mxu0
      %v727 = vadd.f32 0.0, %v726
      %v728 = vpop.f32.mrb[0].mxu0
      %v729 = vpop.f32.mrb[0].mxu0
      %v730 = vadd.f32 0.0, %v729
      %v731 = vpop.f32.mrb[0].mxu0
      %732 = vmatprep.mubr.bf16.mxu0 0
      %733 = vmatmul.mubr.bf16.gmra.mrb[0].mxu0 %v520
      %v734 = vpop.f32.mrb[0].mxu0
      %v735 = vadd.f32 0.0, %v734
      %v736 = vpop.f32.mrb[0].mxu0
      %v737 = vpop.f32.mrb[0].mxu0
      %v738 = vadd.f32 0.0, %v737
      %v739 = vpop.f32.mrb[0].mxu0
      %740 = vmatprep.mubr.bf16.mxu0 0
      %741 = vmatmul.mubr.bf16.gmra.mrb[0].mxu0 %v523
      %v742 = vpop.f32.mrb[0].mxu0
      %v743 = vadd.f32 0.0, %v742
      %v744 = vpop.f32.mrb[0].mxu0
      %v745 = vpop.f32.mrb[0].mxu0
      %v746 = vadd.f32 0.0, %v745
      %v747 = vpop.f32.mrb[0].mxu0
      %748 = vmatprep.mubr.bf16.mxu0 0
      %749 = vmatmul.mubr.bf16.gmra.mrb[0].mxu0 %v526
      %v750 = vpop.f32.mrb[0].mxu0
      %v751 = vadd.f32 0.0, %v750
      %v752 = vpop.f32.mrb[0].mxu0
      %v753 = vpop.f32.mrb[0].mxu0
      %v754 = vadd.f32 0.0, %v753
      %v755 = vpop.f32.mrb[0].mxu0
      %756 = vmatprep.mubr.bf16.mxu0 0
      %757 = vmatmul.mubr.bf16.gmra.mrb[0].mxu0 %v529
      %v758 = vpop.f32.mrb[0].mxu0
      %v759 = vadd.f32 0.0, %v758
      %v760 = vpop.f32.mrb[0].mxu0
      %v761 = vpop.f32.mrb[0].mxu0
      %v762 = vadd.f32 0.0, %v761
      %v763 = vpop.f32.mrb[0].mxu0
      %764 = vmatprep.mubr.bf16.mxu0 0
      %765 = vmatmul.mubr.bf16.gmra.mrb[0].mxu0 %v532
      %v766 = vpop.f32.mrb[0].mxu0
      %v767 = vadd.f32 0.0, %v766
      %v768 = vpop.f32.mrb[0].mxu0
      %v769 = vpop.f32.mrb[0].mxu0
      %v770 = vadd.f32 0.0, %v769
      %v771 = vpop.f32.mrb[0].mxu0
      %772 = vmatprep.mubr.bf16.mxu0 0
      %773 = vmatmul.mubr.bf16.gmra.mrb[0].mxu0 %v535
      %v774 = vpop.f32.mrb[0].mxu0
      %v775 = vadd.f32 0.0, %v774
      %v776 = vpop.f32.mrb[0].mxu0
      %v777 = vpop.f32.mrb[0].mxu0
      %v778 = vadd.f32 0.0, %v777
      %v779 = vpop.f32.mrb[0].mxu0
      %780 = vmatprep.mubr.bf16.mxu0 0
      %781 = vmatmul.mubr.bf16.gmra.mrb[0].mxu0 %v538
      %v782 = vpop.f32.mrb[0].mxu0
      %v783 = vadd.f32 0.0, %v782
      %v784 = vpop.f32.mrb[0].mxu0
      %v785 = vpop.f32.mrb[0].mxu0
      %v786 = vadd.f32 0.0, %v785
      %v787 = vpop.f32.mrb[0].mxu0
      %788 = vmatprep.mubr.bf16.mxu0 0
      %789 = vmatmul.mubr.bf16.gmra.mrb[0].mxu0 %v541
      %v790 = vpop.f32.mrb[0].mxu0
      %v791 = vadd.f32 0.0, %v790
      %v792 = vpop.f32.mrb[0].mxu0
      %v793 = vpop.f32.mrb[0].mxu0
      %v794 = vadd.f32 0.0, %v793
      %v795 = vpop.f32.mrb[0].mxu0
      %796 = vmatprep.mubr.bf16.mxu0 0
      %797 = vmatmul.mubr.bf16.gmra.mrb[0].mxu0 %v544
      %v798 = vpop.f32.mrb[0].mxu0
      %v799 = vadd.f32 0.0, %v798
      %v800 = vpop.f32.mrb[0].mxu0
      %v801 = vpop.f32.mrb[0].mxu0
      %v802 = vadd.f32 0.0, %v801
      %v803 = vpop.f32.mrb[0].mxu0
      %804 = vmatprep.mubr.bf16.mxu0 0
      %805 = vmatmul.mubr.bf16.gmra.mrb[0].mxu0 %v547
      %v806 = vpop.f32.mrb[0].mxu0
      %v807 = vadd.f32 0.0, %v806
      %v808 = vpop.f32.mrb[0].mxu0
      %v809 = vpop.f32.mrb[0].mxu0
      %v810 = vadd.f32 0.0, %v809
      %v811 = vpop.f32.mrb[0].mxu0
      %812 = vmatprep.mubr.bf16.mxu0 0
      %813 = vmatmul.mubr.bf16.gmra.mrb[0].mxu0 %v550
      %v814 = vpop.f32.mrb[0].mxu0
      %v815 = vadd.f32 0.0, %v814
      %v816 = vpop.f32.mrb[0].mxu0
      %v817 = vpop.f32.mrb[0].mxu0
      %v818 = vadd.f32 0.0, %v817
      %v819 = vpop.f32.mrb[0].mxu0
      %820 = vmatprep.mubr.bf16.mxu0 0
      %821 = vmatmul.mubr.bf16.gmra.mrb[0].mxu0 %v553
      %v822 = vpop.f32.mrb[0].mxu0
      %v823 = vadd.f32 0.0, %v822
      %v824 = vpop.f32.mrb[0].mxu0
      %v825 = vpop.f32.mrb[0].mxu0
      %v826 = vadd.f32 0.0, %v825
      %v827 = vpop.f32.mrb[0].mxu0
      %828 = vmatprep.mubr.bf16.mxu0 0
      %829 = vmatmul.mubr.bf16.gmra.mrb[0].mxu0 %v556
      %v830 = vpop.f32.mrb[0].mxu0
      %v831 = vadd.f32 0.0, %v830
      %v832 = vpop.f32.mrb[0].mxu0
      %v833 = vpop.f32.mrb[0].mxu0
      %v834 = vadd.f32 0.0, %v833
      %v835 = vpop.f32.mrb[0].mxu0
      %836 = vmatprep.mubr.bf16.mxu0 0
      %837 = vmatmul.mubr.bf16.gmra.mrb[0].mxu0 %v559
      %v838 = vpop.f32.mrb[0].mxu0
      %v839 = vadd.f32 0.0, %v838
      %v840 = vpop.f32.mrb[0].mxu0
      %v841 = vpop.f32.mrb[0].mxu0
      %v842 = vadd.f32 0.0, %v841
      %v843 = vpop.f32.mrb[0].mxu0
      %844 = vmatprep.mubr.bf16.mxu0 0
      %845 = vmatmul.mubr.bf16.gmra.mrb[0].mxu0 %v562
      %v846 = vpop.f32.mrb[0].mxu0
      %v847 = vadd.f32 0.0, %v846
      %v848 = vpop.f32.mrb[0].mxu0
      %v849 = vpop.f32.mrb[0].mxu0
      %v850 = vadd.f32 0.0, %v849
      %v851 = vpop.f32.mrb[0].mxu0
      %852 = vdwg.mxu0
      %vm853 = vcmp.gt.f32.partialorder %v599, 0.0
      %vm854 = vcmp.gt.f32.partialorder %v602, 0.0
      %vm855 = vcmp.gt.f32.partialorder %v607, 0.0
      %vm856 = vcmp.gt.f32.partialorder %v610, 0.0
      %vm857 = vcmp.gt.f32.partialorder %v615, 0.0
      %vm858 = vcmp.gt.f32.partialorder %v618, 0.0
      %vm859 = vcmp.gt.f32.partialorder %v623, 0.0
      %vm860 = vcmp.gt.f32.partialorder %v626, 0.0
      %vm861 = vcmp.gt.f32.partialorder %v631, 0.0
      %vm862 = vcmp.gt.f32.partialorder %v634, 0.0
      %vm863 = vcmp.gt.f32.partialorder %v639, 0.0
      %vm864 = vcmp.gt.f32.partialorder %v642, 0.0
      %vm865 = vcmp.gt.f32.partialorder %v647, 0.0
      %vm866 = vcmp.gt.f32.partialorder %v650, 0.0
      %vm867 = vcmp.gt.f32.partialorder %v655, 0.0
      %vm868 = vcmp.gt.f32.partialorder %v658, 0.0
      %vm869 = vcmp.gt.f32.partialorder %v663, 0.0
      %vm870 = vcmp.gt.f32.partialorder %v666, 0.0
      %vm871 = vcmp.gt.f32.partialorder %v671, 0.0
      %vm872 = vcmp.gt.f32.partialorder %v674, 0.0
      %vm873 = vcmp.gt.f32.partialorder %v679, 0.0
      %vm874 = vcmp.gt.f32.partialorder %v682, 0.0
      %vm875 = vcmp.gt.f32.partialorder %v687, 0.0
      %vm876 = vcmp.gt.f32.partialorder %v690, 0.0
      %vm877 = vcmp.gt.f32.partialorder %v695, 0.0
      %vm878 = vcmp.gt.f32.partialorder %v698, 0.0
      %vm879 = vcmp.gt.f32.partialorder %v703, 0.0
      %vm880 = vcmp.gt.f32.partialorder %v706, 0.0
      %vm881 = vcmp.gt.f32.partialorder %v711, 0.0
      %vm882 = vcmp.gt.f32.partialorder %v714, 0.0
      %vm883 = vcmp.gt.f32.partialorder %v719, 0.0
      %vm884 = vcmp.gt.f32.partialorder %v722, 0.0
      %vm885 = vcmp.gt.f32.partialorder %v727, 0.0
      %vm886 = vcmp.gt.f32.partialorder %v730, 0.0
      %vm887 = vcmp.gt.f32.partialorder %v735, 0.0
      %vm888 = vcmp.gt.f32.partialorder %v738, 0.0
      %vm889 = vcmp.gt.f32.partialorder %v743, 0.0
      %vm890 = vcmp.gt.f32.partialorder %v746, 0.0
      %vm891 = vcmp.gt.f32.partialorder %v751, 0.0
      %vm892 = vcmp.gt.f32.partialorder %v754, 0.0
      %vm893 = vcmp.gt.f32.partialorder %v759, 0.0
      %vm894 = vcmp.gt.f32.partialorder %v762, 0.0
      %vm895 = vcmp.gt.f32.partialorder %v767, 0.0
      %vm896 = vcmp.gt.f32.partialorder %v770, 0.0
      %vm897 = vcmp.gt.f32.partialorder %v775, 0.0
      %vm898 = vcmp.gt.f32.partialorder %v778, 0.0
      %vm899 = vcmp.gt.f32.partialorder %v783, 0.0
      %vm900 = vcmp.gt.f32.partialorder %v786, 0.0
      %vm901 = vcmp.gt.f32.partialorder %v791, 0.0
      %vm902 = vcmp.gt.f32.partialorder %v794, 0.0
      %vm903 = vcmp.gt.f32.partialorder %v799, 0.0
      %vm904 = vcmp.gt.f32.partialorder %v802, 0.0
      %vm905 = vcmp.gt.f32.partialorder %v807, 0.0
      %vm906 = vcmp.gt.f32.partialorder %v810, 0.0
      %vm907 = vcmp.gt.f32.partialorder %v815, 0.0
      %vm908 = vcmp.gt.f32.partialorder %v818, 0.0
      %vm909 = vcmp.gt.f32.partialorder %v823, 0.0
      %vm910 = vcmp.gt.f32.partialorder %v826, 0.0
      %vm911 = vcmp.gt.f32.partialorder %v831, 0.0
      %vm912 = vcmp.gt.f32.partialorder %v834, 0.0
      %vm913 = vcmp.gt.f32.partialorder %v839, 0.0
      %vm914 = vcmp.gt.f32.partialorder %v842, 0.0
      %vm915 = vcmp.gt.f32.partialorder %v847, 0.0
      %vm916 = vcmp.gt.f32.partialorder %v850, 0.0
      %v917 = vmul.f32 %v599, 0.2
      %v918 = vmul.f32 %v602, 0.2
      %v919 = vmul.f32 %v607, 0.2
      %v920 = vmul.f32 %v610, 0.2
      %v921 = vmul.f32 %v615, 0.2
      %v922 = vmul.f32 %v618, 0.2
      %v923 = vmul.f32 %v623, 0.2
      %v924 = vmul.f32 %v626, 0.2
      %v925 = vmul.f32 %v631, 0.2
      %v926 = vmul.f32 %v634, 0.2
      %v927 = vmul.f32 %v639, 0.2
      %v928 = vmul.f32 %v642, 0.2
      %v929 = vmul.f32 %v647, 0.2
      %v930 = vmul.f32 %v650, 0.2
      %v931 = vmul.f32 %v655, 0.2
      %v932 = vmul.f32 %v658, 0.2
      %v933 = vmul.f32 %v663, 0.2
      %v934 = vmul.f32 %v666, 0.2
      %v935 = vmul.f32 %v671, 0.2
      %v936 = vmul.f32 %v674, 0.2
      %v937 = vmul.f32 %v679, 0.2
      %v938 = vmul.f32 %v682, 0.2
      %v939 = vmul.f32 %v687, 0.2
      %v940 = vmul.f32 %v690, 0.2
      %v941 = vmul.f32 %v695, 0.2
      %v942 = vmul.f32 %v698, 0.2
      %v943 = vmul.f32 %v703, 0.2
      %v944 = vmul.f32 %v706, 0.2
      %v945 = vmul.f32 %v711, 0.2
      %v946 = vmul.f32 %v714, 0.2
      %v947 = vmul.f32 %v719, 0.2
      %v948 = vmul.f32 %v722, 0.2
      %v949 = vmul.f32 %v727, 0.2
      %v950 = vmul.f32 %v730, 0.2
      %v951 = vmul.f32 %v735, 0.2
      %v952 = vmul.f32 %v738, 0.2
      %v953 = vmul.f32 %v743, 0.2
      %v954 = vmul.f32 %v746, 0.2
      %v955 = vmul.f32 %v751, 0.2
      %v956 = vmul.f32 %v754, 0.2
      %v957 = vmul.f32 %v759, 0.2
      %v958 = vmul.f32 %v762, 0.2
      %v959 = vmul.f32 %v767, 0.2
      %v960 = vmul.f32 %v770, 0.2
      %v961 = vmul.f32 %v775, 0.2
      %v962 = vmul.f32 %v778, 0.2
      %v963 = vmul.f32 %v783, 0.2
      %v964 = vmul.f32 %v786, 0.2
      %v965 = vmul.f32 %v791, 0.2
      %v966 = vmul.f32 %v794, 0.2
      %v967 = vmul.f32 %v799, 0.2
      %v968 = vmul.f32 %v802, 0.2
      %v969 = vmul.f32 %v807, 0.2
      %v970 = vmul.f32 %v810, 0.2
      %v971 = vmul.f32 %v815, 0.2
      %v972 = vmul.f32 %v818, 0.2
      %v973 = vmul.f32 %v823, 0.2
      %v974 = vmul.f32 %v826, 0.2
      %v975 = vmul.f32 %v831, 0.2
      %v976 = vmul.f32 %v834, 0.2
      %v977 = vmul.f32 %v839, 0.2
      %v978 = vmul.f32 %v842, 0.2
      %v979 = vmul.f32 %v847, 0.2
      %v980 = vmul.f32 %v850, 0.2
      %v981 = vsel %vm853, %v599, %v917
      %v982 = vsel %vm854, %v602, %v918
      %v983 = vsel %vm855, %v607, %v919
      %v984 = vsel %vm856, %v610, %v920
      %v985 = vsel %vm857, %v615, %v921
      %v986 = vsel %vm858, %v618, %v922
      %v987 = vsel %vm859, %v623, %v923
      %v988 = vsel %vm860, %v626, %v924
      %v989 = vsel %vm861, %v631, %v925
      %v990 = vsel %vm862, %v634, %v926
      %v991 = vsel %vm863, %v639, %v927
      %v992 = vsel %vm864, %v642, %v928
      %v993 = vsel %vm865, %v647, %v929
      %v994 = vsel %vm866, %v650, %v930
      %v995 = vsel %vm867, %v655, %v931
      %v996 = vsel %vm868, %v658, %v932
      %v997 = vsel %vm869, %v663, %v933
      %v998 = vsel %vm870, %v666, %v934
      %v999 = vsel %vm871, %v671, %v935
      %v1000 = vsel %vm872, %v674, %v936
      %v1001 = vsel %vm873, %v679, %v937
      %v1002 = vsel %vm874, %v682, %v938
      %v1003 = vsel %vm875, %v687, %v939
      %v1004 = vsel %vm876, %v690, %v940
      %v1005 = vsel %vm877, %v695, %v941
      %v1006 = vsel %vm878, %v698, %v942
      %v1007 = vsel %vm879, %v703, %v943
      %v1008 = vsel %vm880, %v706, %v944
      %v1009 = vsel %vm881, %v711, %v945
      %v1010 = vsel %vm882, %v714, %v946
      %v1011 = vsel %vm883, %v719, %v947
      %v1012 = vsel %vm884, %v722, %v948
      %v1013 = vsel %vm885, %v727, %v949
      %v1014 = vsel %vm886, %v730, %v950
      %v1015 = vsel %vm887, %v735, %v951
      %v1016 = vsel %vm888, %v738, %v952
      %v1017 = vsel %vm889, %v743, %v953
      %v1018 = vsel %vm890, %v746, %v954
      %v1019 = vsel %vm891, %v751, %v955
      %v1020 = vsel %vm892, %v754, %v956
      %v1021 = vsel %vm893, %v759, %v957
      %v1022 = vsel %vm894, %v762, %v958
      %v1023 = vsel %vm895, %v767, %v959
      %v1024 = vsel %vm896, %v770, %v960
      %v1025 = vsel %vm897, %v775, %v961
      %v1026 = vsel %vm898, %v778, %v962
      %v1027 = vsel %vm899, %v783, %v963
      %v1028 = vsel %vm900, %v786, %v964
      %v1029 = vsel %vm901, %v791, %v965
      %v1030 = vsel %vm902, %v794, %v966
      %v1031 = vsel %vm903, %v799, %v967
      %v1032 = vsel %vm904, %v802, %v968
      %v1033 = vsel %vm905, %v807, %v969
      %v1034 = vsel %vm906, %v810, %v970
      %v1035 = vsel %vm907, %v815, %v971
      %v1036 = vsel %vm908, %v818, %v972
      %v1037 = vsel %vm909, %v823, %v973
      %v1038 = vsel %vm910, %v826, %v974
      %v1039 = vsel %vm911, %v831, %v975
      %v1040 = vsel %vm912, %v834, %v976
      %v1041 = vsel %vm913, %v839, %v977
      %v1042 = vsel %vm914, %v842, %v978
      %v1043 = vsel %vm915, %v847, %v979
      %v1044 = vsel %vm916, %v850, %v980
      %v1045 = vpack.c.bf16 %v982, %v981
      %v1046 = vpack.c.bf16 %v984, %v983
      %v1047 = vpack.c.bf16 %v986, %v985
      %v1048 = vpack.c.bf16 %v988, %v987
      %v1049 = vpack.c.bf16 %v990, %v989
      %v1050 = vpack.c.bf16 %v992, %v991
      %v1051 = vpack.c.bf16 %v994, %v993
      %v1052 = vpack.c.bf16 %v996, %v995
      %v1053 = vpack.c.bf16 %v998, %v997
      %v1054 = vpack.c.bf16 %v1000, %v999
      %v1055 = vpack.c.bf16 %v1002, %v1001
      %v1056 = vpack.c.bf16 %v1004, %v1003
      %v1057 = vpack.c.bf16 %v1006, %v1005
      %v1058 = vpack.c.bf16 %v1008, %v1007
      %v1059 = vpack.c.bf16 %v1010, %v1009
      %v1060 = vpack.c.bf16 %v1012, %v1011
      %v1061 = vpack.c.bf16 %v1014, %v1013
      %v1062 = vpack.c.bf16 %v1016, %v1015
      %v1063 = vpack.c.bf16 %v1018, %v1017
      %v1064 = vpack.c.bf16 %v1020, %v1019
      %v1065 = vpack.c.bf16 %v1022, %v1021
      %v1066 = vpack.c.bf16 %v1024, %v1023
      %v1067 = vpack.c.bf16 %v1026, %v1025
      %v1068 = vpack.c.bf16 %v1028, %v1027
      %v1069 = vpack.c.bf16 %v1030, %v1029
      %v1070 = vpack.c.bf16 %v1032, %v1031
      %v1071 = vpack.c.bf16 %v1034, %v1033
      %v1072 = vpack.c.bf16 %v1036, %v1035
      %v1073 = vpack.c.bf16 %v1038, %v1037
      %v1074 = vpack.c.bf16 %v1040, %v1039
      %v1075 = vpack.c.bf16 %v1042, %v1041
      %v1076 = vpack.c.bf16 %v1044, %v1043
      %v1109 = vunpack.c.l.b16 %v1045
      %v1110 = vunpack.c.h.b16 %v1045
      %v1111 = vunpack.c.l.b16 %v1046
      %v1112 = vunpack.c.h.b16 %v1046
      %v1113 = vunpack.c.l.b16 %v1047
      %v1114 = vunpack.c.h.b16 %v1047
      %v1115 = vunpack.c.l.b16 %v1048
      %v1116 = vunpack.c.h.b16 %v1048
      %v1117 = vunpack.c.l.b16 %v1049
      %v1118 = vunpack.c.h.b16 %v1049
      %v1119 = vunpack.c.l.b16 %v1050
      %v1120 = vunpack.c.h.b16 %v1050
      %v1121 = vunpack.c.l.b16 %v1051
      %v1122 = vunpack.c.h.b16 %v1051
      %v1123 = vunpack.c.l.b16 %v1052
      %v1124 = vunpack.c.h.b16 %v1052
      %v1125 = vunpack.c.l.b16 %v1053
      %v1126 = vunpack.c.h.b16 %v1053
      %v1127 = vunpack.c.l.b16 %v1054
      %v1128 = vunpack.c.h.b16 %v1054
      %v1129 = vunpack.c.l.b16 %v1055
      %v1130 = vunpack.c.h.b16 %v1055
      %v1131 = vunpack.c.l.b16 %v1056
      %v1132 = vunpack.c.h.b16 %v1056
      %v1133 = vunpack.c.l.b16 %v1057
      %v1134 = vunpack.c.h.b16 %v1057
      %v1135 = vunpack.c.l.b16 %v1058
      %v1136 = vunpack.c.h.b16 %v1058
      %v1137 = vunpack.c.l.b16 %v1059
      %v1138 = vunpack.c.h.b16 %v1059
      %v1139 = vunpack.c.l.b16 %v1060
      %v1140 = vunpack.c.h.b16 %v1060
      %v1141 = vunpack.c.l.b16 %v1061
      %v1142 = vunpack.c.h.b16 %v1061
      %v1143 = vunpack.c.l.b16 %v1062
      %v1144 = vunpack.c.h.b16 %v1062
      %v1145 = vunpack.c.l.b16 %v1063
      %v1146 = vunpack.c.h.b16 %v1063
      %v1147 = vunpack.c.l.b16 %v1064
      %v1148 = vunpack.c.h.b16 %v1064
      %v1149 = vunpack.c.l.b16 %v1065
      %v1150 = vunpack.c.h.b16 %v1065
      %v1151 = vunpack.c.l.b16 %v1066
      %v1152 = vunpack.c.h.b16 %v1066
      %v1153 = vunpack.c.l.b16 %v1067
      %v1154 = vunpack.c.h.b16 %v1067
      %v1155 = vunpack.c.l.b16 %v1068
      %v1156 = vunpack.c.h.b16 %v1068
      %v1157 = vunpack.c.l.b16 %v1069
      %v1158 = vunpack.c.h.b16 %v1069
      %v1159 = vunpack.c.l.b16 %v1070
      %v1160 = vunpack.c.h.b16 %v1070
      %v1161 = vunpack.c.l.b16 %v1071
      %v1162 = vunpack.c.h.b16 %v1071
      %v1163 = vunpack.c.l.b16 %v1072
      %v1164 = vunpack.c.h.b16 %v1072
      %v1165 = vunpack.c.l.b16 %v1073
      %v1166 = vunpack.c.h.b16 %v1073
      %v1167 = vunpack.c.l.b16 %v1074
      %v1168 = vunpack.c.h.b16 %v1074
      %v1169 = vunpack.c.l.b16 %v1075
      %v1170 = vunpack.c.h.b16 %v1075
      %v1171 = vunpack.c.l.b16 %v1076
      %v1172 = vunpack.c.h.b16 %v1076
      %v1173 = vpack.c.b16 %v1109, %v1109
      %v1174 = vpack.c.b16 %v1110, %v1110
      %v1175 = vpack.c.b16 %v1111, %v1111
      %v1176 = vpack.c.b16 %v1112, %v1112
      %v1177 = vpack.c.b16 %v1113, %v1113
      %v1178 = vpack.c.b16 %v1114, %v1114
      %v1179 = vpack.c.b16 %v1115, %v1115
      %v1180 = vpack.c.b16 %v1116, %v1116
      %v1181 = vpack.c.b16 %v1117, %v1117
      %v1182 = vpack.c.b16 %v1118, %v1118
      %v1183 = vpack.c.b16 %v1119, %v1119
      %v1184 = vpack.c.b16 %v1120, %v1120
      %v1185 = vpack.c.b16 %v1121, %v1121
      %v1186 = vpack.c.b16 %v1122, %v1122
      %v1187 = vpack.c.b16 %v1123, %v1123
      %v1188 = vpack.c.b16 %v1124, %v1124
      %v1189 = vpack.c.b16 %v1125, %v1125
      %v1190 = vpack.c.b16 %v1126, %v1126
      %v1191 = vpack.c.b16 %v1127, %v1127
      %v1192 = vpack.c.b16 %v1128, %v1128
      %v1193 = vpack.c.b16 %v1129, %v1129
      %v1194 = vpack.c.b16 %v1130, %v1130
      %v1195 = vpack.c.b16 %v1131, %v1131
      %v1196 = vpack.c.b16 %v1132, %v1132
      %v1197 = vpack.c.b16 %v1133, %v1133
      %v1198 = vpack.c.b16 %v1134, %v1134
      %v1199 = vpack.c.b16 %v1135, %v1135
      %v1200 = vpack.c.b16 %v1136, %v1136
      %v1201 = vpack.c.b16 %v1137, %v1137
      %v1202 = vpack.c.b16 %v1138, %v1138
      %v1203 = vpack.c.b16 %v1139, %v1139
      %v1204 = vpack.c.b16 %v1140, %v1140
      %v1205 = vpack.c.b16 %v1141, %v1141
      %v1206 = vpack.c.b16 %v1142, %v1142
      %v1207 = vpack.c.b16 %v1143, %v1143
      %v1208 = vpack.c.b16 %v1144, %v1144
      %v1209 = vpack.c.b16 %v1145, %v1145
      %v1210 = vpack.c.b16 %v1146, %v1146
      %v1211 = vpack.c.b16 %v1147, %v1147
      %v1212 = vpack.c.b16 %v1148, %v1148
      %v1213 = vpack.c.b16 %v1149, %v1149
      %v1214 = vpack.c.b16 %v1150, %v1150
      %v1215 = vpack.c.b16 %v1151, %v1151
      %v1216 = vpack.c.b16 %v1152, %v1152
      %v1217 = vpack.c.b16 %v1153, %v1153
      %v1218 = vpack.c.b16 %v1154, %v1154
      %v1219 = vpack.c.b16 %v1155, %v1155
      %v1220 = vpack.c.b16 %v1156, %v1156
      %v1221 = vpack.c.b16 %v1157, %v1157
      %v1222 = vpack.c.b16 %v1158, %v1158
      %v1223 = vpack.c.b16 %v1159, %v1159
      %v1224 = vpack.c.b16 %v1160, %v1160
      %v1225 = vpack.c.b16 %v1161, %v1161
      %v1226 = vpack.c.b16 %v1162, %v1162
      %v1227 = vpack.c.b16 %v1163, %v1163
      %v1228 = vpack.c.b16 %v1164, %v1164
      %v1229 = vpack.c.b16 %v1165, %v1165
      %v1230 = vpack.c.b16 %v1166, %v1166
      %v1231 = vpack.c.b16 %v1167, %v1167
      %v1232 = vpack.c.b16 %v1168, %v1168
      %v1233 = vpack.c.b16 %v1169, %v1169
      %v1234 = vpack.c.b16 %v1170, %v1170
      %v1235 = vpack.c.b16 %v1171, %v1171
      %v1236 = vpack.c.b16 %v1172, %v1172
      %1301 = vst [vmem:[%s216] sm:$0xf] %v1173
      %1302 = vst [vmem:[%s216 + $0x4] sm:$0xf] %v1174
      %1303 = vst [vmem:[%s216 + $0x8] sm:$0xf] %v1175
      %1304 = vst [vmem:[%s216 + $0xc] sm:$0xf] %v1176
      %1305 = vst [vmem:[%s216 + $0x10] sm:$0xf] %v1177
      %1306 = vst [vmem:[%s216 + $0x14] sm:$0xf] %v1178
      %1307 = vst [vmem:[%s216 + $0x18] sm:$0xf] %v1179
      %1308 = vst [vmem:[%s216 + $0x1c] sm:$0xf] %v1180
      %1309 = vst [vmem:[%s216 + $0x20] sm:$0xf] %v1181
      %1310 = vst [vmem:[%s216 + $0x24] sm:$0xf] %v1182
      %1311 = vst [vmem:[%s216 + $0x28] sm:$0xf] %v1183
      %1312 = vst [vmem:[%s216 + $0x2c] sm:$0xf] %v1184
      %1313 = vst [vmem:[%s216 + $0x30] sm:$0xf] %v1185
      %1314 = vst [vmem:[%s216 + $0x34] sm:$0xf] %v1186
      %1315 = vst [vmem:[%s216 + $0x38] sm:$0xf] %v1187
      %1316 = vst [vmem:[%s216 + $0x3c] sm:$0xf] %v1188
      %1317 = vst [vmem:[%s216 + $0x40] sm:$0xf] %v1189
      %1318 = vst [vmem:[%s216 + $0x44] sm:$0xf] %v1190
      %1319 = vst [vmem:[%s216 + $0x48] sm:$0xf] %v1191
      %1320 = vst [vmem:[%s216 + $0x4c] sm:$0xf] %v1192
      %1321 = vst [vmem:[%s216 + $0x50] sm:$0xf] %v1193
      %1322 = vst [vmem:[%s216 + $0x54] sm:$0xf] %v1194
      %1323 = vst [vmem:[%s216 + $0x58] sm:$0xf] %v1195
      %1324 = vst [vmem:[%s216 + $0x5c] sm:$0xf] %v1196
      %1325 = vst [vmem:[%s216 + $0x60] sm:$0xf] %v1197
      %1326 = vst [vmem:[%s216 + $0x64] sm:$0xf] %v1198
      %1327 = vst [vmem:[%s216 + $0x68] sm:$0xf] %v1199
      %1328 = vst [vmem:[%s216 + $0x6c] sm:$0xf] %v1200
      %1329 = vst [vmem:[%s216 + $0x70] sm:$0xf] %v1201
      %1330 = vst [vmem:[%s216 + $0x74] sm:$0xf] %v1202
      %1331 = vst [vmem:[%s216 + $0x78] sm:$0xf] %v1203
      %1332 = vst [vmem:[%s216 + $0x7c] sm:$0xf] %v1204
      %1333 = vst [vmem:[%s216 + $0x80] sm:$0xf] %v1205
      %1334 = vst [vmem:[%s216 + $0x84] sm:$0xf] %v1206
      %1335 = vst [vmem:[%s216 + $0x88] sm:$0xf] %v1207
      %1336 = vst [vmem:[%s216 + $0x8c] sm:$0xf] %v1208
      %1337 = vst [vmem:[%s216 + $0x90] sm:$0xf] %v1209
      %1338 = vst [vmem:[%s216 + $0x94] sm:$0xf] %v1210
      %1339 = vst [vmem:[%s216 + $0x98] sm:$0xf] %v1211
      %1340 = vst [vmem:[%s216 + $0x9c] sm:$0xf] %v1212
      %1341 = vst [vmem:[%s216 + $0xa0] sm:$0xf] %v1213
      %1342 = vst [vmem:[%s216 + $0xa4] sm:$0xf] %v1214
      %1343 = vst [vmem:[%s216 + $0xa8] sm:$0xf] %v1215
      %1344 = vst [vmem:[%s216 + $0xac] sm:$0xf] %v1216
      %1345 = vst [vmem:[%s216 + $0xb0] sm:$0xf] %v1217
      %1346 = vst [vmem:[%s216 + $0xb4] sm:$0xf] %v1218
      %1347 = vst [vmem:[%s216 + $0xb8] sm:$0xf] %v1219
      %1348 = vst [vmem:[%s216 + $0xbc] sm:$0xf] %v1220
      %1349 = vst [vmem:[%s216 + $0xc0] sm:$0xf] %v1221
      %1350 = vst [vmem:[%s216 + $0xc4] sm:$0xf] %v1222
      %1351 = vst [vmem:[%s216 + $0xc8] sm:$0xf] %v1223
      %1352 = vst [vmem:[%s216 + $0xcc] sm:$0xf] %v1224
      %1353 = vst [vmem:[%s216 + $0xd0] sm:$0xf] %v1225
      %1354 = vst [vmem:[%s216 + $0xd4] sm:$0xf] %v1226
      %1355 = vst [vmem:[%s216 + $0xd8] sm:$0xf] %v1227
      %1356 = vst [vmem:[%s216 + $0xdc] sm:$0xf] %v1228
      %1357 = vst [vmem:[%s216 + $0xe0] sm:$0xf] %v1229
      %1358 = vst [vmem:[%s216 + $0xe4] sm:$0xf] %v1230
      %1359 = vst [vmem:[%s216 + $0xe8] sm:$0xf] %v1231
      %1360 = vst [vmem:[%s216 + $0xec] sm:$0xf] %v1232
      %1361 = vst [vmem:[%s216 + $0xf0] sm:$0xf] %v1233
      %1362 = vst [vmem:[%s216 + $0xf4] sm:$0xf] %v1234
      %1363 = vst [vmem:[%s216 + $0xf8] sm:$0xf] %v1235
      %1364 = vst [vmem:[%s216 + $0xfc] sm:$0xf] %v1236
      %s1365 = smul.u32 64, %s18
      %p1366 = scmp.lt.s32.totalorder %s1365, 1023
      %s1367 = scalar_select %p1366, %s1365, 1023
      %p1368 = scmp.lt.s32.totalorder %s19, 0
      %s1369 = scalar_select %p1368, %s19, 0
      %s1370 = sadd.s32 %s1369, %s1367
      %s1371 = smul.addr %s1370, 4
      %s1372 = scalar_lea.vmem %s2, %s1371
      // Predicated region
      $region29: #{net_e_forward.6} parent=27 // pred_check
        %p1373 = pneg %p108
      $region30: #{net_e_forward.6} parent=27 // pred_check_branch
        %1375 = sbr.rel (%p1373) target = $region32
      $region31: #{net_e_forward.6} parent=27 // pred_region
        %s1376 = smul.u32 64, %s18
      $region32: #{net_e_forward.6} parent=27 // pred_fallthru
        _
    $region28: #{net_e_forward.6} parent=5 // pred_fallthru
      _
    %p1377 = scmp.le.s32.totalorder 2, %s8
    // Predicated region
    $region33: #{net_e_forward.6} parent=5 // pred_check
      %p1378 = pneg %p1377
    $region34: #{net_e_forward.6} parent=5 // pred_check_branch
      %1380 = sbr.rel (%p1378) target = $region36
    $region35: #{net_e_forward.6} parent=5 // pred_region
      %s1381 = ssub.s32 %s8, 2
      // Predicated region
      $region37: #{net_e_forward.6} parent=35 // pred_check
        %p1382 = pneg %p114
      $region38: #{net_e_forward.6} parent=35 // pred_check_branch
        %1384 = sbr.rel (%p1382) target = $region40
      $region39: #{net_e_forward.6} parent=35 // pred_region
        %s1385 = smul.u32 64, %s21
        %p1386 = scmp.lt.s32.totalorder %s1385, 1023
        %s1387 = scalar_select %p1386, %s1385, 1023
        %p1388 = scmp.lt.s32.totalorder %s22, 0
        %s1389 = scalar_select %p1388, %s22, 0
        %s1390 = sadd.s32 %s1389, %s1387
        %s1391 = smul.addr %s1390, 4
        %s1392 = scalar_lea.vmem %s2, %s1391
      $region40: #{net_e_forward.6} parent=35 // pred_fallthru
        _
    $region36: #{net_e_forward.6} parent=5 // pred_fallthru
      _
  $region6: #{net_e_forward.6} parent=0 // loop_footer
    %s12 = sadd.s32 1, %s8
  $region7: #{net_e_forward.6} parent=0 // loop_footer_branch
    %7 = sbr.rel target = $region3
  $region8: #{net_e_forward.6} parent=0 // loop_exit
    _

// kernel: net_e_forward.7
$region0: #{net_e_forward.7}
  #allocation0 [shape = 'u32[]', space=smem, size = 0x4, offset = 0x4, fixed_abs, tag = 'smem constant byte address 0x4 - core index']
  #allocation1 [shape = 'u32[144,128]{1,0:T(1,128)}', space=vmem, size = 0x12000, scoped, tag = 'internal scratch']
  %s0 = inlined_call_operand.vmem [shape: bf16[2048,128], index: 0, kind: input, shape index: {}]
  %s1 = inlined_call_operand.vmem [shape: bf16[128,128], index: 1, kind: input, shape index: {}]
  %s2 = inlined_call_operand.vmem [shape: bf16[2048,128], index: 2, kind: output, shape index: {0}]
  %s3 = inlined_call_operand.vmem [shape: f32[4,1,128], index: 3, kind: output, shape index: {1}]
  %s4 = inlined_call_operand.vmem [shape: f32[4,1,128], index: 4, kind: output, shape index: {2}]
  %5 = xla_tuple %s2, %s3, %s4
  %s6 = sld [smem:[#allocation0]]
  $region57: #{net_e_forward.7} parent=0
    _
  %s8 = ssub.s32 1, %s6
  %s9 = scalar_select 0, %s8, %s6
  loop: start=0, step=1, limit=6
  $region2: #{net_e_forward.7} parent=0 // loop_pre_header
    _
  $region3: #{net_e_forward.7} parent=0 // loop_header
    %s11 = sphi 0, %s15
    %p12 = scmp.ge.s32.totalorder %s11, 6
    %s18 = sphi 0, %s37
    %s19 = sphi 0, %s33
    %s20 = sphi 0, %s29
    %s21 = sphi 0, %s18
    %s22 = sphi 0, %s19
    %s23 = sphi 0, %s20
    %s24 = sphi 0, %s21
    %s25 = sphi 0, %s22
    %s26 = sphi 0, %s23
    %s42 = sphi 0, %s44
    %s45 = sphi 0, %s42
    %s46 = sphi 0, %s45
    %s62 = sphi 0, %s46
    %s70 = sphi 0, %s72
    %s73 = sphi 0, %s70
    %s74 = sphi 0, %s73
    %s90 = sphi 0, %s74
    %s98 = sphi 0, %s100
    %s101 = sphi 0, %s98
    %s102 = sphi 0, %s101
    %s118 = sphi 0, %s102
    %s126 = sphi 0, %s128
    %s129 = sphi 0, %s126
    %s130 = sphi 0, %s129
    %s146 = sphi 0, %s130
    %s154 = sphi 0, %s156
    %s157 = sphi 0, %s154
    %s158 = sphi 0, %s157
    %s174 = sphi 0, %s158
  $region4: #{net_e_forward.7} parent=0 // loop_header_branch
    %14 = sbr.rel (%p12) target = $region8
  $region5: #{net_e_forward.7} parent=0 // loop_body
    %s16 = ssub.s32 %s11, 1
    %s17 = ssub.s32 %s11, 2
    %s27 = sadd.s32 1, %s20
    %p28 = scmp.ge.s32.totalorder %s27, 1
    %s29 = scalar_select %p28, 0, %s27
    %s30 = sadd.s32 1, %s19
    %s31 = scalar_select %p28, %s30, %s19
    %p32 = scmp.ge.s32.totalorder %s31, 1
    %s33 = scalar_select %p32, 0, %s31
    %s34 = sadd.s32 1, %s18
    %s35 = scalar_select %p32, %s34, %s18
    %p36 = scmp.ge.s32.totalorder %s35, 4
    %s37 = scalar_select %p36, 0, %s35
    %s38 = ssub.s32 %s18, %s37
    %s39 = ssub.s32 %s20, %s29
    %s40 = sor.u32 %s38, %s39
    %p41 = scmp.eq.s32.totalorder %s40, 0
    %s43 = sadd.s32 %s42, 1
    %s44 = scalar_select %p41, %s42, %s43
    %p47 = pneg %p41
    %p48 = scmp.eq.s32.totalorder %s11, 3
    %p49 = por %p47, %p48
    %p50 = scmp.ne.s32.totalorder %s42, %s45
    %p51 = scmp.eq.s32.totalorder %s11, 0
    %p52 = por %p50, %p51
    %p53 = scmp.ne.s32.totalorder %s42, %s45
    %p54 = scmp.eq.s32.totalorder %s16, 3
    %p55 = por %p53, %p54
    %p56 = scmp.ne.s32.totalorder %s45, %s46
    %p57 = scmp.eq.s32.totalorder %s16, 0
    %p58 = por %p56, %p57
    %p59 = scmp.ne.s32.totalorder %s45, %s46
    %p60 = scmp.eq.s32.totalorder %s17, 3
    %p61 = por %p59, %p60
    %p63 = scmp.ne.s32.totalorder %s46, %s62
    %p64 = scmp.eq.s32.totalorder %s17, 0
    %p65 = por %p63, %p64
    %s66 = ssub.s32 %s20, %s29
    %s67 = ssub.s32 %s19, %s33
    %s68 = sor.u32 %s66, %s67
    %p69 = scmp.eq.s32.totalorder %s68, 0
    %s71 = sadd.s32 %s70, 1
    %s72 = scalar_select %p69, %s70, %s71
    %p75 = pneg %p69
    %p76 = scmp.eq.s32.totalorder %s11, 3
    %p77 = por %p75, %p76
    %p78 = scmp.ne.s32.totalorder %s70, %s73
    %p79 = scmp.eq.s32.totalorder %s11, 0
    %p80 = por %p78, %p79
    %p81 = scmp.ne.s32.totalorder %s70, %s73
    %p82 = scmp.eq.s32.totalorder %s16, 3
    %p83 = por %p81, %p82
    %p84 = scmp.ne.s32.totalorder %s73, %s74
    %p85 = scmp.eq.s32.totalorder %s16, 0
    %p86 = por %p84, %p85
    %p87 = scmp.ne.s32.totalorder %s73, %s74
    %p88 = scmp.eq.s32.totalorder %s17, 3
    %p89 = por %p87, %p88
    %p91 = scmp.ne.s32.totalorder %s74, %s90
    %p92 = scmp.eq.s32.totalorder %s17, 0
    %p93 = por %p91, %p92
    %s94 = ssub.s32 %s18, %s37
    %s95 = ssub.s32 %s19, %s33
    %s96 = sor.u32 %s94, %s95
    %p97 = scmp.eq.s32.totalorder %s96, 0
    %s99 = sadd.s32 %s98, 1
    %s100 = scalar_select %p97, %s98, %s99
    %p103 = pneg %p97
    %p104 = scmp.eq.s32.totalorder %s11, 3
    %p105 = por %p103, %p104
    %p106 = scmp.ne.s32.totalorder %s98, %s101
    %p107 = scmp.eq.s32.totalorder %s11, 0
    %p108 = por %p106, %p107
    %p109 = scmp.ne.s32.totalorder %s98, %s101
    %p110 = scmp.eq.s32.totalorder %s16, 3
    %p111 = por %p109, %p110
    %p112 = scmp.ne.s32.totalorder %s101, %s102
    %p113 = scmp.eq.s32.totalorder %s16, 0
    %p114 = por %p112, %p113
    %p115 = scmp.ne.s32.totalorder %s101, %s102
    %p116 = scmp.eq.s32.totalorder %s17, 3
    %p117 = por %p115, %p116
    %p119 = scmp.ne.s32.totalorder %s102, %s118
    %p120 = scmp.eq.s32.totalorder %s17, 0
    %p121 = por %p119, %p120
    %s122 = ssub.s32 %s18, %s37
    %s123 = ssub.s32 %s19, %s33
    %s124 = sor.u32 %s122, %s123
    %p125 = scmp.eq.s32.totalorder %s124, 0
    %s127 = sadd.s32 %s126, 1
    %s128 = scalar_select %p125, %s126, %s127
    %p131 = pneg %p125
    %p132 = scmp.eq.s32.totalorder %s11, 3
    %p133 = por %p131, %p132
    %p134 = scmp.ne.s32.totalorder %s126, %s129
    %p135 = scmp.eq.s32.totalorder %s11, 0
    %p136 = por %p134, %p135
    %p137 = scmp.ne.s32.totalorder %s126, %s129
    %p138 = scmp.eq.s32.totalorder %s16, 3
    %p139 = por %p137, %p138
    %p140 = scmp.ne.s32.totalorder %s129, %s130
    %p141 = scmp.eq.s32.totalorder %s16, 0
    %p142 = por %p140, %p141
    %p143 = scmp.ne.s32.totalorder %s129, %s130
    %p144 = scmp.eq.s32.totalorder %s17, 3
    %p145 = por %p143, %p144
    %p147 = scmp.ne.s32.totalorder %s130, %s146
    %p148 = scmp.eq.s32.totalorder %s17, 0
    %p149 = por %p147, %p148
    %s150 = ssub.s32 %s18, %s37
    %s151 = ssub.s32 %s19, %s33
    %s152 = sor.u32 %s150, %s151
    %p153 = scmp.eq.s32.totalorder %s152, 0
    %s155 = sadd.s32 %s154, 1
    %s156 = scalar_select %p153, %s154, %s155
    %p159 = pneg %p153
    %p160 = scmp.eq.s32.totalorder %s11, 3
    %p161 = por %p159, %p160
    %p162 = scmp.ne.s32.totalorder %s154, %s157
    %p163 = scmp.eq.s32.totalorder %s11, 0
    %p164 = por %p162, %p163
    %p165 = scmp.ne.s32.totalorder %s154, %s157
    %p166 = scmp.eq.s32.totalorder %s16, 3
    %p167 = por %p165, %p166
    %p168 = scmp.ne.s32.totalorder %s157, %s158
    %p169 = scmp.eq.s32.totalorder %s16, 0
    %p170 = por %p168, %p169
    %p171 = scmp.ne.s32.totalorder %s157, %s158
    %p172 = scmp.eq.s32.totalorder %s17, 3
    %p173 = por %p171, %p172
    %p175 = scmp.ne.s32.totalorder %s158, %s174
    %p176 = scmp.eq.s32.totalorder %s17, 0
    %p177 = por %p175, %p176
    %p178 = scmp.le.s32.totalorder 1, %s11
    %p179 = scmp.lt.s32.totalorder %s11, 5
    %p180 = pnand %p178, %p179
    %p181 = pneg %p180
    // Predicated region
    $region9: #{net_e_forward.7} parent=5 // pred_check
      _
    $region10: #{net_e_forward.7} parent=5 // pred_check_branch
      %183 = sbr.rel (%p180) target = $region12
    $region11: #{net_e_forward.7} parent=5 // pred_region
      %s184 = ssub.s32 %s11, 1
      // Predicated region
      $region13: #{net_e_forward.7} parent=11 // pred_check
        %p185 = pneg %p86
      $region14: #{net_e_forward.7} parent=11 // pred_check_branch
        %187 = sbr.rel (%p185) target = $region16
      $region15: #{net_e_forward.7} parent=11 // pred_region
        %s188 = smul.u32 16, %s23
        %p189 = scmp.lt.s32.totalorder %s188, 15
        %s190 = scalar_select %p189, %s188, 15
        %p191 = scmp.lt.s32.totalorder %s22, 0
        %s192 = scalar_select %p191, %s22, 0
        %s193 = sadd.s32 %s192, %s190
        %s194 = smul.addr %s193, 4
        %s195 = scalar_lea.vmem %s1, %s194
        %s196 = smul.u32 16, %s23
      $region16: #{net_e_forward.7} parent=11 // pred_fallthru
        _
    $region12: #{net_e_forward.7} parent=5 // pred_fallthru
      _
    %p197 = scmp.lt.s32.totalorder %s11, 4
    // Predicated region
    $region17: #{net_e_forward.7} parent=5 // pred_check
      %p198 = pneg %p197
    $region18: #{net_e_forward.7} parent=5 // pred_check_branch
      %200 = sbr.rel (%p198) target = $region20
    $region19: #{net_e_forward.7} parent=5 // pred_region
      // Predicated region
      $region21: #{net_e_forward.7} parent=19 // pred_check
        %p201 = pneg %p52
      $region22: #{net_e_forward.7} parent=19 // pred_check_branch
        %203 = sbr.rel (%p201) target = $region24
      $region23: #{net_e_forward.7} parent=19 // pred_region
        %s204 = smul.u32 64, %s18
        %p205 = scmp.lt.s32.totalorder %s204, 255
        %s206 = scalar_select %p205, %s204, 255
        %p207 = scmp.lt.s32.totalorder %s20, 0
        %s208 = scalar_select %p207, %s20, 0
        %s209 = sadd.s32 %s208, %s206
        %s210 = smul.addr %s209, 4
        %s211 = scalar_lea.vmem %s0, %s210
        %s212 = smul.u32 64, %s18
      $region24: #{net_e_forward.7} parent=19 // pred_fallthru
        _
    $region20: #{net_e_forward.7} parent=5 // pred_fallthru
      _
    %p213 = scmp.le.s32.totalorder 1, %s11
    %p214 = scmp.lt.s32.totalorder %s11, 5
    %p215 = pnand %p213, %p214
    %p216 = pneg %p215
    // Predicated region
    $region25: #{net_e_forward.7} parent=5 // pred_check
      _
    $region26: #{net_e_forward.7} parent=5 // pred_check_branch
      %218 = sbr.rel (%p215) target = $region28
    $region27: #{net_e_forward.7} parent=5 // pred_region
      %s219 = ssub.s32 %s11, 1
      %s220 = smul.u32 64, %s21
      %p221 = scmp.lt.s32.totalorder %s220, 255
      %s222 = scalar_select %p221, %s220, 255
      %p223 = scmp.lt.s32.totalorder %s23, 0
      %s224 = scalar_select %p223, %s23, 0
      %s225 = sadd.s32 %s224, %s222
      %s226 = smul.addr %s225, 4
      %s227 = scalar_lea.vmem %s0, %s226
      %p228 = pneg %p58
      %p229 = pneg %p55
      %s230 = smul.u32 16, %s23
      %p231 = scmp.lt.s32.totalorder %s230, 15
      %s232 = scalar_select %p231, %s230, 15
      %p233 = scmp.lt.s32.totalorder %s22, 0
      %s234 = scalar_select %p233, %s22, 0
      %s235 = sadd.s32 %s234, %s232
      %s236 = smul.addr %s235, 4
      %s237 = scalar_lea.vmem %s1, %s236
      %p238 = pneg %p86
      %p239 = pneg %p83
      %p240 = pneg %p114
      %p241 = pneg %p111
      %s242 = smul.u32 64, %s21
      %p243 = scmp.lt.s32.totalorder %s242, 255
      %s244 = scalar_select %p243, %s242, 255
      %p245 = scmp.lt.s32.totalorder %s22, 0
      %s246 = scalar_select %p245, %s22, 0
      %s247 = sadd.s32 %s246, %s244
      %s248 = smul.addr %s247, 4
      %s249 = scalar_lea.vmem %s2, %s248
      %p250 = pneg %p142
      %p251 = pneg %p139
      %p252 = scmp.lt.s32.totalorder %s21, 3
      %s253 = scalar_select %p252, %s21, 3
      %p254 = scmp.lt.s32.totalorder %s22, 0
      %s255 = scalar_select %p254, %s22, 0
      %s256 = sadd.s32 %s255, %s253
      %s257 = scalar_lea.vmem %s3, %s256
      %p258 = pneg %p170
      %p259 = pneg %p167
      %p260 = scmp.lt.s32.totalorder %s21, 3
      %s261 = scalar_select %p260, %s21, 3
      %p262 = scmp.lt.s32.totalorder %s22, 0
      %s263 = scalar_select %p262, %s22, 0
      %s264 = sadd.s32 %s263, %s261
      %s265 = scalar_lea.vmem %s4, %s264
      %s266 = smul.u32 64, %s21
      %p267 = scmp.lt.s32.totalorder %s266, 255
      %s268 = scalar_select %p267, %s266, 255
      %p269 = scmp.lt.s32.totalorder %s23, 0
      %s270 = scalar_select %p269, %s23, 0
      %s271 = sadd.s32 %s270, %s268
      %s272 = smul.addr %s271, 4
      %s273 = scalar_lea.vmem %s0, %s272
      %s274 = smul.u32 64, %s21
      %s275 = smul.u32 16, %s23
      %p276 = scmp.lt.s32.totalorder %s275, 15
      %s277 = scalar_select %p276, %s275, 15
      %p278 = scmp.lt.s32.totalorder %s22, 0
      %s279 = scalar_select %p278, %s22, 0
      %s280 = sadd.s32 %s279, %s277
      %s281 = smul.addr %s280, 4
      %s282 = scalar_lea.vmem %s1, %s281
      %s283 = smul.u32 16, %s23
      %s284 = smul.u32 64, %s21
      %p285 = scmp.lt.s32.totalorder %s284, 255
      %s286 = scalar_select %p285, %s284, 255
      %p287 = scmp.lt.s32.totalorder %s22, 0
      %s288 = scalar_select %p287, %s22, 0
      %s289 = sadd.s32 %s288, %s286
      %s290 = smul.addr %s289, 4
      %s291 = scalar_lea.vmem %s2, %s290
      %s292 = smul.u32 64, %s21
      %p293 = scmp.lt.s32.totalorder %s21, 3
      %s294 = scalar_select %p293, %s21, 3
      %p295 = scmp.lt.s32.totalorder %s22, 0
      %s296 = scalar_select %p295, %s22, 0
      %s297 = sadd.s32 %s296, %s294
      %s298 = scalar_lea.vmem %s3, %s297
      %p299 = scmp.lt.s32.totalorder %s21, 3
      %s300 = scalar_select %p299, %s21, 3
      %p301 = scmp.lt.s32.totalorder %s22, 0
      %s302 = scalar_select %p301, %s22, 0
      %s303 = sadd.s32 %s302, %s300
      %s304 = scalar_lea.vmem %s4, %s303
      %v306 = vld [vmem:[%s273] sm:$0xf]
      %v307 = vld [vmem:[%s273 + $0x4] sm:$0xf]
      %v308 = vld [vmem:[%s273 + $0x8] sm:$0xf]
      %v309 = vld [vmem:[%s273 + $0xc] sm:$0xf]
      %v310 = vld [vmem:[%s273 + $0x10] sm:$0xf]
      %v311 = vld [vmem:[%s273 + $0x14] sm:$0xf]
      %v312 = vld [vmem:[%s273 + $0x18] sm:$0xf]
      %v313 = vld [vmem:[%s273 + $0x1c] sm:$0xf]
      %v314 = vld [vmem:[%s273 + $0x20] sm:$0xf]
      %v315 = vld [vmem:[%s273 + $0x24] sm:$0xf]
      %v316 = vld [vmem:[%s273 + $0x28] sm:$0xf]
      %v317 = vld [vmem:[%s273 + $0x2c] sm:$0xf]
      %v318 = vld [vmem:[%s273 + $0x30] sm:$0xf]
      %v319 = vld [vmem:[%s273 + $0x34] sm:$0xf]
      %v320 = vld [vmem:[%s273 + $0x38] sm:$0xf]
      %v321 = vld [vmem:[%s273 + $0x3c] sm:$0xf]
      %v322 = vld [vmem:[%s273 + $0x40] sm:$0xf]
      %v323 = vld [vmem:[%s273 + $0x44] sm:$0xf]
      %v324 = vld [vmem:[%s273 + $0x48] sm:$0xf]
      %v325 = vld [vmem:[%s273 + $0x4c] sm:$0xf]
      %v326 = vld [vmem:[%s273 + $0x50] sm:$0xf]
      %v327 = vld [vmem:[%s273 + $0x54] sm:$0xf]
      %v328 = vld [vmem:[%s273 + $0x58] sm:$0xf]
      %v329 = vld [vmem:[%s273 + $0x5c] sm:$0xf]
      %v330 = vld [vmem:[%s273 + $0x60] sm:$0xf]
      %v331 = vld [vmem:[%s273 + $0x64] sm:$0xf]
      %v332 = vld [vmem:[%s273 + $0x68] sm:$0xf]
      %v333 = vld [vmem:[%s273 + $0x6c] sm:$0xf]
      %v334 = vld [vmem:[%s273 + $0x70] sm:$0xf]
      %v335 = vld [vmem:[%s273 + $0x74] sm:$0xf]
      %v336 = vld [vmem:[%s273 + $0x78] sm:$0xf]
      %v337 = vld [vmem:[%s273 + $0x7c] sm:$0xf]
      %v338 = vld [vmem:[%s273 + $0x80] sm:$0xf]
      %v339 = vld [vmem:[%s273 + $0x84] sm:$0xf]
      %v340 = vld [vmem:[%s273 + $0x88] sm:$0xf]
      %v341 = vld [vmem:[%s273 + $0x8c] sm:$0xf]
      %v342 = vld [vmem:[%s273 + $0x90] sm:$0xf]
      %v343 = vld [vmem:[%s273 + $0x94] sm:$0xf]
      %v344 = vld [vmem:[%s273 + $0x98] sm:$0xf]
      %v345 = vld [vmem:[%s273 + $0x9c] sm:$0xf]
      %v346 = vld [vmem:[%s273 + $0xa0] sm:$0xf]
      %v347 = vld [vmem:[%s273 + $0xa4] sm:$0xf]
      %v348 = vld [vmem:[%s273 + $0xa8] sm:$0xf]
      %v349 = vld [vmem:[%s273 + $0xac] sm:$0xf]
      %v350 = vld [vmem:[%s273 + $0xb0] sm:$0xf]
      %v351 = vld [vmem:[%s273 + $0xb4] sm:$0xf]
      %v352 = vld [vmem:[%s273 + $0xb8] sm:$0xf]
      %v353 = vld [vmem:[%s273 + $0xbc] sm:$0xf]
      %v354 = vld [vmem:[%s273 + $0xc0] sm:$0xf]
      %v355 = vld [vmem:[%s273 + $0xc4] sm:$0xf]
      %v356 = vld [vmem:[%s273 + $0xc8] sm:$0xf]
      %v357 = vld [vmem:[%s273 + $0xcc] sm:$0xf]
      %v358 = vld [vmem:[%s273 + $0xd0] sm:$0xf]
      %v359 = vld [vmem:[%s273 + $0xd4] sm:$0xf]
      %v360 = vld [vmem:[%s273 + $0xd8] sm:$0xf]
      %v361 = vld [vmem:[%s273 + $0xdc] sm:$0xf]
      %v362 = vld [vmem:[%s273 + $0xe0] sm:$0xf]
      %v363 = vld [vmem:[%s273 + $0xe4] sm:$0xf]
      %v364 = vld [vmem:[%s273 + $0xe8] sm:$0xf]
      %v365 = vld [vmem:[%s273 + $0xec] sm:$0xf]
      %v366 = vld [vmem:[%s273 + $0xf0] sm:$0xf]
      %v367 = vld [vmem:[%s273 + $0xf4] sm:$0xf]
      %v368 = vld [vmem:[%s273 + $0xf8] sm:$0xf]
      %v369 = vld [vmem:[%s273 + $0xfc] sm:$0xf]
      %v370 = vld [vmem:[%s282] sm:$0xf]
      %v371 = vld [vmem:[%s282 + $0x4] sm:$0xf]
      %v372 = vld [vmem:[%s282 + $0x8] sm:$0xf]
      %v373 = vld [vmem:[%s282 + $0xc] sm:$0xf]
      %v374 = vld [vmem:[%s282 + $0x10] sm:$0xf]
      %v375 = vld [vmem:[%s282 + $0x14] sm:$0xf]
      %v376 = vld [vmem:[%s282 + $0x18] sm:$0xf]
      %v377 = vld [vmem:[%s282 + $0x1c] sm:$0xf]
      %v378 = vld [vmem:[%s282 + $0x20] sm:$0xf]
      %v379 = vld [vmem:[%s282 + $0x24] sm:$0xf]
      %v380 = vld [vmem:[%s282 + $0x28] sm:$0xf]
      %v381 = vld [vmem:[%s282 + $0x2c] sm:$0xf]
      %v382 = vld [vmem:[%s282 + $0x30] sm:$0xf]
      %v383 = vld [vmem:[%s282 + $0x34] sm:$0xf]
      %v384 = vld [vmem:[%s282 + $0x38] sm:$0xf]
      %v385 = vld [vmem:[%s282 + $0x3c] sm:$0xf]
      %v450 = vunpack.c.l.b16 %v306
      %v451 = vunpack.c.l.b16 %v307
      %v452 = vunpack.c.l.b16 %v308
      %v453 = vunpack.c.l.b16 %v309
      %v454 = vunpack.c.l.b16 %v310
      %v455 = vunpack.c.l.b16 %v311
      %v456 = vunpack.c.l.b16 %v312
      %v457 = vunpack.c.l.b16 %v313
      %v458 = vunpack.c.l.b16 %v314
      %v459 = vunpack.c.l.b16 %v315
      %v460 = vunpack.c.l.b16 %v316
      %v461 = vunpack.c.l.b16 %v317
      %v462 = vunpack.c.l.b16 %v318
      %v463 = vunpack.c.l.b16 %v319
      %v464 = vunpack.c.l.b16 %v320
      %v465 = vunpack.c.l.b16 %v321
      %v466 = vunpack.c.l.b16 %v322
      %v467 = vunpack.c.l.b16 %v323
      %v468 = vunpack.c.l.b16 %v324
      %v469 = vunpack.c.l.b16 %v325
      %v470 = vunpack.c.l.b16 %v326
      %v471 = vunpack.c.l.b16 %v327
      %v472 = vunpack.c.l.b16 %v328
      %v473 = vunpack.c.l.b16 %v329
      %v474 = vunpack.c.l.b16 %v330
      %v475 = vunpack.c.l.b16 %v331
      %v476 = vunpack.c.l.b16 %v332
      %v477 = vunpack.c.l.b16 %v333
      %v478 = vunpack.c.l.b16 %v334
      %v479 = vunpack.c.l.b16 %v335
      %v480 = vunpack.c.l.b16 %v336
      %v481 = vunpack.c.l.b16 %v337
      %v482 = vunpack.c.l.b16 %v338
      %v483 = vunpack.c.l.b16 %v339
      %v484 = vunpack.c.l.b16 %v340
      %v485 = vunpack.c.l.b16 %v341
      %v486 = vunpack.c.l.b16 %v342
      %v487 = vunpack.c.l.b16 %v343
      %v488 = vunpack.c.l.b16 %v344
      %v489 = vunpack.c.l.b16 %v345
      %v490 = vunpack.c.l.b16 %v346
      %v491 = vunpack.c.l.b16 %v347
      %v492 = vunpack.c.l.b16 %v348
      %v493 = vunpack.c.l.b16 %v349
      %v494 = vunpack.c.l.b16 %v350
      %v495 = vunpack.c.l.b16 %v351
      %v496 = vunpack.c.l.b16 %v352
      %v497 = vunpack.c.l.b16 %v353
      %v498 = vunpack.c.l.b16 %v354
      %v499 = vunpack.c.l.b16 %v355
      %v500 = vunpack.c.l.b16 %v356
      %v501 = vunpack.c.l.b16 %v357
      %v502 = vunpack.c.l.b16 %v358
      %v503 = vunpack.c.l.b16 %v359
      %v504 = vunpack.c.l.b16 %v360
      %v505 = vunpack.c.l.b16 %v361
      %v506 = vunpack.c.l.b16 %v362
      %v507 = vunpack.c.l.b16 %v363
      %v508 = vunpack.c.l.b16 %v364
      %v509 = vunpack.c.l.b16 %v365
      %v510 = vunpack.c.l.b16 %v366
      %v511 = vunpack.c.l.b16 %v367
      %v512 = vunpack.c.l.b16 %v368
      %v513 = vunpack.c.l.b16 %v369
      %v514 = vpack.c.b16 %v451, %v450
      %v515 = vpack.c.b16 %v453, %v452
      %v516 = vpack.c.b16 %v455, %v454
      %v517 = vpack.c.b16 %v457, %v456
      %v518 = vpack.c.b16 %v459, %v458
      %v519 = vpack.c.b16 %v461, %v460
      %v520 = vpack.c.b16 %v463, %v462
      %v521 = vpack.c.b16 %v465, %v464
      %v522 = vpack.c.b16 %v467, %v466
      %v523 = vpack.c.b16 %v469, %v468
      %v524 = vpack.c.b16 %v471, %v470
      %v525 = vpack.c.b16 %v473, %v472
      %v526 = vpack.c.b16 %v475, %v474
      %v527 = vpack.c.b16 %v477, %v476
      %v528 = vpack.c.b16 %v479, %v478
      %v529 = vpack.c.b16 %v481, %v480
      %v530 = vpack.c.b16 %v483, %v482
      %v531 = vpack.c.b16 %v485, %v484
      %v532 = vpack.c.b16 %v487, %v486
      %v533 = vpack.c.b16 %v489, %v488
      %v534 = vpack.c.b16 %v491, %v490
      %v535 = vpack.c.b16 %v493, %v492
      %v536 = vpack.c.b16 %v495, %v494
      %v537 = vpack.c.b16 %v497, %v496
      %v538 = vpack.c.b16 %v499, %v498
      %v539 = vpack.c.b16 %v501, %v500
      %v540 = vpack.c.b16 %v503, %v502
      %v541 = vpack.c.b16 %v505, %v504
      %v542 = vpack.c.b16 %v507, %v506
      %v543 = vpack.c.b16 %v509, %v508
      %v544 = vpack.c.b16 %v511, %v510
      %v545 = vpack.c.b16 %v513, %v512
      %v594 = vunpack.c.l.b16 %v370
      %v595 = vunpack.c.l.b16 %v371
      %v596 = vunpack.c.l.b16 %v372
      %v597 = vunpack.c.l.b16 %v373
      %v598 = vunpack.c.l.b16 %v374
      %v599 = vunpack.c.l.b16 %v375
      %v600 = vunpack.c.l.b16 %v376
      %v601 = vunpack.c.l.b16 %v377
      %v602 = vunpack.c.l.b16 %v378
      %v603 = vunpack.c.l.b16 %v379
      %v604 = vunpack.c.l.b16 %v380
      %v605 = vunpack.c.l.b16 %v381
      %v606 = vunpack.c.l.b16 %v382
      %v607 = vunpack.c.l.b16 %v383
      %v608 = vunpack.c.l.b16 %v384
      %v609 = vunpack.c.l.b16 %v385
      %v610 = vpack.c.b16 %v595, %v594
      %v611 = vpack.c.b16 %v597, %v596
      %v612 = vpack.c.b16 %v599, %v598
      %v613 = vpack.c.b16 %v601, %v600
      %v614 = vpack.c.b16 %v603, %v602
      %v615 = vpack.c.b16 %v605, %v604
      %v616 = vpack.c.b16 %v607, %v606
      %v617 = vpack.c.b16 %v609, %v608
      %626 = vmatprep.subr.bf16.mxu0 0
      %627 = vmatpush1.bf16.msra.mxu0 %v610
      %628 = vmatprep.subr.bf16.mxu0 0
      %629 = vmatpush1.bf16.msra.mxu0 %v611
      %630 = vmatprep.subr.bf16.mxu0 0
      %631 = vmatpush1.bf16.msra.mxu0 %v612
      %632 = vmatprep.subr.bf16.mxu0 0
      %633 = vmatpush1.bf16.msra.mxu0 %v613
      %634 = vmatprep.subr.bf16.mxu0 0
      %635 = vmatpush1.bf16.msra.mxu0 %v614
      %636 = vmatprep.subr.bf16.mxu0 0
      %637 = vmatpush1.bf16.msra.mxu0 %v615
      %638 = vmatprep.subr.bf16.mxu0 0
      %639 = vmatpush1.bf16.msra.mxu0 %v616
      %640 = vmatprep.subr.bf16.mxu0 0
      %641 = vmatpush1.bf16.msra.mxu0 %v617
      %642 = vmatprep.subr.bf16.mxu0 0
      %643 = vmatpush1.bf16.msra.mxu0 0
      %644 = vmatprep.subr.bf16.mxu0 0
      %645 = vmatpush1.bf16.msra.mxu0 0
      %646 = vmatprep.subr.bf16.mxu0 0
      %647 = vmatpush1.bf16.msra.mxu0 0
      %648 = vmatprep.subr.bf16.mxu0 0
      %649 = vmatpush1.bf16.msra.mxu0 0
      %650 = vmatprep.subr.bf16.mxu0 0
      %651 = vmatpush1.bf16.msra.mxu0 0
      %652 = vmatprep.subr.bf16.mxu0 0
      %653 = vmatpush1.bf16.msra.mxu0 0
      %654 = vmatprep.subr.bf16.mxu0 0
      %655 = vmatpush1.bf16.msra.mxu0 0
      %656 = vmatprep.subr.bf16.mxu0 0
      %657 = vmatpush1.bf16.msra.mxu0 0
      %658 = vmatprep.mubr.bf16.mxu0 0
      %659 = vmatmul.mubr.bf16.gmra.mrb[0].mxu0 %v514
      %v660 = vpop.f32.mrb[0].mxu0
      %v661 = vadd.f32 0.0, %v660
      %v662 = vpop.f32.mrb[0].mxu0
      %v663 = vpop.f32.mrb[0].mxu0
      %v664 = vadd.f32 0.0, %v663
      %v665 = vpop.f32.mrb[0].mxu0
      %666 = vmatprep.mubr.bf16.mxu0 0
      %667 = vmatmul.mubr.bf16.gmra.mrb[0].mxu0 %v515
      %v668 = vpop.f32.mrb[0].mxu0
      %v669 = vadd.f32 0.0, %v668
      %v670 = vpop.f32.mrb[0].mxu0
      %v671 = vpop.f32.mrb[0].mxu0
      %v672 = vadd.f32 0.0, %v671
      %v673 = vpop.f32.mrb[0].mxu0
      %674 = vmatprep.mubr.bf16.mxu0 0
      %675 = vmatmul.mubr.bf16.gmra.mrb[0].mxu0 %v516
      %v676 = vpop.f32.mrb[0].mxu0
      %v677 = vadd.f32 0.0, %v676
      %v678 = vpop.f32.mrb[0].mxu0
      %v679 = vpop.f32.mrb[0].mxu0
      %v680 = vadd.f32 0.0, %v679
      %v681 = vpop.f32.mrb[0].mxu0
      %682 = vmatprep.mubr.bf16.mxu0 0
      %683 = vmatmul.mubr.bf16.gmra.mrb[0].mxu0 %v517
      %v684 = vpop.f32.mrb[0].mxu0
      %v685 = vadd.f32 0.0, %v684
      %v686 = vpop.f32.mrb[0].mxu0
      %v687 = vpop.f32.mrb[0].mxu0
      %v688 = vadd.f32 0.0, %v687
      %v689 = vpop.f32.mrb[0].mxu0
      %690 = vmatprep.mubr.bf16.mxu0 0
      %691 = vmatmul.mubr.bf16.gmra.mrb[0].mxu0 %v518
      %v692 = vpop.f32.mrb[0].mxu0
      %v693 = vadd.f32 0.0, %v692
      %v694 = vpop.f32.mrb[0].mxu0
      %v695 = vpop.f32.mrb[0].mxu0
      %v696 = vadd.f32 0.0, %v695
      %v697 = vpop.f32.mrb[0].mxu0
      %698 = vmatprep.mubr.bf16.mxu0 0
      %699 = vmatmul.mubr.bf16.gmra.mrb[0].mxu0 %v519
      %v700 = vpop.f32.mrb[0].mxu0
      %v701 = vadd.f32 0.0, %v700
      %v702 = vpop.f32.mrb[0].mxu0
      %v703 = vpop.f32.mrb[0].mxu0
      %v704 = vadd.f32 0.0, %v703
      %v705 = vpop.f32.mrb[0].mxu0
      %706 = vmatprep.mubr.bf16.mxu0 0
      %707 = vmatmul.mubr.bf16.gmra.mrb[0].mxu0 %v520
      %v708 = vpop.f32.mrb[0].mxu0
      %v709 = vadd.f32 0.0, %v708
      %v710 = vpop.f32.mrb[0].mxu0
      %v711 = vpop.f32.mrb[0].mxu0
      %v712 = vadd.f32 0.0, %v711
      %v713 = vpop.f32.mrb[0].mxu0
      %714 = vmatprep.mubr.bf16.mxu0 0
      %715 = vmatmul.mubr.bf16.gmra.mrb[0].mxu0 %v521
      %v716 = vpop.f32.mrb[0].mxu0
      %v717 = vadd.f32 0.0, %v716
      %v718 = vpop.f32.mrb[0].mxu0
      %v719 = vpop.f32.mrb[0].mxu0
      %v720 = vadd.f32 0.0, %v719
      %v721 = vpop.f32.mrb[0].mxu0
      %722 = vmatprep.mubr.bf16.mxu0 0
      %723 = vmatmul.mubr.bf16.gmra.mrb[0].mxu0 %v522
      %v724 = vpop.f32.mrb[0].mxu0
      %v725 = vadd.f32 0.0, %v724
      %v726 = vpop.f32.mrb[0].mxu0
      %v727 = vpop.f32.mrb[0].mxu0
      %v728 = vadd.f32 0.0, %v727
      %v729 = vpop.f32.mrb[0].mxu0
      %730 = vmatprep.mubr.bf16.mxu0 0
      %731 = vmatmul.mubr.bf16.gmra.mrb[0].mxu0 %v523
      %v732 = vpop.f32.mrb[0].mxu0
      %v733 = vadd.f32 0.0, %v732
      %v734 = vpop.f32.mrb[0].mxu0
      %v735 = vpop.f32.mrb[0].mxu0
      %v736 = vadd.f32 0.0, %v735
      %v737 = vpop.f32.mrb[0].mxu0
      %738 = vmatprep.mubr.bf16.mxu0 0
      %739 = vmatmul.mubr.bf16.gmra.mrb[0].mxu0 %v524
      %v740 = vpop.f32.mrb[0].mxu0
      %v741 = vadd.f32 0.0, %v740
      %v742 = vpop.f32.mrb[0].mxu0
      %v743 = vpop.f32.mrb[0].mxu0
      %v744 = vadd.f32 0.0, %v743
      %v745 = vpop.f32.mrb[0].mxu0
      %746 = vmatprep.mubr.bf16.mxu0 0
      %747 = vmatmul.mubr.bf16.gmra.mrb[0].mxu0 %v525
      %v748 = vpop.f32.mrb[0].mxu0
      %v749 = vadd.f32 0.0, %v748
      %v750 = vpop.f32.mrb[0].mxu0
      %v751 = vpop.f32.mrb[0].mxu0
      %v752 = vadd.f32 0.0, %v751
      %v753 = vpop.f32.mrb[0].mxu0
      %754 = vmatprep.mubr.bf16.mxu0 0
      %755 = vmatmul.mubr.bf16.gmra.mrb[0].mxu0 %v526
      %v756 = vpop.f32.mrb[0].mxu0
      %v757 = vadd.f32 0.0, %v756
      %v758 = vpop.f32.mrb[0].mxu0
      %v759 = vpop.f32.mrb[0].mxu0
      %v760 = vadd.f32 0.0, %v759
      %v761 = vpop.f32.mrb[0].mxu0
      %762 = vmatprep.mubr.bf16.mxu0 0
      %763 = vmatmul.mubr.bf16.gmra.mrb[0].mxu0 %v527
      %v764 = vpop.f32.mrb[0].mxu0
      %v765 = vadd.f32 0.0, %v764
      %v766 = vpop.f32.mrb[0].mxu0
      %v767 = vpop.f32.mrb[0].mxu0
      %v768 = vadd.f32 0.0, %v767
      %v769 = vpop.f32.mrb[0].mxu0
      %770 = vmatprep.mubr.bf16.mxu0 0
      %771 = vmatmul.mubr.bf16.gmra.mrb[0].mxu0 %v528
      %v772 = vpop.f32.mrb[0].mxu0
      %v773 = vadd.f32 0.0, %v772
      %v774 = vpop.f32.mrb[0].mxu0
      %v775 = vpop.f32.mrb[0].mxu0
      %v776 = vadd.f32 0.0, %v775
      %v777 = vpop.f32.mrb[0].mxu0
      %778 = vmatprep.mubr.bf16.mxu0 0
      %779 = vmatmul.mubr.bf16.gmra.mrb[0].mxu0 %v529
      %v780 = vpop.f32.mrb[0].mxu0
      %v781 = vadd.f32 0.0, %v780
      %v782 = vpop.f32.mrb[0].mxu0
      %v783 = vpop.f32.mrb[0].mxu0
      %v784 = vadd.f32 0.0, %v783
      %v785 = vpop.f32.mrb[0].mxu0
      %786 = vmatprep.mubr.bf16.mxu0 0
      %787 = vmatmul.mubr.bf16.gmra.mrb[0].mxu0 %v530
      %v788 = vpop.f32.mrb[0].mxu0
      %v789 = vadd.f32 0.0, %v788
      %v790 = vpop.f32.mrb[0].mxu0
      %v791 = vpop.f32.mrb[0].mxu0
      %v792 = vadd.f32 0.0, %v791
      %v793 = vpop.f32.mrb[0].mxu0
      %794 = vmatprep.mubr.bf16.mxu0 0
      %795 = vmatmul.mubr.bf16.gmra.mrb[0].mxu0 %v531
      %v796 = vpop.f32.mrb[0].mxu0
      %v797 = vadd.f32 0.0, %v796
      %v798 = vpop.f32.mrb[0].mxu0
      %v799 = vpop.f32.mrb[0].mxu0
      %v800 = vadd.f32 0.0, %v799
      %v801 = vpop.f32.mrb[0].mxu0
      %802 = vmatprep.mubr.bf16.mxu0 0
      %803 = vmatmul.mubr.bf16.gmra.mrb[0].mxu0 %v532
      %v804 = vpop.f32.mrb[0].mxu0
      %v805 = vadd.f32 0.0, %v804
      %v806 = vpop.f32.mrb[0].mxu0
      %v807 = vpop.f32.mrb[0].mxu0
      %v808 = vadd.f32 0.0, %v807
      %v809 = vpop.f32.mrb[0].mxu0
      %810 = vmatprep.mubr.bf16.mxu0 0
      %811 = vmatmul.mubr.bf16.gmra.mrb[0].mxu0 %v533
      %v812 = vpop.f32.mrb[0].mxu0
      %v813 = vadd.f32 0.0, %v812
      %v814 = vpop.f32.mrb[0].mxu0
      %v815 = vpop.f32.mrb[0].mxu0
      %v816 = vadd.f32 0.0, %v815
      %v817 = vpop.f32.mrb[0].mxu0
      %818 = vmatprep.mubr.bf16.mxu0 0
      %819 = vmatmul.mubr.bf16.gmra.mrb[0].mxu0 %v534
      %v820 = vpop.f32.mrb[0].mxu0
      %v821 = vadd.f32 0.0, %v820
      %v822 = vpop.f32.mrb[0].mxu0
      %v823 = vpop.f32.mrb[0].mxu0
      %v824 = vadd.f32 0.0, %v823
      %v825 = vpop.f32.mrb[0].mxu0
      %826 = vmatprep.mubr.bf16.mxu0 0
      %827 = vmatmul.mubr.bf16.gmra.mrb[0].mxu0 %v535
      %v828 = vpop.f32.mrb[0].mxu0
      %v829 = vadd.f32 0.0, %v828
      %v830 = vpop.f32.mrb[0].mxu0
      %v831 = vpop.f32.mrb[0].mxu0
      %v832 = vadd.f32 0.0, %v831
      %v833 = vpop.f32.mrb[0].mxu0
      %834 = vmatprep.mubr.bf16.mxu0 0
      %835 = vmatmul.mubr.bf16.gmra.mrb[0].mxu0 %v536
      %v836 = vpop.f32.mrb[0].mxu0
      %v837 = vadd.f32 0.0, %v836
      %v838 = vpop.f32.mrb[0].mxu0
      %v839 = vpop.f32.mrb[0].mxu0
      %v840 = vadd.f32 0.0, %v839
      %v841 = vpop.f32.mrb[0].mxu0
      %842 = vmatprep.mubr.bf16.mxu0 0
      %843 = vmatmul.mubr.bf16.gmra.mrb[0].mxu0 %v537
      %v844 = vpop.f32.mrb[0].mxu0
      %v845 = vadd.f32 0.0, %v844
      %v846 = vpop.f32.mrb[0].mxu0
      %v847 = vpop.f32.mrb[0].mxu0
      %v848 = vadd.f32 0.0, %v847
      %v849 = vpop.f32.mrb[0].mxu0
      %850 = vmatprep.mubr.bf16.mxu0 0
      %851 = vmatmul.mubr.bf16.gmra.mrb[0].mxu0 %v538
      %v852 = vpop.f32.mrb[0].mxu0
      %v853 = vadd.f32 0.0, %v852
      %v854 = vpop.f32.mrb[0].mxu0
      %v855 = vpop.f32.mrb[0].mxu0
      %v856 = vadd.f32 0.0, %v855
      %v857 = vpop.f32.mrb[0].mxu0
      %858 = vmatprep.mubr.bf16.mxu0 0
      %859 = vmatmul.mubr.bf16.gmra.mrb[0].mxu0 %v539
      %v860 = vpop.f32.mrb[0].mxu0
      %v861 = vadd.f32 0.0, %v860
      %v862 = vpop.f32.mrb[0].mxu0
      %v863 = vpop.f32.mrb[0].mxu0
      %v864 = vadd.f32 0.0, %v863
      %v865 = vpop.f32.mrb[0].mxu0
      %866 = vmatprep.mubr.bf16.mxu0 0
      %867 = vmatmul.mubr.bf16.gmra.mrb[0].mxu0 %v540
      %v868 = vpop.f32.mrb[0].mxu0
      %v869 = vadd.f32 0.0, %v868
      %v870 = vpop.f32.mrb[0].mxu0
      %v871 = vpop.f32.mrb[0].mxu0
      %v872 = vadd.f32 0.0, %v871
      %v873 = vpop.f32.mrb[0].mxu0
      %874 = vmatprep.mubr.bf16.mxu0 0
      %875 = vmatmul.mubr.bf16.gmra.mrb[0].mxu0 %v541
      %v876 = vpop.f32.mrb[0].mxu0
      %v877 = vadd.f32 0.0, %v876
      %v878 = vpop.f32.mrb[0].mxu0
      %v879 = vpop.f32.mrb[0].mxu0
      %v880 = vadd.f32 0.0, %v879
      %v881 = vpop.f32.mrb[0].mxu0
      %882 = vmatprep.mubr.bf16.mxu0 0
      %883 = vmatmul.mubr.bf16.gmra.mrb[0].mxu0 %v542
      %v884 = vpop.f32.mrb[0].mxu0
      %v885 = vadd.f32 0.0, %v884
      %v886 = vpop.f32.mrb[0].mxu0
      %v887 = vpop.f32.mrb[0].mxu0
      %v888 = vadd.f32 0.0, %v887
      %v889 = vpop.f32.mrb[0].mxu0
      %890 = vmatprep.mubr.bf16.mxu0 0
      %891 = vmatmul.mubr.bf16.gmra.mrb[0].mxu0 %v543
      %v892 = vpop.f32.mrb[0].mxu0
      %v893 = vadd.f32 0.0, %v892
      %v894 = vpop.f32.mrb[0].mxu0
      %v895 = vpop.f32.mrb[0].mxu0
      %v896 = vadd.f32 0.0, %v895
      %v897 = vpop.f32.mrb[0].mxu0
      %898 = vmatprep.mubr.bf16.mxu0 0
      %899 = vmatmul.mubr.bf16.gmra.mrb[0].mxu0 %v544
      %v900 = vpop.f32.mrb[0].mxu0
      %v901 = vadd.f32 0.0, %v900
      %v902 = vpop.f32.mrb[0].mxu0
      %v903 = vpop.f32.mrb[0].mxu0
      %v904 = vadd.f32 0.0, %v903
      %v905 = vpop.f32.mrb[0].mxu0
      %906 = vmatprep.mubr.bf16.mxu0 0
      %907 = vmatmul.mubr.bf16.gmra.mrb[0].mxu0 %v545
      %v908 = vpop.f32.mrb[0].mxu0
      %v909 = vadd.f32 0.0, %v908
      %v910 = vpop.f32.mrb[0].mxu0
      %v911 = vpop.f32.mrb[0].mxu0
      %v912 = vadd.f32 0.0, %v911
      %v913 = vpop.f32.mrb[0].mxu0
      %914 = vdwg.mxu0
      %v915 = vadd.f32 %v661, %v664
      %v916 = vadd.f32 %v915, %v669
      %v917 = vadd.f32 %v916, %v672
      %v918 = vadd.f32 %v917, %v677
      %v919 = vadd.f32 %v918, %v680
      %v920 = vadd.f32 %v919, %v685
      %v921 = vadd.f32 %v920, %v688
      %v922 = vadd.f32 %v921, %v693
      %v923 = vadd.f32 %v922, %v696
      %v924 = vadd.f32 %v923, %v701
      %v925 = vadd.f32 %v924, %v704
      %v926 = vadd.f32 %v925, %v709
      %v927 = vadd.f32 %v926, %v712
      %v928 = vadd.f32 %v927, %v717
      %v929 = vadd.f32 %v928, %v720
      %v930 = vadd.f32 %v929, %v725
      %v931 = vadd.f32 %v930, %v728
      %v932 = vadd.f32 %v931, %v733
      %v933 = vadd.f32 %v932, %v736
      %v934 = vadd.f32 %v933, %v741
      %v935 = vadd.f32 %v934, %v744
      %v936 = vadd.f32 %v935, %v749
      %v937 = vadd.f32 %v936, %v752
      %v938 = vadd.f32 %v937, %v757
      %v939 = vadd.f32 %v938, %v760
      %v940 = vadd.f32 %v939, %v765
      %v941 = vadd.f32 %v940, %v768
      %v942 = vadd.f32 %v941, %v773
      %v943 = vadd.f32 %v942, %v776
      %v944 = vadd.f32 %v943, %v781
      %v945 = vadd.f32 %v944, %v784
      %v946 = vadd.f32 %v945, %v789
      %v947 = vadd.f32 %v946, %v792
      %v948 = vadd.f32 %v947, %v797
      %v949 = vadd.f32 %v948, %v800
      %v950 = vadd.f32 %v949, %v805
      %v951 = vadd.f32 %v950, %v808
      %v952 = vadd.f32 %v951, %v813
      %v953 = vadd.f32 %v952, %v816
      %v954 = vadd.f32 %v953, %v821
      %v955 = vadd.f32 %v954, %v824
      %v956 = vadd.f32 %v955, %v829
      %v957 = vadd.f32 %v956, %v832
      %v958 = vadd.f32 %v957, %v837
      %v959 = vadd.f32 %v958, %v840
      %v960 = vadd.f32 %v959, %v845
      %v961 = vadd.f32 %v960, %v848
      %v962 = vadd.f32 %v961, %v853
      %v963 = vadd.f32 %v962, %v856
      %v964 = vadd.f32 %v963, %v861
      %v965 = vadd.f32 %v964, %v864
      %v966 = vadd.f32 %v965, %v869
      %v967 = vadd.f32 %v966, %v872
      %v968 = vadd.f32 %v967, %v877
      %v969 = vadd.f32 %v968, %v880
      %v970 = vadd.f32 %v969, %v885
      %v971 = vadd.f32 %v970, %v888
      %v972 = vadd.f32 %v971, %v893
      %v973 = vadd.f32 %v972, %v896
      %v974 = vadd.f32 %v973, %v901
      %v975 = vadd.f32 %v974, %v904
      %v976 = vadd.f32 %v975, %v909
      %v977 = vadd.f32 %v976, %v912
      %v978 = vrot.slane %v977, 4
      %v979 = vadd.f32 %v977, %v978
      %v980 = vrot.slane %v979, 2
      %v981 = vadd.f32 %v979, %v980
      %v982 = vrot.slane %v981, 1
      %v983 = vadd.f32 %v981, %v982
      %984 = vst [vmem:[%s298] sm:$0x1] %v983
      %v985 = vmul.f32 %v661, %v661
      %v986 = vmul.f32 %v664, %v664
      %v987 = vmul.f32 %v669, %v669
      %v988 = vmul.f32 %v672, %v672
      %v989 = vmul.f32 %v677, %v677
      %v990 = vmul.f32 %v680, %v680
      %v991 = vmul.f32 %v685, %v685
      %v992 = vmul.f32 %v688, %v688
      %v993 = vmul.f32 %v693, %v693
      %v994 = vmul.f32 %v696, %v696
      %v995 = vmul.f32 %v701, %v701
      %v996 = vmul.f32 %v704, %v704
      %v997 = vmul.f32 %v709, %v709
      %v998 = vmul.f32 %v712, %v712
      %v999 = vmul.f32 %v717, %v717
      %v1000 = vmul.f32 %v720, %v720
      %v1001 = vmul.f32 %v725, %v725
      %v1002 = vmul.f32 %v728, %v728
      %v1003 = vmul.f32 %v733, %v733
      %v1004 = vmul.f32 %v736, %v736
      %v1005 = vmul.f32 %v741, %v741
      %v1006 = vmul.f32 %v744, %v744
      %v1007 = vmul.f32 %v749, %v749
      %v1008 = vmul.f32 %v752, %v752
      %v1009 = vmul.f32 %v757, %v757
      %v1010 = vmul.f32 %v760, %v760
      %v1011 = vmul.f32 %v765, %v765
      %v1012 = vmul.f32 %v768, %v768
      %v1013 = vmul.f32 %v773, %v773
      %v1014 = vmul.f32 %v776, %v776
      %v1015 = vmul.f32 %v781, %v781
      %v1016 = vmul.f32 %v784, %v784
      %v1017 = vmul.f32 %v789, %v789
      %v1018 = vmul.f32 %v792, %v792
      %v1019 = vmul.f32 %v797, %v797
      %v1020 = vmul.f32 %v800, %v800
      %v1021 = vmul.f32 %v805, %v805
      %v1022 = vmul.f32 %v808, %v808
      %v1023 = vmul.f32 %v813, %v813
      %v1024 = vmul.f32 %v816, %v816
      %v1025 = vmul.f32 %v821, %v821
      %v1026 = vmul.f32 %v824, %v824
      %v1027 = vmul.f32 %v829, %v829
      %v1028 = vmul.f32 %v832, %v832
      %v1029 = vmul.f32 %v837, %v837
      %v1030 = vmul.f32 %v840, %v840
      %v1031 = vmul.f32 %v845, %v845
      %v1032 = vmul.f32 %v848, %v848
      %v1033 = vmul.f32 %v853, %v853
      %v1034 = vmul.f32 %v856, %v856
      %v1035 = vmul.f32 %v861, %v861
      %v1036 = vmul.f32 %v864, %v864
      %v1037 = vmul.f32 %v869, %v869
      %v1038 = vmul.f32 %v872, %v872
      %v1039 = vmul.f32 %v877, %v877
      %v1040 = vmul.f32 %v880, %v880
      %v1041 = vmul.f32 %v885, %v885
      %v1042 = vmul.f32 %v888, %v888
      %v1043 = vmul.f32 %v893, %v893
      %v1044 = vmul.f32 %v896, %v896
      %v1045 = vmul.f32 %v901, %v901
      %v1046 = vmul.f32 %v904, %v904
      %v1047 = vmul.f32 %v909, %v909
      %v1048 = vmul.f32 %v912, %v912
      %v1049 = vadd.f32 %v985, %v986
      %v1050 = vadd.f32 %v1049, %v987
      %v1051 = vadd.f32 %v1050, %v988
      %v1052 = vadd.f32 %v1051, %v989
      %v1053 = vadd.f32 %v1052, %v990
      %v1054 = vadd.f32 %v1053, %v991
      %v1055 = vadd.f32 %v1054, %v992
      %v1056 = vadd.f32 %v1055, %v993
      %v1057 = vadd.f32 %v1056, %v994
      %v1058 = vadd.f32 %v1057, %v995
      %v1059 = vadd.f32 %v1058, %v996
      %v1060 = vadd.f32 %v1059, %v997
      %v1061 = vadd.f32 %v1060, %v998
      %v1062 = vadd.f32 %v1061, %v999
      %v1063 = vadd.f32 %v1062, %v1000
      %v1064 = vadd.f32 %v1063, %v1001
      %v1065 = vadd.f32 %v1064, %v1002
      %v1066 = vadd.f32 %v1065, %v1003
      %v1067 = vadd.f32 %v1066, %v1004
      %v1068 = vadd.f32 %v1067, %v1005
      %v1069 = vadd.f32 %v1068, %v1006
      %v1070 = vadd.f32 %v1069, %v1007
      %v1071 = vadd.f32 %v1070, %v1008
      %v1072 = vadd.f32 %v1071, %v1009
      %v1073 = vadd.f32 %v1072, %v1010
      %v1074 = vadd.f32 %v1073, %v1011
      %v1075 = vadd.f32 %v1074, %v1012
      %v1076 = vadd.f32 %v1075, %v1013
      %v1077 = vadd.f32 %v1076, %v1014
      %v1078 = vadd.f32 %v1077, %v1015
      %v1079 = vadd.f32 %v1078, %v1016
      %v1080 = vadd.f32 %v1079, %v1017
      %v1081 = vadd.f32 %v1080, %v1018
      %v1082 = vadd.f32 %v1081, %v1019
      %v1083 = vadd.f32 %v1082, %v1020
      %v1084 = vadd.f32 %v1083, %v1021
      %v1085 = vadd.f32 %v1084, %v1022
      %v1086 = vadd.f32 %v1085, %v1023
      %v1087 = vadd.f32 %v1086, %v1024
      %v1088 = vadd.f32 %v1087, %v1025
      %v1089 = vadd.f32 %v1088, %v1026
      %v1090 = vadd.f32 %v1089, %v1027
      %v1091 = vadd.f32 %v1090, %v1028
      %v1092 = vadd.f32 %v1091, %v1029
      %v1093 = vadd.f32 %v1092, %v1030
      %v1094 = vadd.f32 %v1093, %v1031
      %v1095 = vadd.f32 %v1094, %v1032
      %v1096 = vadd.f32 %v1095, %v1033
      %v1097 = vadd.f32 %v1096, %v1034
      %v1098 = vadd.f32 %v1097, %v1035
      %v1099 = vadd.f32 %v1098, %v1036
      %v1100 = vadd.f32 %v1099, %v1037
      %v1101 = vadd.f32 %v1100, %v1038
      %v1102 = vadd.f32 %v1101, %v1039
      %v1103 = vadd.f32 %v1102, %v1040
      %v1104 = vadd.f32 %v1103, %v1041
      %v1105 = vadd.f32 %v1104, %v1042
      %v1106 = vadd.f32 %v1105, %v1043
      %v1107 = vadd.f32 %v1106, %v1044
      %v1108 = vadd.f32 %v1107, %v1045
      %v1109 = vadd.f32 %v1108, %v1046
      %v1110 = vadd.f32 %v1109, %v1047
      %v1111 = vadd.f32 %v1110, %v1048
      %v1112 = vrot.slane %v1111, 4
      %v1113 = vadd.f32 %v1111, %v1112
      %v1114 = vrot.slane %v1113, 2
      %v1115 = vadd.f32 %v1113, %v1114
      %v1116 = vrot.slane %v1115, 1
      %v1117 = vadd.f32 %v1115, %v1116
      %1118 = vst [vmem:[%s304] sm:$0x1] %v1117
      %v1119 = vpack.c.bf16 %v664, %v661
      %v1120 = vpack.c.bf16 %v672, %v669
      %v1121 = vpack.c.bf16 %v680, %v677
      %v1122 = vpack.c.bf16 %v688, %v685
      %v1123 = vpack.c.bf16 %v696, %v693
      %v1124 = vpack.c.bf16 %v704, %v701
      %v1125 = vpack.c.bf16 %v712, %v709
      %v1126 = vpack.c.bf16 %v720, %v717
      %v1127 = vpack.c.bf16 %v728, %v725
      %v1128 = vpack.c.bf16 %v736, %v733
      %v1129 = vpack.c.bf16 %v744, %v741
      %v1130 = vpack.c.bf16 %v752, %v749
      %v1131 = vpack.c.bf16 %v760, %v757
      %v1132 = vpack.c.bf16 %v768, %v765
      %v1133 = vpack.c.bf16 %v776, %v773
      %v1134 = vpack.c.bf16 %v784, %v781
      %v1135 = vpack.c.bf16 %v792, %v789
      %v1136 = vpack.c.bf16 %v800, %v797
      %v1137 = vpack.c.bf16 %v808, %v805
      %v1138 = vpack.c.bf16 %v816, %v813
      %v1139 = vpack.c.bf16 %v824, %v821
      %v1140 = vpack.c.bf16 %v832, %v829
      %v1141 = vpack.c.bf16 %v840, %v837
      %v1142 = vpack.c.bf16 %v848, %v845
      %v1143 = vpack.c.bf16 %v856, %v853
      %v1144 = vpack.c.bf16 %v864, %v861
      %v1145 = vpack.c.bf16 %v872, %v869
      %v1146 = vpack.c.bf16 %v880, %v877
      %v1147 = vpack.c.bf16 %v888, %v885
      %v1148 = vpack.c.bf16 %v896, %v893
      %v1149 = vpack.c.bf16 %v904, %v901
      %v1150 = vpack.c.bf16 %v912, %v909
      %v1183 = vunpack.c.l.b16 %v1119
      %v1184 = vunpack.c.h.b16 %v1119
      %v1185 = vunpack.c.l.b16 %v1120
      %v1186 = vunpack.c.h.b16 %v1120
      %v1187 = vunpack.c.l.b16 %v1121
      %v1188 = vunpack.c.h.b16 %v1121
      %v1189 = vunpack.c.l.b16 %v1122
      %v1190 = vunpack.c.h.b16 %v1122
      %v1191 = vunpack.c.l.b16 %v1123
      %v1192 = vunpack.c.h.b16 %v1123
      %v1193 = vunpack.c.l.b16 %v1124
      %v1194 = vunpack.c.h.b16 %v1124
      %v1195 = vunpack.c.l.b16 %v1125
      %v1196 = vunpack.c.h.b16 %v1125
      %v1197 = vunpack.c.l.b16 %v1126
      %v1198 = vunpack.c.h.b16 %v1126
      %v1199 = vunpack.c.l.b16 %v1127
      %v1200 = vunpack.c.h.b16 %v1127
      %v1201 = vunpack.c.l.b16 %v1128
      %v1202 = vunpack.c.h.b16 %v1128
      %v1203 = vunpack.c.l.b16 %v1129
      %v1204 = vunpack.c.h.b16 %v1129
      %v1205 = vunpack.c.l.b16 %v1130
      %v1206 = vunpack.c.h.b16 %v1130
      %v1207 = vunpack.c.l.b16 %v1131
      %v1208 = vunpack.c.h.b16 %v1131
      %v1209 = vunpack.c.l.b16 %v1132
      %v1210 = vunpack.c.h.b16 %v1132
      %v1211 = vunpack.c.l.b16 %v1133
      %v1212 = vunpack.c.h.b16 %v1133
      %v1213 = vunpack.c.l.b16 %v1134
      %v1214 = vunpack.c.h.b16 %v1134
      %v1215 = vunpack.c.l.b16 %v1135
      %v1216 = vunpack.c.h.b16 %v1135
      %v1217 = vunpack.c.l.b16 %v1136
      %v1218 = vunpack.c.h.b16 %v1136
      %v1219 = vunpack.c.l.b16 %v1137
      %v1220 = vunpack.c.h.b16 %v1137
      %v1221 = vunpack.c.l.b16 %v1138
      %v1222 = vunpack.c.h.b16 %v1138
      %v1223 = vunpack.c.l.b16 %v1139
      %v1224 = vunpack.c.h.b16 %v1139
      %v1225 = vunpack.c.l.b16 %v1140
      %v1226 = vunpack.c.h.b16 %v1140
      %v1227 = vunpack.c.l.b16 %v1141
      %v1228 = vunpack.c.h.b16 %v1141
      %v1229 = vunpack.c.l.b16 %v1142
      %v1230 = vunpack.c.h.b16 %v1142
      %v1231 = vunpack.c.l.b16 %v1143
      %v1232 = vunpack.c.h.b16 %v1143
      %v1233 = vunpack.c.l.b16 %v1144
      %v1234 = vunpack.c.h.b16 %v1144
      %v1235 = vunpack.c.l.b16 %v1145
      %v1236 = vunpack.c.h.b16 %v1145
      %v1237 = vunpack.c.l.b16 %v1146
      %v1238 = vunpack.c.h.b16 %v1146
      %v1239 = vunpack.c.l.b16 %v1147
      %v1240 = vunpack.c.h.b16 %v1147
      %v1241 = vunpack.c.l.b16 %v1148
      %v1242 = vunpack.c.h.b16 %v1148
      %v1243 = vunpack.c.l.b16 %v1149
      %v1244 = vunpack.c.h.b16 %v1149
      %v1245 = vunpack.c.l.b16 %v1150
      %v1246 = vunpack.c.h.b16 %v1150
      %v1247 = vpack.c.b16 %v1183, %v1183
      %v1248 = vpack.c.b16 %v1184, %v1184
      %v1249 = vpack.c.b16 %v1185, %v1185
      %v1250 = vpack.c.b16 %v1186, %v1186
      %v1251 = vpack.c.b16 %v1187, %v1187
      %v1252 = vpack.c.b16 %v1188, %v1188
      %v1253 = vpack.c.b16 %v1189, %v1189
      %v1254 = vpack.c.b16 %v1190, %v1190
      %v1255 = vpack.c.b16 %v1191, %v1191
      %v1256 = vpack.c.b16 %v1192, %v1192
      %v1257 = vpack.c.b16 %v1193, %v1193
      %v1258 = vpack.c.b16 %v1194, %v1194
      %v1259 = vpack.c.b16 %v1195, %v1195
      %v1260 = vpack.c.b16 %v1196, %v1196
      %v1261 = vpack.c.b16 %v1197, %v1197
      %v1262 = vpack.c.b16 %v1198, %v1198
      %v1263 = vpack.c.b16 %v1199, %v1199
      %v1264 = vpack.c.b16 %v1200, %v1200
      %v1265 = vpack.c.b16 %v1201, %v1201
      %v1266 = vpack.c.b16 %v1202, %v1202
      %v1267 = vpack.c.b16 %v1203, %v1203
      %v1268 = vpack.c.b16 %v1204, %v1204
      %v1269 = vpack.c.b16 %v1205, %v1205
      %v1270 = vpack.c.b16 %v1206, %v1206
      %v1271 = vpack.c.b16 %v1207, %v1207
      %v1272 = vpack.c.b16 %v1208, %v1208
      %v1273 = vpack.c.b16 %v1209, %v1209
      %v1274 = vpack.c.b16 %v1210, %v1210
      %v1275 = vpack.c.b16 %v1211, %v1211
      %v1276 = vpack.c.b16 %v1212, %v1212
      %v1277 = vpack.c.b16 %v1213, %v1213
      %v1278 = vpack.c.b16 %v1214, %v1214
      %v1279 = vpack.c.b16 %v1215, %v1215
      %v1280 = vpack.c.b16 %v1216, %v1216
      %v1281 = vpack.c.b16 %v1217, %v1217
      %v1282 = vpack.c.b16 %v1218, %v1218
      %v1283 = vpack.c.b16 %v1219, %v1219
      %v1284 = vpack.c.b16 %v1220, %v1220
      %v1285 = vpack.c.b16 %v1221, %v1221
      %v1286 = vpack.c.b16 %v1222, %v1222
      %v1287 = vpack.c.b16 %v1223, %v1223
      %v1288 = vpack.c.b16 %v1224, %v1224
      %v1289 = vpack.c.b16 %v1225, %v1225
      %v1290 = vpack.c.b16 %v1226, %v1226
      %v1291 = vpack.c.b16 %v1227, %v1227
      %v1292 = vpack.c.b16 %v1228, %v1228
      %v1293 = vpack.c.b16 %v1229, %v1229
      %v1294 = vpack.c.b16 %v1230, %v1230
      %v1295 = vpack.c.b16 %v1231, %v1231
      %v1296 = vpack.c.b16 %v1232, %v1232
      %v1297 = vpack.c.b16 %v1233, %v1233
      %v1298 = vpack.c.b16 %v1234, %v1234
      %v1299 = vpack.c.b16 %v1235, %v1235
      %v1300 = vpack.c.b16 %v1236, %v1236
      %v1301 = vpack.c.b16 %v1237, %v1237
      %v1302 = vpack.c.b16 %v1238, %v1238
      %v1303 = vpack.c.b16 %v1239, %v1239
      %v1304 = vpack.c.b16 %v1240, %v1240
      %v1305 = vpack.c.b16 %v1241, %v1241
      %v1306 = vpack.c.b16 %v1242, %v1242
      %v1307 = vpack.c.b16 %v1243, %v1243
      %v1308 = vpack.c.b16 %v1244, %v1244
      %v1309 = vpack.c.b16 %v1245, %v1245
      %v1310 = vpack.c.b16 %v1246, %v1246
      %1375 = vst [vmem:[%s291] sm:$0xf] %v1247
      %1376 = vst [vmem:[%s291 + $0x4] sm:$0xf] %v1248
      %1377 = vst [vmem:[%s291 + $0x8] sm:$0xf] %v1249
      %1378 = vst [vmem:[%s291 + $0xc] sm:$0xf] %v1250
      %1379 = vst [vmem:[%s291 + $0x10] sm:$0xf] %v1251
      %1380 = vst [vmem:[%s291 + $0x14] sm:$0xf] %v1252
      %1381 = vst [vmem:[%s291 + $0x18] sm:$0xf] %v1253
      %1382 = vst [vmem:[%s291 + $0x1c] sm:$0xf] %v1254
      %1383 = vst [vmem:[%s291 + $0x20] sm:$0xf] %v1255
      %1384 = vst [vmem:[%s291 + $0x24] sm:$0xf] %v1256
      %1385 = vst [vmem:[%s291 + $0x28] sm:$0xf] %v1257
      %1386 = vst [vmem:[%s291 + $0x2c] sm:$0xf] %v1258
      %1387 = vst [vmem:[%s291 + $0x30] sm:$0xf] %v1259
      %1388 = vst [vmem:[%s291 + $0x34] sm:$0xf] %v1260
      %1389 = vst [vmem:[%s291 + $0x38] sm:$0xf] %v1261
      %1390 = vst [vmem:[%s291 + $0x3c] sm:$0xf] %v1262
      %1391 = vst [vmem:[%s291 + $0x40] sm:$0xf] %v1263
      %1392 = vst [vmem:[%s291 + $0x44] sm:$0xf] %v1264
      %1393 = vst [vmem:[%s291 + $0x48] sm:$0xf] %v1265
      %1394 = vst [vmem:[%s291 + $0x4c] sm:$0xf] %v1266
      %1395 = vst [vmem:[%s291 + $0x50] sm:$0xf] %v1267
      %1396 = vst [vmem:[%s291 + $0x54] sm:$0xf] %v1268
      %1397 = vst [vmem:[%s291 + $0x58] sm:$0xf] %v1269
      %1398 = vst [vmem:[%s291 + $0x5c] sm:$0xf] %v1270
      %1399 = vst [vmem:[%s291 + $0x60] sm:$0xf] %v1271
      %1400 = vst [vmem:[%s291 + $0x64] sm:$0xf] %v1272
      %1401 = vst [vmem:[%s291 + $0x68] sm:$0xf] %v1273
      %1402 = vst [vmem:[%s291 + $0x6c] sm:$0xf] %v1274
      %1403 = vst [vmem:[%s291 + $0x70] sm:$0xf] %v1275
      %1404 = vst [vmem:[%s291 + $0x74] sm:$0xf] %v1276
      %1405 = vst [vmem:[%s291 + $0x78] sm:$0xf] %v1277
      %1406 = vst [vmem:[%s291 + $0x7c] sm:$0xf] %v1278
      %1407 = vst [vmem:[%s291 + $0x80] sm:$0xf] %v1279
      %1408 = vst [vmem:[%s291 + $0x84] sm:$0xf] %v1280
      %1409 = vst [vmem:[%s291 + $0x88] sm:$0xf] %v1281
      %1410 = vst [vmem:[%s291 + $0x8c] sm:$0xf] %v1282
      %1411 = vst [vmem:[%s291 + $0x90] sm:$0xf] %v1283
      %1412 = vst [vmem:[%s291 + $0x94] sm:$0xf] %v1284
      %1413 = vst [vmem:[%s291 + $0x98] sm:$0xf] %v1285
      %1414 = vst [vmem:[%s291 + $0x9c] sm:$0xf] %v1286
      %1415 = vst [vmem:[%s291 + $0xa0] sm:$0xf] %v1287
      %1416 = vst [vmem:[%s291 + $0xa4] sm:$0xf] %v1288
      %1417 = vst [vmem:[%s291 + $0xa8] sm:$0xf] %v1289
      %1418 = vst [vmem:[%s291 + $0xac] sm:$0xf] %v1290
      %1419 = vst [vmem:[%s291 + $0xb0] sm:$0xf] %v1291
      %1420 = vst [vmem:[%s291 + $0xb4] sm:$0xf] %v1292
      %1421 = vst [vmem:[%s291 + $0xb8] sm:$0xf] %v1293
      %1422 = vst [vmem:[%s291 + $0xbc] sm:$0xf] %v1294
      %1423 = vst [vmem:[%s291 + $0xc0] sm:$0xf] %v1295
      %1424 = vst [vmem:[%s291 + $0xc4] sm:$0xf] %v1296
      %1425 = vst [vmem:[%s291 + $0xc8] sm:$0xf] %v1297
      %1426 = vst [vmem:[%s291 + $0xcc] sm:$0xf] %v1298
      %1427 = vst [vmem:[%s291 + $0xd0] sm:$0xf] %v1299
      %1428 = vst [vmem:[%s291 + $0xd4] sm:$0xf] %v1300
      %1429 = vst [vmem:[%s291 + $0xd8] sm:$0xf] %v1301
      %1430 = vst [vmem:[%s291 + $0xdc] sm:$0xf] %v1302
      %1431 = vst [vmem:[%s291 + $0xe0] sm:$0xf] %v1303
      %1432 = vst [vmem:[%s291 + $0xe4] sm:$0xf] %v1304
      %1433 = vst [vmem:[%s291 + $0xe8] sm:$0xf] %v1305
      %1434 = vst [vmem:[%s291 + $0xec] sm:$0xf] %v1306
      %1435 = vst [vmem:[%s291 + $0xf0] sm:$0xf] %v1307
      %1436 = vst [vmem:[%s291 + $0xf4] sm:$0xf] %v1308
      %1437 = vst [vmem:[%s291 + $0xf8] sm:$0xf] %v1309
      %1438 = vst [vmem:[%s291 + $0xfc] sm:$0xf] %v1310
      %s1439 = smul.u32 64, %s21
      %p1440 = scmp.lt.s32.totalorder %s1439, 255
      %s1441 = scalar_select %p1440, %s1439, 255
      %p1442 = scmp.lt.s32.totalorder %s22, 0
      %s1443 = scalar_select %p1442, %s22, 0
      %s1444 = sadd.s32 %s1443, %s1441
      %s1445 = smul.addr %s1444, 4
      %s1446 = scalar_lea.vmem %s2, %s1445
      %p1447 = scmp.lt.s32.totalorder %s21, 3
      %s1448 = scalar_select %p1447, %s21, 3
      %p1449 = scmp.lt.s32.totalorder %s22, 0
      %s1450 = scalar_select %p1449, %s22, 0
      %s1451 = sadd.s32 %s1450, %s1448
      %s1452 = scalar_lea.vmem %s3, %s1451
      %p1453 = scmp.lt.s32.totalorder %s21, 3
      %s1454 = scalar_select %p1453, %s21, 3
      %p1455 = scmp.lt.s32.totalorder %s22, 0
      %s1456 = scalar_select %p1455, %s22, 0
      %s1457 = sadd.s32 %s1456, %s1454
      %s1458 = scalar_lea.vmem %s4, %s1457
      // Predicated region
      $region29: #{net_e_forward.7} parent=27 // pred_check
        %p1459 = pneg %p111
      $region30: #{net_e_forward.7} parent=27 // pred_check_branch
        %1461 = sbr.rel (%p1459) target = $region32
      $region31: #{net_e_forward.7} parent=27 // pred_region
        %s1462 = smul.u32 64, %s21
      $region32: #{net_e_forward.7} parent=27 // pred_fallthru
        _
      // Predicated region
      $region33: #{net_e_forward.7} parent=27 // pred_check
        %p1463 = pneg %p139
      $region34: #{net_e_forward.7} parent=27 // pred_check_branch
        %1465 = sbr.rel (%p1463) target = $region36
      $region35: #{net_e_forward.7} parent=27 // pred_region
        _
      $region36: #{net_e_forward.7} parent=27 // pred_fallthru
        _
      // Predicated region
      $region37: #{net_e_forward.7} parent=27 // pred_check
        %p1466 = pneg %p167
      $region38: #{net_e_forward.7} parent=27 // pred_check_branch
        %1468 = sbr.rel (%p1466) target = $region40
      $region39: #{net_e_forward.7} parent=27 // pred_region
        _
      $region40: #{net_e_forward.7} parent=27 // pred_fallthru
        _
    $region28: #{net_e_forward.7} parent=5 // pred_fallthru
      _
    %p1469 = scmp.le.s32.totalorder 2, %s11
    // Predicated region
    $region41: #{net_e_forward.7} parent=5 // pred_check
      %p1470 = pneg %p1469
    $region42: #{net_e_forward.7} parent=5 // pred_check_branch
      %1472 = sbr.rel (%p1470) target = $region44
    $region43: #{net_e_forward.7} parent=5 // pred_region
      %s1473 = ssub.s32 %s11, 2
      // Predicated region
      $region45: #{net_e_forward.7} parent=43 // pred_check
        %p1474 = pneg %p117
      $region46: #{net_e_forward.7} parent=43 // pred_check_branch
        %1476 = sbr.rel (%p1474) target = $region48
      $region47: #{net_e_forward.7} parent=43 // pred_region
        %s1477 = smul.u32 64, %s24
        %p1478 = scmp.lt.s32.totalorder %s1477, 255
        %s1479 = scalar_select %p1478, %s1477, 255
        %p1480 = scmp.lt.s32.totalorder %s25, 0
        %s1481 = scalar_select %p1480, %s25, 0
        %s1482 = sadd.s32 %s1481, %s1479
        %s1483 = smul.addr %s1482, 4
        %s1484 = scalar_lea.vmem %s2, %s1483
      $region48: #{net_e_forward.7} parent=43 // pred_fallthru
        _
      // Predicated region
      $region49: #{net_e_forward.7} parent=43 // pred_check
        %p1485 = pneg %p145
      $region50: #{net_e_forward.7} parent=43 // pred_check_branch
        %1487 = sbr.rel (%p1485) target = $region52
      $region51: #{net_e_forward.7} parent=43 // pred_region
        %p1488 = scmp.lt.s32.totalorder %s24, 3
        %s1489 = scalar_select %p1488, %s24, 3
        %p1490 = scmp.lt.s32.totalorder %s25, 0
        %s1491 = scalar_select %p1490, %s25, 0
        %s1492 = sadd.s32 %s1491, %s1489
        %s1493 = scalar_lea.vmem %s3, %s1492
      $region52: #{net_e_forward.7} parent=43 // pred_fallthru
        _
      // Predicated region
      $region53: #{net_e_forward.7} parent=43 // pred_check
        %p1494 = pneg %p173
      $region54: #{net_e_forward.7} parent=43 // pred_check_branch
        %1496 = sbr.rel (%p1494) target = $region56
      $region55: #{net_e_forward.7} parent=43 // pred_region
        %p1497 = scmp.lt.s32.totalorder %s24, 3
        %s1498 = scalar_select %p1497, %s24, 3
        %p1499 = scmp.lt.s32.totalorder %s25, 0
        %s1500 = scalar_select %p1499, %s25, 0
        %s1501 = sadd.s32 %s1500, %s1498
        %s1502 = scalar_lea.vmem %s4, %s1501
      $region56: #{net_e_forward.7} parent=43 // pred_fallthru
        _
    $region44: #{net_e_forward.7} parent=5 // pred_fallthru
      _
  $region6: #{net_e_forward.7} parent=0 // loop_footer
    %s15 = sadd.s32 1, %s11
  $region7: #{net_e_forward.7} parent=0 // loop_footer_branch
    %10 = sbr.rel target = $region3
  $region8: #{net_e_forward.7} parent=0 // loop_exit
    _

// kernel: net_e_forward.8
$region0: #{net_e_forward.8}
  #allocation0 [shape = 'u32[]', space=smem, size = 0x4, offset = 0x4, fixed_abs, tag = 'smem constant byte address 0x4 - core index']
  #allocation1 [shape = 'u32[144,128]{1,0:T(1,128)}', space=vmem, size = 0x12000, scoped, tag = 'internal scratch']
  %s0 = inlined_call_operand.vmem [shape: bf16[512,128], index: 0, kind: input, shape index: {}]
  %s1 = inlined_call_operand.vmem [shape: bf16[128,128], index: 1, kind: input, shape index: {}]
  %s2 = inlined_call_operand.vmem [shape: bf16[512,128], index: 2, kind: output, shape index: {0}]
  %s3 = inlined_call_operand.vmem [shape: f32[1,1,128], index: 3, kind: output, shape index: {1}]
  %s4 = inlined_call_operand.vmem [shape: f32[1,1,128], index: 4, kind: output, shape index: {2}]
  %5 = xla_tuple %s2, %s3, %s4
  %s6 = sld [smem:[#allocation0]]
  $region34: #{net_e_forward.8} parent=0
    _
  %s8 = ssub.s32 1, %s6
  %s9 = scalar_select 0, %s8, %s6
  // Predicated region
  $region2: #{net_e_forward.8} parent=0 // pred_check
    _
  $region3: #{net_e_forward.8} parent=0 // pred_check_branch
    %11 = sbr.rel (0) target = $region5
  $region4: #{net_e_forward.8} parent=0 // pred_region
    _
  $region5: #{net_e_forward.8} parent=0 // pred_fallthru
    _
  // Predicated region
  $region6: #{net_e_forward.8} parent=0 // pred_check
    _
  $region7: #{net_e_forward.8} parent=0 // pred_check_branch
    %13 = sbr.rel (0) target = $region9
  $region8: #{net_e_forward.8} parent=0 // pred_region
    _
  $region9: #{net_e_forward.8} parent=0 // pred_fallthru
    _
  %v15 = vld [vmem:[%s0] sm:$0xf]
  %v16 = vld [vmem:[%s0 + $0x4] sm:$0xf]
  %v17 = vld [vmem:[%s0 + $0x8] sm:$0xf]
  %v18 = vld [vmem:[%s0 + $0xc] sm:$0xf]
  %v19 = vld [vmem:[%s0 + $0x10] sm:$0xf]
  %v20 = vld [vmem:[%s0 + $0x14] sm:$0xf]
  %v21 = vld [vmem:[%s0 + $0x18] sm:$0xf]
  %v22 = vld [vmem:[%s0 + $0x1c] sm:$0xf]
  %v23 = vld [vmem:[%s0 + $0x20] sm:$0xf]
  %v24 = vld [vmem:[%s0 + $0x24] sm:$0xf]
  %v25 = vld [vmem:[%s0 + $0x28] sm:$0xf]
  %v26 = vld [vmem:[%s0 + $0x2c] sm:$0xf]
  %v27 = vld [vmem:[%s0 + $0x30] sm:$0xf]
  %v28 = vld [vmem:[%s0 + $0x34] sm:$0xf]
  %v29 = vld [vmem:[%s0 + $0x38] sm:$0xf]
  %v30 = vld [vmem:[%s0 + $0x3c] sm:$0xf]
  %v31 = vld [vmem:[%s0 + $0x40] sm:$0xf]
  %v32 = vld [vmem:[%s0 + $0x44] sm:$0xf]
  %v33 = vld [vmem:[%s0 + $0x48] sm:$0xf]
  %v34 = vld [vmem:[%s0 + $0x4c] sm:$0xf]
  %v35 = vld [vmem:[%s0 + $0x50] sm:$0xf]
  %v36 = vld [vmem:[%s0 + $0x54] sm:$0xf]
  %v37 = vld [vmem:[%s0 + $0x58] sm:$0xf]
  %v38 = vld [vmem:[%s0 + $0x5c] sm:$0xf]
  %v39 = vld [vmem:[%s0 + $0x60] sm:$0xf]
  %v40 = vld [vmem:[%s0 + $0x64] sm:$0xf]
  %v41 = vld [vmem:[%s0 + $0x68] sm:$0xf]
  %v42 = vld [vmem:[%s0 + $0x6c] sm:$0xf]
  %v43 = vld [vmem:[%s0 + $0x70] sm:$0xf]
  %v44 = vld [vmem:[%s0 + $0x74] sm:$0xf]
  %v45 = vld [vmem:[%s0 + $0x78] sm:$0xf]
  %v46 = vld [vmem:[%s0 + $0x7c] sm:$0xf]
  %v47 = vld [vmem:[%s0 + $0x80] sm:$0xf]
  %v48 = vld [vmem:[%s0 + $0x84] sm:$0xf]
  %v49 = vld [vmem:[%s0 + $0x88] sm:$0xf]
  %v50 = vld [vmem:[%s0 + $0x8c] sm:$0xf]
  %v51 = vld [vmem:[%s0 + $0x90] sm:$0xf]
  %v52 = vld [vmem:[%s0 + $0x94] sm:$0xf]
  %v53 = vld [vmem:[%s0 + $0x98] sm:$0xf]
  %v54 = vld [vmem:[%s0 + $0x9c] sm:$0xf]
  %v55 = vld [vmem:[%s0 + $0xa0] sm:$0xf]
  %v56 = vld [vmem:[%s0 + $0xa4] sm:$0xf]
  %v57 = vld [vmem:[%s0 + $0xa8] sm:$0xf]
  %v58 = vld [vmem:[%s0 + $0xac] sm:$0xf]
  %v59 = vld [vmem:[%s0 + $0xb0] sm:$0xf]
  %v60 = vld [vmem:[%s0 + $0xb4] sm:$0xf]
  %v61 = vld [vmem:[%s0 + $0xb8] sm:$0xf]
  %v62 = vld [vmem:[%s0 + $0xbc] sm:$0xf]
  %v63 = vld [vmem:[%s0 + $0xc0] sm:$0xf]
  %v64 = vld [vmem:[%s0 + $0xc4] sm:$0xf]
  %v65 = vld [vmem:[%s0 + $0xc8] sm:$0xf]
  %v66 = vld [vmem:[%s0 + $0xcc] sm:$0xf]
  %v67 = vld [vmem:[%s0 + $0xd0] sm:$0xf]
  %v68 = vld [vmem:[%s0 + $0xd4] sm:$0xf]
  %v69 = vld [vmem:[%s0 + $0xd8] sm:$0xf]
  %v70 = vld [vmem:[%s0 + $0xdc] sm:$0xf]
  %v71 = vld [vmem:[%s0 + $0xe0] sm:$0xf]
  %v72 = vld [vmem:[%s0 + $0xe4] sm:$0xf]
  %v73 = vld [vmem:[%s0 + $0xe8] sm:$0xf]
  %v74 = vld [vmem:[%s0 + $0xec] sm:$0xf]
  %v75 = vld [vmem:[%s0 + $0xf0] sm:$0xf]
  %v76 = vld [vmem:[%s0 + $0xf4] sm:$0xf]
  %v77 = vld [vmem:[%s0 + $0xf8] sm:$0xf]
  %v78 = vld [vmem:[%s0 + $0xfc] sm:$0xf]
  %v79 = vld [vmem:[%s1] sm:$0xf]
  %v80 = vld [vmem:[%s1 + $0x4] sm:$0xf]
  %v81 = vld [vmem:[%s1 + $0x8] sm:$0xf]
  %v82 = vld [vmem:[%s1 + $0xc] sm:$0xf]
  %v83 = vld [vmem:[%s1 + $0x10] sm:$0xf]
  %v84 = vld [vmem:[%s1 + $0x14] sm:$0xf]
  %v85 = vld [vmem:[%s1 + $0x18] sm:$0xf]
  %v86 = vld [vmem:[%s1 + $0x1c] sm:$0xf]
  %v87 = vld [vmem:[%s1 + $0x20] sm:$0xf]
  %v88 = vld [vmem:[%s1 + $0x24] sm:$0xf]
  %v89 = vld [vmem:[%s1 + $0x28] sm:$0xf]
  %v90 = vld [vmem:[%s1 + $0x2c] sm:$0xf]
  %v91 = vld [vmem:[%s1 + $0x30] sm:$0xf]
  %v92 = vld [vmem:[%s1 + $0x34] sm:$0xf]
  %v93 = vld [vmem:[%s1 + $0x38] sm:$0xf]
  %v94 = vld [vmem:[%s1 + $0x3c] sm:$0xf]
  %v159 = vunpack.c.l.b16 %v15
  %v160 = vunpack.c.l.b16 %v16
  %v161 = vunpack.c.l.b16 %v17
  %v162 = vunpack.c.l.b16 %v18
  %v163 = vunpack.c.l.b16 %v19
  %v164 = vunpack.c.l.b16 %v20
  %v165 = vunpack.c.l.b16 %v21
  %v166 = vunpack.c.l.b16 %v22
  %v167 = vunpack.c.l.b16 %v23
  %v168 = vunpack.c.l.b16 %v24
  %v169 = vunpack.c.l.b16 %v25
  %v170 = vunpack.c.l.b16 %v26
  %v171 = vunpack.c.l.b16 %v27
  %v172 = vunpack.c.l.b16 %v28
  %v173 = vunpack.c.l.b16 %v29
  %v174 = vunpack.c.l.b16 %v30
  %v175 = vunpack.c.l.b16 %v31
  %v176 = vunpack.c.l.b16 %v32
  %v177 = vunpack.c.l.b16 %v33
  %v178 = vunpack.c.l.b16 %v34
  %v179 = vunpack.c.l.b16 %v35
  %v180 = vunpack.c.l.b16 %v36
  %v181 = vunpack.c.l.b16 %v37
  %v182 = vunpack.c.l.b16 %v38
  %v183 = vunpack.c.l.b16 %v39
  %v184 = vunpack.c.l.b16 %v40
  %v185 = vunpack.c.l.b16 %v41
  %v186 = vunpack.c.l.b16 %v42
  %v187 = vunpack.c.l.b16 %v43
  %v188 = vunpack.c.l.b16 %v44
  %v189 = vunpack.c.l.b16 %v45
  %v190 = vunpack.c.l.b16 %v46
  %v191 = vunpack.c.l.b16 %v47
  %v192 = vunpack.c.l.b16 %v48
  %v193 = vunpack.c.l.b16 %v49
  %v194 = vunpack.c.l.b16 %v50
  %v195 = vunpack.c.l.b16 %v51
  %v196 = vunpack.c.l.b16 %v52
  %v197 = vunpack.c.l.b16 %v53
  %v198 = vunpack.c.l.b16 %v54
  %v199 = vunpack.c.l.b16 %v55
  %v200 = vunpack.c.l.b16 %v56
  %v201 = vunpack.c.l.b16 %v57
  %v202 = vunpack.c.l.b16 %v58
  %v203 = vunpack.c.l.b16 %v59
  %v204 = vunpack.c.l.b16 %v60
  %v205 = vunpack.c.l.b16 %v61
  %v206 = vunpack.c.l.b16 %v62
  %v207 = vunpack.c.l.b16 %v63
  %v208 = vunpack.c.l.b16 %v64
  %v209 = vunpack.c.l.b16 %v65
  %v210 = vunpack.c.l.b16 %v66
  %v211 = vunpack.c.l.b16 %v67
  %v212 = vunpack.c.l.b16 %v68
  %v213 = vunpack.c.l.b16 %v69
  %v214 = vunpack.c.l.b16 %v70
  %v215 = vunpack.c.l.b16 %v71
  %v216 = vunpack.c.l.b16 %v72
  %v217 = vunpack.c.l.b16 %v73
  %v218 = vunpack.c.l.b16 %v74
  %v219 = vunpack.c.l.b16 %v75
  %v220 = vunpack.c.l.b16 %v76
  %v221 = vunpack.c.l.b16 %v77
  %v222 = vunpack.c.l.b16 %v78
  %v223 = vpack.c.b16 %v160, %v159
  %v224 = vpack.c.b16 %v162, %v161
  %v225 = vpack.c.b16 %v164, %v163
  %v226 = vpack.c.b16 %v166, %v165
  %v227 = vpack.c.b16 %v168, %v167
  %v228 = vpack.c.b16 %v170, %v169
  %v229 = vpack.c.b16 %v172, %v171
  %v230 = vpack.c.b16 %v174, %v173
  %v231 = vpack.c.b16 %v176, %v175
  %v232 = vpack.c.b16 %v178, %v177
  %v233 = vpack.c.b16 %v180, %v179
  %v234 = vpack.c.b16 %v182, %v181
  %v235 = vpack.c.b16 %v184, %v183
  %v236 = vpack.c.b16 %v186, %v185
  %v237 = vpack.c.b16 %v188, %v187
  %v238 = vpack.c.b16 %v190, %v189
  %v239 = vpack.c.b16 %v192, %v191
  %v240 = vpack.c.b16 %v194, %v193
  %v241 = vpack.c.b16 %v196, %v195
  %v242 = vpack.c.b16 %v198, %v197
  %v243 = vpack.c.b16 %v200, %v199
  %v244 = vpack.c.b16 %v202, %v201
  %v245 = vpack.c.b16 %v204, %v203
  %v246 = vpack.c.b16 %v206, %v205
  %v247 = vpack.c.b16 %v208, %v207
  %v248 = vpack.c.b16 %v210, %v209
  %v249 = vpack.c.b16 %v212, %v211
  %v250 = vpack.c.b16 %v214, %v213
  %v251 = vpack.c.b16 %v216, %v215
  %v252 = vpack.c.b16 %v218, %v217
  %v253 = vpack.c.b16 %v220, %v219
  %v254 = vpack.c.b16 %v222, %v221
  %v303 = vunpack.c.l.b16 %v79
  %v304 = vunpack.c.l.b16 %v80
  %v305 = vunpack.c.l.b16 %v81
  %v306 = vunpack.c.l.b16 %v82
  %v307 = vunpack.c.l.b16 %v83
  %v308 = vunpack.c.l.b16 %v84
  %v309 = vunpack.c.l.b16 %v85
  %v310 = vunpack.c.l.b16 %v86
  %v311 = vunpack.c.l.b16 %v87
  %v312 = vunpack.c.l.b16 %v88
  %v313 = vunpack.c.l.b16 %v89
  %v314 = vunpack.c.l.b16 %v90
  %v315 = vunpack.c.l.b16 %v91
  %v316 = vunpack.c.l.b16 %v92
  %v317 = vunpack.c.l.b16 %v93
  %v318 = vunpack.c.l.b16 %v94
  %v319 = vpack.c.b16 %v304, %v303
  %v320 = vpack.c.b16 %v306, %v305
  %v321 = vpack.c.b16 %v308, %v307
  %v322 = vpack.c.b16 %v310, %v309
  %v323 = vpack.c.b16 %v312, %v311
  %v324 = vpack.c.b16 %v314, %v313
  %v325 = vpack.c.b16 %v316, %v315
  %v326 = vpack.c.b16 %v318, %v317
  %335 = vmatprep.subr.bf16.mxu0 0
  %336 = vmatpush1.bf16.msra.mxu0 %v319
  %337 = vmatprep.subr.bf16.mxu0 0
  %338 = vmatpush1.bf16.msra.mxu0 %v320
  %339 = vmatprep.subr.bf16.mxu0 0
  %340 = vmatpush1.bf16.msra.mxu0 %v321
  %341 = vmatprep.subr.bf16.mxu0 0
  %342 = vmatpush1.bf16.msra.mxu0 %v322
  %343 = vmatprep.subr.bf16.mxu0 0
  %344 = vmatpush1.bf16.msra.mxu0 %v323
  %345 = vmatprep.subr.bf16.mxu0 0
  %346 = vmatpush1.bf16.msra.mxu0 %v324
  %347 = vmatprep.subr.bf16.mxu0 0
  %348 = vmatpush1.bf16.msra.mxu0 %v325
  %349 = vmatprep.subr.bf16.mxu0 0
  %350 = vmatpush1.bf16.msra.mxu0 %v326
  %351 = vmatprep.subr.bf16.mxu0 0
  %352 = vmatpush1.bf16.msra.mxu0 0
  %353 = vmatprep.subr.bf16.mxu0 0
  %354 = vmatpush1.bf16.msra.mxu0 0
  %355 = vmatprep.subr.bf16.mxu0 0
  %356 = vmatpush1.bf16.msra.mxu0 0
  %357 = vmatprep.subr.bf16.mxu0 0
  %358 = vmatpush1.bf16.msra.mxu0 0
  %359 = vmatprep.subr.bf16.mxu0 0
  %360 = vmatpush1.bf16.msra.mxu0 0
  %361 = vmatprep.subr.bf16.mxu0 0
  %362 = vmatpush1.bf16.msra.mxu0 0
  %363 = vmatprep.subr.bf16.mxu0 0
  %364 = vmatpush1.bf16.msra.mxu0 0
  %365 = vmatprep.subr.bf16.mxu0 0
  %366 = vmatpush1.bf16.msra.mxu0 0
  %367 = vmatprep.mubr.bf16.mxu0 0
  %368 = vmatmul.mubr.bf16.gmra.mrb[0].mxu0 %v223
  %v369 = vpop.f32.mrb[0].mxu0
  %v370 = vadd.f32 0.0, %v369
  %v371 = vpop.f32.mrb[0].mxu0
  %v372 = vpop.f32.mrb[0].mxu0
  %v373 = vadd.f32 0.0, %v372
  %v374 = vpop.f32.mrb[0].mxu0
  %375 = vmatprep.mubr.bf16.mxu0 0
  %376 = vmatmul.mubr.bf16.gmra.mrb[0].mxu0 %v224
  %v377 = vpop.f32.mrb[0].mxu0
  %v378 = vadd.f32 0.0, %v377
  %v379 = vpop.f32.mrb[0].mxu0
  %v380 = vpop.f32.mrb[0].mxu0
  %v381 = vadd.f32 0.0, %v380
  %v382 = vpop.f32.mrb[0].mxu0
  %383 = vmatprep.mubr.bf16.mxu0 0
  %384 = vmatmul.mubr.bf16.gmra.mrb[0].mxu0 %v225
  %v385 = vpop.f32.mrb[0].mxu0
  %v386 = vadd.f32 0.0, %v385
  %v387 = vpop.f32.mrb[0].mxu0
  %v388 = vpop.f32.mrb[0].mxu0
  %v389 = vadd.f32 0.0, %v388
  %v390 = vpop.f32.mrb[0].mxu0
  %391 = vmatprep.mubr.bf16.mxu0 0
  %392 = vmatmul.mubr.bf16.gmra.mrb[0].mxu0 %v226
  %v393 = vpop.f32.mrb[0].mxu0
  %v394 = vadd.f32 0.0, %v393
  %v395 = vpop.f32.mrb[0].mxu0
  %v396 = vpop.f32.mrb[0].mxu0
  %v397 = vadd.f32 0.0, %v396
  %v398 = vpop.f32.mrb[0].mxu0
  %399 = vmatprep.mubr.bf16.mxu0 0
  %400 = vmatmul.mubr.bf16.gmra.mrb[0].mxu0 %v227
  %v401 = vpop.f32.mrb[0].mxu0
  %v402 = vadd.f32 0.0, %v401
  %v403 = vpop.f32.mrb[0].mxu0
  %v404 = vpop.f32.mrb[0].mxu0
  %v405 = vadd.f32 0.0, %v404
  %v406 = vpop.f32.mrb[0].mxu0
  %407 = vmatprep.mubr.bf16.mxu0 0
  %408 = vmatmul.mubr.bf16.gmra.mrb[0].mxu0 %v228
  %v409 = vpop.f32.mrb[0].mxu0
  %v410 = vadd.f32 0.0, %v409
  %v411 = vpop.f32.mrb[0].mxu0
  %v412 = vpop.f32.mrb[0].mxu0
  %v413 = vadd.f32 0.0, %v412
  %v414 = vpop.f32.mrb[0].mxu0
  %415 = vmatprep.mubr.bf16.mxu0 0
  %416 = vmatmul.mubr.bf16.gmra.mrb[0].mxu0 %v229
  %v417 = vpop.f32.mrb[0].mxu0
  %v418 = vadd.f32 0.0, %v417
  %v419 = vpop.f32.mrb[0].mxu0
  %v420 = vpop.f32.mrb[0].mxu0
  %v421 = vadd.f32 0.0, %v420
  %v422 = vpop.f32.mrb[0].mxu0
  %423 = vmatprep.mubr.bf16.mxu0 0
  %424 = vmatmul.mubr.bf16.gmra.mrb[0].mxu0 %v230
  %v425 = vpop.f32.mrb[0].mxu0
  %v426 = vadd.f32 0.0, %v425
  %v427 = vpop.f32.mrb[0].mxu0
  %v428 = vpop.f32.mrb[0].mxu0
  %v429 = vadd.f32 0.0, %v428
  %v430 = vpop.f32.mrb[0].mxu0
  %431 = vmatprep.mubr.bf16.mxu0 0
  %432 = vmatmul.mubr.bf16.gmra.mrb[0].mxu0 %v231
  %v433 = vpop.f32.mrb[0].mxu0
  %v434 = vadd.f32 0.0, %v433
  %v435 = vpop.f32.mrb[0].mxu0
  %v436 = vpop.f32.mrb[0].mxu0
  %v437 = vadd.f32 0.0, %v436
  %v438 = vpop.f32.mrb[0].mxu0
  %439 = vmatprep.mubr.bf16.mxu0 0
  %440 = vmatmul.mubr.bf16.gmra.mrb[0].mxu0 %v232
  %v441 = vpop.f32.mrb[0].mxu0
  %v442 = vadd.f32 0.0, %v441
  %v443 = vpop.f32.mrb[0].mxu0
  %v444 = vpop.f32.mrb[0].mxu0
  %v445 = vadd.f32 0.0, %v444
  %v446 = vpop.f32.mrb[0].mxu0
  %447 = vmatprep.mubr.bf16.mxu0 0
  %448 = vmatmul.mubr.bf16.gmra.mrb[0].mxu0 %v233
  %v449 = vpop.f32.mrb[0].mxu0
  %v450 = vadd.f32 0.0, %v449
  %v451 = vpop.f32.mrb[0].mxu0
  %v452 = vpop.f32.mrb[0].mxu0
  %v453 = vadd.f32 0.0, %v452
  %v454 = vpop.f32.mrb[0].mxu0
  %455 = vmatprep.mubr.bf16.mxu0 0
  %456 = vmatmul.mubr.bf16.gmra.mrb[0].mxu0 %v234
  %v457 = vpop.f32.mrb[0].mxu0
  %v458 = vadd.f32 0.0, %v457
  %v459 = vpop.f32.mrb[0].mxu0
  %v460 = vpop.f32.mrb[0].mxu0
  %v461 = vadd.f32 0.0, %v460
  %v462 = vpop.f32.mrb[0].mxu0
  %463 = vmatprep.mubr.bf16.mxu0 0
  %464 = vmatmul.mubr.bf16.gmra.mrb[0].mxu0 %v235
  %v465 = vpop.f32.mrb[0].mxu0
  %v466 = vadd.f32 0.0, %v465
  %v467 = vpop.f32.mrb[0].mxu0
  %v468 = vpop.f32.mrb[0].mxu0
  %v469 = vadd.f32 0.0, %v468
  %v470 = vpop.f32.mrb[0].mxu0
  %471 = vmatprep.mubr.bf16.mxu0 0
  %472 = vmatmul.mubr.bf16.gmra.mrb[0].mxu0 %v236
  %v473 = vpop.f32.mrb[0].mxu0
  %v474 = vadd.f32 0.0, %v473
  %v475 = vpop.f32.mrb[0].mxu0
  %v476 = vpop.f32.mrb[0].mxu0
  %v477 = vadd.f32 0.0, %v476
  %v478 = vpop.f32.mrb[0].mxu0
  %479 = vmatprep.mubr.bf16.mxu0 0
  %480 = vmatmul.mubr.bf16.gmra.mrb[0].mxu0 %v237
  %v481 = vpop.f32.mrb[0].mxu0
  %v482 = vadd.f32 0.0, %v481
  %v483 = vpop.f32.mrb[0].mxu0
  %v484 = vpop.f32.mrb[0].mxu0
  %v485 = vadd.f32 0.0, %v484
  %v486 = vpop.f32.mrb[0].mxu0
  %487 = vmatprep.mubr.bf16.mxu0 0
  %488 = vmatmul.mubr.bf16.gmra.mrb[0].mxu0 %v238
  %v489 = vpop.f32.mrb[0].mxu0
  %v490 = vadd.f32 0.0, %v489
  %v491 = vpop.f32.mrb[0].mxu0
  %v492 = vpop.f32.mrb[0].mxu0
  %v493 = vadd.f32 0.0, %v492
  %v494 = vpop.f32.mrb[0].mxu0
  %495 = vmatprep.mubr.bf16.mxu0 0
  %496 = vmatmul.mubr.bf16.gmra.mrb[0].mxu0 %v239
  %v497 = vpop.f32.mrb[0].mxu0
  %v498 = vadd.f32 0.0, %v497
  %v499 = vpop.f32.mrb[0].mxu0
  %v500 = vpop.f32.mrb[0].mxu0
  %v501 = vadd.f32 0.0, %v500
  %v502 = vpop.f32.mrb[0].mxu0
  %503 = vmatprep.mubr.bf16.mxu0 0
  %504 = vmatmul.mubr.bf16.gmra.mrb[0].mxu0 %v240
  %v505 = vpop.f32.mrb[0].mxu0
  %v506 = vadd.f32 0.0, %v505
  %v507 = vpop.f32.mrb[0].mxu0
  %v508 = vpop.f32.mrb[0].mxu0
  %v509 = vadd.f32 0.0, %v508
  %v510 = vpop.f32.mrb[0].mxu0
  %511 = vmatprep.mubr.bf16.mxu0 0
  %512 = vmatmul.mubr.bf16.gmra.mrb[0].mxu0 %v241
  %v513 = vpop.f32.mrb[0].mxu0
  %v514 = vadd.f32 0.0, %v513
  %v515 = vpop.f32.mrb[0].mxu0
  %v516 = vpop.f32.mrb[0].mxu0
  %v517 = vadd.f32 0.0, %v516
  %v518 = vpop.f32.mrb[0].mxu0
  %519 = vmatprep.mubr.bf16.mxu0 0
  %520 = vmatmul.mubr.bf16.gmra.mrb[0].mxu0 %v242
  %v521 = vpop.f32.mrb[0].mxu0
  %v522 = vadd.f32 0.0, %v521
  %v523 = vpop.f32.mrb[0].mxu0
  %v524 = vpop.f32.mrb[0].mxu0
  %v525 = vadd.f32 0.0, %v524
  %v526 = vpop.f32.mrb[0].mxu0
  %527 = vmatprep.mubr.bf16.mxu0 0
  %528 = vmatmul.mubr.bf16.gmra.mrb[0].mxu0 %v243
  %v529 = vpop.f32.mrb[0].mxu0
  %v530 = vadd.f32 0.0, %v529
  %v531 = vpop.f32.mrb[0].mxu0
  %v532 = vpop.f32.mrb[0].mxu0
  %v533 = vadd.f32 0.0, %v532
  %v534 = vpop.f32.mrb[0].mxu0
  %535 = vmatprep.mubr.bf16.mxu0 0
  %536 = vmatmul.mubr.bf16.gmra.mrb[0].mxu0 %v244
  %v537 = vpop.f32.mrb[0].mxu0
  %v538 = vadd.f32 0.0, %v537
  %v539 = vpop.f32.mrb[0].mxu0
  %v540 = vpop.f32.mrb[0].mxu0
  %v541 = vadd.f32 0.0, %v540
  %v542 = vpop.f32.mrb[0].mxu0
  %543 = vmatprep.mubr.bf16.mxu0 0
  %544 = vmatmul.mubr.bf16.gmra.mrb[0].mxu0 %v245
  %v545 = vpop.f32.mrb[0].mxu0
  %v546 = vadd.f32 0.0, %v545
  %v547 = vpop.f32.mrb[0].mxu0
  %v548 = vpop.f32.mrb[0].mxu0
  %v549 = vadd.f32 0.0, %v548
  %v550 = vpop.f32.mrb[0].mxu0
  %551 = vmatprep.mubr.bf16.mxu0 0
  %552 = vmatmul.mubr.bf16.gmra.mrb[0].mxu0 %v246
  %v553 = vpop.f32.mrb[0].mxu0
  %v554 = vadd.f32 0.0, %v553
  %v555 = vpop.f32.mrb[0].mxu0
  %v556 = vpop.f32.mrb[0].mxu0
  %v557 = vadd.f32 0.0, %v556
  %v558 = vpop.f32.mrb[0].mxu0
  %559 = vmatprep.mubr.bf16.mxu0 0
  %560 = vmatmul.mubr.bf16.gmra.mrb[0].mxu0 %v247
  %v561 = vpop.f32.mrb[0].mxu0
  %v562 = vadd.f32 0.0, %v561
  %v563 = vpop.f32.mrb[0].mxu0
  %v564 = vpop.f32.mrb[0].mxu0
  %v565 = vadd.f32 0.0, %v564
  %v566 = vpop.f32.mrb[0].mxu0
  %567 = vmatprep.mubr.bf16.mxu0 0
  %568 = vmatmul.mubr.bf16.gmra.mrb[0].mxu0 %v248
  %v569 = vpop.f32.mrb[0].mxu0
  %v570 = vadd.f32 0.0, %v569
  %v571 = vpop.f32.mrb[0].mxu0
  %v572 = vpop.f32.mrb[0].mxu0
  %v573 = vadd.f32 0.0, %v572
  %v574 = vpop.f32.mrb[0].mxu0
  %575 = vmatprep.mubr.bf16.mxu0 0
  %576 = vmatmul.mubr.bf16.gmra.mrb[0].mxu0 %v249
  %v577 = vpop.f32.mrb[0].mxu0
  %v578 = vadd.f32 0.0, %v577
  %v579 = vpop.f32.mrb[0].mxu0
  %v580 = vpop.f32.mrb[0].mxu0
  %v581 = vadd.f32 0.0, %v580
  %v582 = vpop.f32.mrb[0].mxu0
  %583 = vmatprep.mubr.bf16.mxu0 0
  %584 = vmatmul.mubr.bf16.gmra.mrb[0].mxu0 %v250
  %v585 = vpop.f32.mrb[0].mxu0
  %v586 = vadd.f32 0.0, %v585
  %v587 = vpop.f32.mrb[0].mxu0
  %v588 = vpop.f32.mrb[0].mxu0
  %v589 = vadd.f32 0.0, %v588
  %v590 = vpop.f32.mrb[0].mxu0
  %591 = vmatprep.mubr.bf16.mxu0 0
  %592 = vmatmul.mubr.bf16.gmra.mrb[0].mxu0 %v251
  %v593 = vpop.f32.mrb[0].mxu0
  %v594 = vadd.f32 0.0, %v593
  %v595 = vpop.f32.mrb[0].mxu0
  %v596 = vpop.f32.mrb[0].mxu0
  %v597 = vadd.f32 0.0, %v596
  %v598 = vpop.f32.mrb[0].mxu0
  %599 = vmatprep.mubr.bf16.mxu0 0
  %600 = vmatmul.mubr.bf16.gmra.mrb[0].mxu0 %v252
  %v601 = vpop.f32.mrb[0].mxu0
  %v602 = vadd.f32 0.0, %v601
  %v603 = vpop.f32.mrb[0].mxu0
  %v604 = vpop.f32.mrb[0].mxu0
  %v605 = vadd.f32 0.0, %v604
  %v606 = vpop.f32.mrb[0].mxu0
  %607 = vmatprep.mubr.bf16.mxu0 0
  %608 = vmatmul.mubr.bf16.gmra.mrb[0].mxu0 %v253
  %v609 = vpop.f32.mrb[0].mxu0
  %v610 = vadd.f32 0.0, %v609
  %v611 = vpop.f32.mrb[0].mxu0
  %v612 = vpop.f32.mrb[0].mxu0
  %v613 = vadd.f32 0.0, %v612
  %v614 = vpop.f32.mrb[0].mxu0
  %615 = vmatprep.mubr.bf16.mxu0 0
  %616 = vmatmul.mubr.bf16.gmra.mrb[0].mxu0 %v254
  %v617 = vpop.f32.mrb[0].mxu0
  %v618 = vadd.f32 0.0, %v617
  %v619 = vpop.f32.mrb[0].mxu0
  %v620 = vpop.f32.mrb[0].mxu0
  %v621 = vadd.f32 0.0, %v620
  %v622 = vpop.f32.mrb[0].mxu0
  %623 = vdwg.mxu0
  %v624 = vadd.f32 %v370, %v373
  %v625 = vadd.f32 %v624, %v378
  %v626 = vadd.f32 %v625, %v381
  %v627 = vadd.f32 %v626, %v386
  %v628 = vadd.f32 %v627, %v389
  %v629 = vadd.f32 %v628, %v394
  %v630 = vadd.f32 %v629, %v397
  %v631 = vadd.f32 %v630, %v402
  %v632 = vadd.f32 %v631, %v405
  %v633 = vadd.f32 %v632, %v410
  %v634 = vadd.f32 %v633, %v413
  %v635 = vadd.f32 %v634, %v418
  %v636 = vadd.f32 %v635, %v421
  %v637 = vadd.f32 %v636, %v426
  %v638 = vadd.f32 %v637, %v429
  %v639 = vadd.f32 %v638, %v434
  %v640 = vadd.f32 %v639, %v437
  %v641 = vadd.f32 %v640, %v442
  %v642 = vadd.f32 %v641, %v445
  %v643 = vadd.f32 %v642, %v450
  %v644 = vadd.f32 %v643, %v453
  %v645 = vadd.f32 %v644, %v458
  %v646 = vadd.f32 %v645, %v461
  %v647 = vadd.f32 %v646, %v466
  %v648 = vadd.f32 %v647, %v469
  %v649 = vadd.f32 %v648, %v474
  %v650 = vadd.f32 %v649, %v477
  %v651 = vadd.f32 %v650, %v482
  %v652 = vadd.f32 %v651, %v485
  %v653 = vadd.f32 %v652, %v490
  %v654 = vadd.f32 %v653, %v493
  %v655 = vadd.f32 %v654, %v498
  %v656 = vadd.f32 %v655, %v501
  %v657 = vadd.f32 %v656, %v506
  %v658 = vadd.f32 %v657, %v509
  %v659 = vadd.f32 %v658, %v514
  %v660 = vadd.f32 %v659, %v517
  %v661 = vadd.f32 %v660, %v522
  %v662 = vadd.f32 %v661, %v525
  %v663 = vadd.f32 %v662, %v530
  %v664 = vadd.f32 %v663, %v533
  %v665 = vadd.f32 %v664, %v538
  %v666 = vadd.f32 %v665, %v541
  %v667 = vadd.f32 %v666, %v546
  %v668 = vadd.f32 %v667, %v549
  %v669 = vadd.f32 %v668, %v554
  %v670 = vadd.f32 %v669, %v557
  %v671 = vadd.f32 %v670, %v562
  %v672 = vadd.f32 %v671, %v565
  %v673 = vadd.f32 %v672, %v570
  %v674 = vadd.f32 %v673, %v573
  %v675 = vadd.f32 %v674, %v578
  %v676 = vadd.f32 %v675, %v581
  %v677 = vadd.f32 %v676, %v586
  %v678 = vadd.f32 %v677, %v589
  %v679 = vadd.f32 %v678, %v594
  %v680 = vadd.f32 %v679, %v597
  %v681 = vadd.f32 %v680, %v602
  %v682 = vadd.f32 %v681, %v605
  %v683 = vadd.f32 %v682, %v610
  %v684 = vadd.f32 %v683, %v613
  %v685 = vadd.f32 %v684, %v618
  %v686 = vadd.f32 %v685, %v621
  %v687 = vrot.slane %v686, 4
  %v688 = vadd.f32 %v686, %v687
  %v689 = vrot.slane %v688, 2
  %v690 = vadd.f32 %v688, %v689
  %v691 = vrot.slane %v690, 1
  %v692 = vadd.f32 %v690, %v691
  %693 = vst [vmem:[%s3] sm:$0x1] %v692
  %v694 = vmul.f32 %v370, %v370
  %v695 = vmul.f32 %v373, %v373
  %v696 = vmul.f32 %v378, %v378
  %v697 = vmul.f32 %v381, %v381
  %v698 = vmul.f32 %v386, %v386
  %v699 = vmul.f32 %v389, %v389
  %v700 = vmul.f32 %v394, %v394
  %v701 = vmul.f32 %v397, %v397
  %v702 = vmul.f32 %v402, %v402
  %v703 = vmul.f32 %v405, %v405
  %v704 = vmul.f32 %v410, %v410
  %v705 = vmul.f32 %v413, %v413
  %v706 = vmul.f32 %v418, %v418
  %v707 = vmul.f32 %v421, %v421
  %v708 = vmul.f32 %v426, %v426
  %v709 = vmul.f32 %v429, %v429
  %v710 = vmul.f32 %v434, %v434
  %v711 = vmul.f32 %v437, %v437
  %v712 = vmul.f32 %v442, %v442
  %v713 = vmul.f32 %v445, %v445
  %v714 = vmul.f32 %v450, %v450
  %v715 = vmul.f32 %v453, %v453
  %v716 = vmul.f32 %v458, %v458
  %v717 = vmul.f32 %v461, %v461
  %v718 = vmul.f32 %v466, %v466
  %v719 = vmul.f32 %v469, %v469
  %v720 = vmul.f32 %v474, %v474
  %v721 = vmul.f32 %v477, %v477
  %v722 = vmul.f32 %v482, %v482
  %v723 = vmul.f32 %v485, %v485
  %v724 = vmul.f32 %v490, %v490
  %v725 = vmul.f32 %v493, %v493
  %v726 = vmul.f32 %v498, %v498
  %v727 = vmul.f32 %v501, %v501
  %v728 = vmul.f32 %v506, %v506
  %v729 = vmul.f32 %v509, %v509
  %v730 = vmul.f32 %v514, %v514
  %v731 = vmul.f32 %v517, %v517
  %v732 = vmul.f32 %v522, %v522
  %v733 = vmul.f32 %v525, %v525
  %v734 = vmul.f32 %v530, %v530
  %v735 = vmul.f32 %v533, %v533
  %v736 = vmul.f32 %v538, %v538
  %v737 = vmul.f32 %v541, %v541
  %v738 = vmul.f32 %v546, %v546
  %v739 = vmul.f32 %v549, %v549
  %v740 = vmul.f32 %v554, %v554
  %v741 = vmul.f32 %v557, %v557
  %v742 = vmul.f32 %v562, %v562
  %v743 = vmul.f32 %v565, %v565
  %v744 = vmul.f32 %v570, %v570
  %v745 = vmul.f32 %v573, %v573
  %v746 = vmul.f32 %v578, %v578
  %v747 = vmul.f32 %v581, %v581
  %v748 = vmul.f32 %v586, %v586
  %v749 = vmul.f32 %v589, %v589
  %v750 = vmul.f32 %v594, %v594
  %v751 = vmul.f32 %v597, %v597
  %v752 = vmul.f32 %v602, %v602
  %v753 = vmul.f32 %v605, %v605
  %v754 = vmul.f32 %v610, %v610
  %v755 = vmul.f32 %v613, %v613
  %v756 = vmul.f32 %v618, %v618
  %v757 = vmul.f32 %v621, %v621
  %v758 = vadd.f32 %v694, %v695
  %v759 = vadd.f32 %v758, %v696
  %v760 = vadd.f32 %v759, %v697
  %v761 = vadd.f32 %v760, %v698
  %v762 = vadd.f32 %v761, %v699
  %v763 = vadd.f32 %v762, %v700
  %v764 = vadd.f32 %v763, %v701
  %v765 = vadd.f32 %v764, %v702
  %v766 = vadd.f32 %v765, %v703
  %v767 = vadd.f32 %v766, %v704
  %v768 = vadd.f32 %v767, %v705
  %v769 = vadd.f32 %v768, %v706
  %v770 = vadd.f32 %v769, %v707
  %v771 = vadd.f32 %v770, %v708
  %v772 = vadd.f32 %v771, %v709
  %v773 = vadd.f32 %v772, %v710
  %v774 = vadd.f32 %v773, %v711
  %v775 = vadd.f32 %v774, %v712
  %v776 = vadd.f32 %v775, %v713
  %v777 = vadd.f32 %v776, %v714
  %v778 = vadd.f32 %v777, %v715
  %v779 = vadd.f32 %v778, %v716
  %v780 = vadd.f32 %v779, %v717
  %v781 = vadd.f32 %v780, %v718
  %v782 = vadd.f32 %v781, %v719
  %v783 = vadd.f32 %v782, %v720
  %v784 = vadd.f32 %v783, %v721
  %v785 = vadd.f32 %v784, %v722
  %v786 = vadd.f32 %v785, %v723
  %v787 = vadd.f32 %v786, %v724
  %v788 = vadd.f32 %v787, %v725
  %v789 = vadd.f32 %v788, %v726
  %v790 = vadd.f32 %v789, %v727
  %v791 = vadd.f32 %v790, %v728
  %v792 = vadd.f32 %v791, %v729
  %v793 = vadd.f32 %v792, %v730
  %v794 = vadd.f32 %v793, %v731
  %v795 = vadd.f32 %v794, %v732
  %v796 = vadd.f32 %v795, %v733
  %v797 = vadd.f32 %v796, %v734
  %v798 = vadd.f32 %v797, %v735
  %v799 = vadd.f32 %v798, %v736
  %v800 = vadd.f32 %v799, %v737
  %v801 = vadd.f32 %v800, %v738
  %v802 = vadd.f32 %v801, %v739
  %v803 = vadd.f32 %v802, %v740
  %v804 = vadd.f32 %v803, %v741
  %v805 = vadd.f32 %v804, %v742
  %v806 = vadd.f32 %v805, %v743
  %v807 = vadd.f32 %v806, %v744
  %v808 = vadd.f32 %v807, %v745
  %v809 = vadd.f32 %v808, %v746
  %v810 = vadd.f32 %v809, %v747
  %v811 = vadd.f32 %v810, %v748
  %v812 = vadd.f32 %v811, %v749
  %v813 = vadd.f32 %v812, %v750
  %v814 = vadd.f32 %v813, %v751
  %v815 = vadd.f32 %v814, %v752
  %v816 = vadd.f32 %v815, %v753
  %v817 = vadd.f32 %v816, %v754
  %v818 = vadd.f32 %v817, %v755
  %v819 = vadd.f32 %v818, %v756
  %v820 = vadd.f32 %v819, %v757
  %v821 = vrot.slane %v820, 4
  %v822 = vadd.f32 %v820, %v821
  %v823 = vrot.slane %v822, 2
  %v824 = vadd.f32 %v822, %v823
  %v825 = vrot.slane %v824, 1
  %v826 = vadd.f32 %v824, %v825
  %827 = vst [vmem:[%s4] sm:$0x1] %v826
  %v828 = vpack.c.bf16 %v373, %v370
  %v829 = vpack.c.bf16 %v381, %v378
  %v830 = vpack.c.bf16 %v389, %v386
  %v831 = vpack.c.bf16 %v397, %v394
  %v832 = vpack.c.bf16 %v405, %v402
  %v833 = vpack.c.bf16 %v413, %v410
  %v834 = vpack.c.bf16 %v421, %v418
  %v835 = vpack.c.bf16 %v429, %v426
  %v836 = vpack.c.bf16 %v437, %v434
  %v837 = vpack.c.bf16 %v445, %v442
  %v838 = vpack.c.bf16 %v453, %v450
  %v839 = vpack.c.bf16 %v461, %v458
  %v840 = vpack.c.bf16 %v469, %v466
  %v841 = vpack.c.bf16 %v477, %v474
  %v842 = vpack.c.bf16 %v485, %v482
  %v843 = vpack.c.bf16 %v493, %v490
  %v844 = vpack.c.bf16 %v501, %v498
  %v845 = vpack.c.bf16 %v509, %v506
  %v846 = vpack.c.bf16 %v517, %v514
  %v847 = vpack.c.bf16 %v525, %v522
  %v848 = vpack.c.bf16 %v533, %v530
  %v849 = vpack.c.bf16 %v541, %v538
  %v850 = vpack.c.bf16 %v549, %v546
  %v851 = vpack.c.bf16 %v557, %v554
  %v852 = vpack.c.bf16 %v565, %v562
  %v853 = vpack.c.bf16 %v573, %v570
  %v854 = vpack.c.bf16 %v581, %v578
  %v855 = vpack.c.bf16 %v589, %v586
  %v856 = vpack.c.bf16 %v597, %v594
  %v857 = vpack.c.bf16 %v605, %v602
  %v858 = vpack.c.bf16 %v613, %v610
  %v859 = vpack.c.bf16 %v621, %v618
  %v892 = vunpack.c.l.b16 %v828
  %v893 = vunpack.c.h.b16 %v828
  %v894 = vunpack.c.l.b16 %v829
  %v895 = vunpack.c.h.b16 %v829
  %v896 = vunpack.c.l.b16 %v830
  %v897 = vunpack.c.h.b16 %v830
  %v898 = vunpack.c.l.b16 %v831
  %v899 = vunpack.c.h.b16 %v831
  %v900 = vunpack.c.l.b16 %v832
  %v901 = vunpack.c.h.b16 %v832
  %v902 = vunpack.c.l.b16 %v833
  %v903 = vunpack.c.h.b16 %v833
  %v904 = vunpack.c.l.b16 %v834
  %v905 = vunpack.c.h.b16 %v834
  %v906 = vunpack.c.l.b16 %v835
  %v907 = vunpack.c.h.b16 %v835
  %v908 = vunpack.c.l.b16 %v836
  %v909 = vunpack.c.h.b16 %v836
  %v910 = vunpack.c.l.b16 %v837
  %v911 = vunpack.c.h.b16 %v837
  %v912 = vunpack.c.l.b16 %v838
  %v913 = vunpack.c.h.b16 %v838
  %v914 = vunpack.c.l.b16 %v839
  %v915 = vunpack.c.h.b16 %v839
  %v916 = vunpack.c.l.b16 %v840
  %v917 = vunpack.c.h.b16 %v840
  %v918 = vunpack.c.l.b16 %v841
  %v919 = vunpack.c.h.b16 %v841
  %v920 = vunpack.c.l.b16 %v842
  %v921 = vunpack.c.h.b16 %v842
  %v922 = vunpack.c.l.b16 %v843
  %v923 = vunpack.c.h.b16 %v843
  %v924 = vunpack.c.l.b16 %v844
  %v925 = vunpack.c.h.b16 %v844
  %v926 = vunpack.c.l.b16 %v845
  %v927 = vunpack.c.h.b16 %v845
  %v928 = vunpack.c.l.b16 %v846
  %v929 = vunpack.c.h.b16 %v846
  %v930 = vunpack.c.l.b16 %v847
  %v931 = vunpack.c.h.b16 %v847
  %v932 = vunpack.c.l.b16 %v848
  %v933 = vunpack.c.h.b16 %v848
  %v934 = vunpack.c.l.b16 %v849
  %v935 = vunpack.c.h.b16 %v849
  %v936 = vunpack.c.l.b16 %v850
  %v937 = vunpack.c.h.b16 %v850
  %v938 = vunpack.c.l.b16 %v851
  %v939 = vunpack.c.h.b16 %v851
  %v940 = vunpack.c.l.b16 %v852
  %v941 = vunpack.c.h.b16 %v852
  %v942 = vunpack.c.l.b16 %v853
  %v943 = vunpack.c.h.b16 %v853
  %v944 = vunpack.c.l.b16 %v854
  %v945 = vunpack.c.h.b16 %v854
  %v946 = vunpack.c.l.b16 %v855
  %v947 = vunpack.c.h.b16 %v855
  %v948 = vunpack.c.l.b16 %v856
  %v949 = vunpack.c.h.b16 %v856
  %v950 = vunpack.c.l.b16 %v857
  %v951 = vunpack.c.h.b16 %v857
  %v952 = vunpack.c.l.b16 %v858
  %v953 = vunpack.c.h.b16 %v858
  %v954 = vunpack.c.l.b16 %v859
  %v955 = vunpack.c.h.b16 %v859
  %v956 = vpack.c.b16 %v892, %v892
  %v957 = vpack.c.b16 %v893, %v893
  %v958 = vpack.c.b16 %v894, %v894
  %v959 = vpack.c.b16 %v895, %v895
  %v960 = vpack.c.b16 %v896, %v896
  %v961 = vpack.c.b16 %v897, %v897
  %v962 = vpack.c.b16 %v898, %v898
  %v963 = vpack.c.b16 %v899, %v899
  %v964 = vpack.c.b16 %v900, %v900
  %v965 = vpack.c.b16 %v901, %v901
  %v966 = vpack.c.b16 %v902, %v902
  %v967 = vpack.c.b16 %v903, %v903
  %v968 = vpack.c.b16 %v904, %v904
  %v969 = vpack.c.b16 %v905, %v905
  %v970 = vpack.c.b16 %v906, %v906
  %v971 = vpack.c.b16 %v907, %v907
  %v972 = vpack.c.b16 %v908, %v908
  %v973 = vpack.c.b16 %v909, %v909
  %v974 = vpack.c.b16 %v910, %v910
  %v975 = vpack.c.b16 %v911, %v911
  %v976 = vpack.c.b16 %v912, %v912
  %v977 = vpack.c.b16 %v913, %v913
  %v978 = vpack.c.b16 %v914, %v914
  %v979 = vpack.c.b16 %v915, %v915
  %v980 = vpack.c.b16 %v916, %v916
  %v981 = vpack.c.b16 %v917, %v917
  %v982 = vpack.c.b16 %v918, %v918
  %v983 = vpack.c.b16 %v919, %v919
  %v984 = vpack.c.b16 %v920, %v920
  %v985 = vpack.c.b16 %v921, %v921
  %v986 = vpack.c.b16 %v922, %v922
  %v987 = vpack.c.b16 %v923, %v923
  %v988 = vpack.c.b16 %v924, %v924
  %v989 = vpack.c.b16 %v925, %v925
  %v990 = vpack.c.b16 %v926, %v926
  %v991 = vpack.c.b16 %v927, %v927
  %v992 = vpack.c.b16 %v928, %v928
  %v993 = vpack.c.b16 %v929, %v929
  %v994 = vpack.c.b16 %v930, %v930
  %v995 = vpack.c.b16 %v931, %v931
  %v996 = vpack.c.b16 %v932, %v932
  %v997 = vpack.c.b16 %v933, %v933
  %v998 = vpack.c.b16 %v934, %v934
  %v999 = vpack.c.b16 %v935, %v935
  %v1000 = vpack.c.b16 %v936, %v936
  %v1001 = vpack.c.b16 %v937, %v937
  %v1002 = vpack.c.b16 %v938, %v938
  %v1003 = vpack.c.b16 %v939, %v939
  %v1004 = vpack.c.b16 %v940, %v940
  %v1005 = vpack.c.b16 %v941, %v941
  %v1006 = vpack.c.b16 %v942, %v942
  %v1007 = vpack.c.b16 %v943, %v943
  %v1008 = vpack.c.b16 %v944, %v944
  %v1009 = vpack.c.b16 %v945, %v945
  %v1010 = vpack.c.b16 %v946, %v946
  %v1011 = vpack.c.b16 %v947, %v947
  %v1012 = vpack.c.b16 %v948, %v948
  %v1013 = vpack.c.b16 %v949, %v949
  %v1014 = vpack.c.b16 %v950, %v950
  %v1015 = vpack.c.b16 %v951, %v951
  %v1016 = vpack.c.b16 %v952, %v952
  %v1017 = vpack.c.b16 %v953, %v953
  %v1018 = vpack.c.b16 %v954, %v954
  %v1019 = vpack.c.b16 %v955, %v955
  %1084 = vst [vmem:[%s2] sm:$0xf] %v956
  %1085 = vst [vmem:[%s2 + $0x4] sm:$0xf] %v957
  %1086 = vst [vmem:[%s2 + $0x8] sm:$0xf] %v958
  %1087 = vst [vmem:[%s2 + $0xc] sm:$0xf] %v959
  %1088 = vst [vmem:[%s2 + $0x10] sm:$0xf] %v960
  %1089 = vst [vmem:[%s2 + $0x14] sm:$0xf] %v961
  %1090 = vst [vmem:[%s2 + $0x18] sm:$0xf] %v962
  %1091 = vst [vmem:[%s2 + $0x1c] sm:$0xf] %v963
  %1092 = vst [vmem:[%s2 + $0x20] sm:$0xf] %v964
  %1093 = vst [vmem:[%s2 + $0x24] sm:$0xf] %v965
  %1094 = vst [vmem:[%s2 + $0x28] sm:$0xf] %v966
  %1095 = vst [vmem:[%s2 + $0x2c] sm:$0xf] %v967
  %1096 = vst [vmem:[%s2 + $0x30] sm:$0xf] %v968
  %1097 = vst [vmem:[%s2 + $0x34] sm:$0xf] %v969
  %1098 = vst [vmem:[%s2 + $0x38] sm:$0xf] %v970
  %1099 = vst [vmem:[%s2 + $0x3c] sm:$0xf] %v971
  %1100 = vst [vmem:[%s2 + $0x40] sm:$0xf] %v972
  %1101 = vst [vmem:[%s2 + $0x44] sm:$0xf] %v973
  %1102 = vst [vmem:[%s2 + $0x48] sm:$0xf] %v974
  %1103 = vst [vmem:[%s2 + $0x4c] sm:$0xf] %v975
  %1104 = vst [vmem:[%s2 + $0x50] sm:$0xf] %v976
  %1105 = vst [vmem:[%s2 + $0x54] sm:$0xf] %v977
  %1106 = vst [vmem:[%s2 + $0x58] sm:$0xf] %v978
  %1107 = vst [vmem:[%s2 + $0x5c] sm:$0xf] %v979
  %1108 = vst [vmem:[%s2 + $0x60] sm:$0xf] %v980
  %1109 = vst [vmem:[%s2 + $0x64] sm:$0xf] %v981
  %1110 = vst [vmem:[%s2 + $0x68] sm:$0xf] %v982
  %1111 = vst [vmem:[%s2 + $0x6c] sm:$0xf] %v983
  %1112 = vst [vmem:[%s2 + $0x70] sm:$0xf] %v984
  %1113 = vst [vmem:[%s2 + $0x74] sm:$0xf] %v985
  %1114 = vst [vmem:[%s2 + $0x78] sm:$0xf] %v986
  %1115 = vst [vmem:[%s2 + $0x7c] sm:$0xf] %v987
  %1116 = vst [vmem:[%s2 + $0x80] sm:$0xf] %v988
  %1117 = vst [vmem:[%s2 + $0x84] sm:$0xf] %v989
  %1118 = vst [vmem:[%s2 + $0x88] sm:$0xf] %v990
  %1119 = vst [vmem:[%s2 + $0x8c] sm:$0xf] %v991
  %1120 = vst [vmem:[%s2 + $0x90] sm:$0xf] %v992
  %1121 = vst [vmem:[%s2 + $0x94] sm:$0xf] %v993
  %1122 = vst [vmem:[%s2 + $0x98] sm:$0xf] %v994
  %1123 = vst [vmem:[%s2 + $0x9c] sm:$0xf] %v995
  %1124 = vst [vmem:[%s2 + $0xa0] sm:$0xf] %v996
  %1125 = vst [vmem:[%s2 + $0xa4] sm:$0xf] %v997
  %1126 = vst [vmem:[%s2 + $0xa8] sm:$0xf] %v998
  %1127 = vst [vmem:[%s2 + $0xac] sm:$0xf] %v999
  %1128 = vst [vmem:[%s2 + $0xb0] sm:$0xf] %v1000
  %1129 = vst [vmem:[%s2 + $0xb4] sm:$0xf] %v1001
  %1130 = vst [vmem:[%s2 + $0xb8] sm:$0xf] %v1002
  %1131 = vst [vmem:[%s2 + $0xbc] sm:$0xf] %v1003
  %1132 = vst [vmem:[%s2 + $0xc0] sm:$0xf] %v1004
  %1133 = vst [vmem:[%s2 + $0xc4] sm:$0xf] %v1005
  %1134 = vst [vmem:[%s2 + $0xc8] sm:$0xf] %v1006
  %1135 = vst [vmem:[%s2 + $0xcc] sm:$0xf] %v1007
  %1136 = vst [vmem:[%s2 + $0xd0] sm:$0xf] %v1008
  %1137 = vst [vmem:[%s2 + $0xd4] sm:$0xf] %v1009
  %1138 = vst [vmem:[%s2 + $0xd8] sm:$0xf] %v1010
  %1139 = vst [vmem:[%s2 + $0xdc] sm:$0xf] %v1011
  %1140 = vst [vmem:[%s2 + $0xe0] sm:$0xf] %v1012
  %1141 = vst [vmem:[%s2 + $0xe4] sm:$0xf] %v1013
  %1142 = vst [vmem:[%s2 + $0xe8] sm:$0xf] %v1014
  %1143 = vst [vmem:[%s2 + $0xec] sm:$0xf] %v1015
  %1144 = vst [vmem:[%s2 + $0xf0] sm:$0xf] %v1016
  %1145 = vst [vmem:[%s2 + $0xf4] sm:$0xf] %v1017
  %1146 = vst [vmem:[%s2 + $0xf8] sm:$0xf] %v1018
  %1147 = vst [vmem:[%s2 + $0xfc] sm:$0xf] %v1019
  // Predicated region
  $region10: #{net_e_forward.8} parent=0 // pred_check
    _
  $region11: #{net_e_forward.8} parent=0 // pred_check_branch
    %1149 = sbr.rel (0) target = $region13
  $region12: #{net_e_forward.8} parent=0 // pred_region
    _
  $region13: #{net_e_forward.8} parent=0 // pred_fallthru
    _
  // Predicated region
  $region14: #{net_e_forward.8} parent=0 // pred_check
    _
  $region15: #{net_e_forward.8} parent=0 // pred_check_branch
    %1151 = sbr.rel (0) target = $region17
  $region16: #{net_e_forward.8} parent=0 // pred_region
    _
  $region17: #{net_e_forward.8} parent=0 // pred_fallthru
    _
  // Predicated region
  $region18: #{net_e_forward.8} parent=0 // pred_check
    _
  $region19: #{net_e_forward.8} parent=0 // pred_check_branch
    %1153 = sbr.rel (0) target = $region21
  $region20: #{net_e_forward.8} parent=0 // pred_region
    _
  $region21: #{net_e_forward.8} parent=0 // pred_fallthru
    _
  // Predicated region
  $region22: #{net_e_forward.8} parent=0 // pred_check
    _
  $region23: #{net_e_forward.8} parent=0 // pred_check_branch
    %1155 = sbr.rel (0) target = $region25
  $region24: #{net_e_forward.8} parent=0 // pred_region
    _
  $region25: #{net_e_forward.8} parent=0 // pred_fallthru
    _
  // Predicated region
  $region26: #{net_e_forward.8} parent=0 // pred_check
    _
  $region27: #{net_e_forward.8} parent=0 // pred_check_branch
    %1157 = sbr.rel (0) target = $region29
  $region28: #{net_e_forward.8} parent=0 // pred_region
    _
  $region29: #{net_e_forward.8} parent=0 // pred_fallthru
    _
  // Predicated region
  $region30: #{net_e_forward.8} parent=0 // pred_check
    _
  $region31: #{net_e_forward.8} parent=0 // pred_check_branch
    %1159 = sbr.rel (0) target = $region33
  $region32: #{net_e_forward.8} parent=0 // pred_region
    _
  $region33: #{net_e_forward.8} parent=0 // pred_fallthru
    _

// kernel: net_e_forward.9
$region0: #{net_e_forward.9}
  #allocation0 [shape = 'u32[]', space=smem, size = 0x4, offset = 0x4, fixed_abs, tag = 'smem constant byte address 0x4 - core index']
  #allocation1 [shape = 'u32[144,128]{1,0:T(1,128)}', space=vmem, size = 0x12000, scoped, tag = 'internal scratch']
  %s0 = inlined_call_operand.vmem [shape: bf16[128,256], index: 0, kind: input, shape index: {}]
  %s1 = inlined_call_operand.vmem [shape: bf16[256,128], index: 1, kind: input, shape index: {}]
  %s2 = inlined_call_operand.vmem [shape: bf16[128,128], index: 2, kind: output, shape index: {0}]
  %s3 = inlined_call_operand.vmem [shape: f32[1,1,128], index: 3, kind: output, shape index: {1}]
  %s4 = inlined_call_operand.vmem [shape: f32[1,1,128], index: 4, kind: output, shape index: {2}]
  %5 = xla_tuple %s2, %s3, %s4
  %s6 = sld [smem:[#allocation0]]
  $region34: #{net_e_forward.9} parent=0
    _
  %s8 = ssub.s32 1, %s6
  %s9 = scalar_select 0, %s8, %s6
  // Predicated region
  $region2: #{net_e_forward.9} parent=0 // pred_check
    _
  $region3: #{net_e_forward.9} parent=0 // pred_check_branch
    %11 = sbr.rel (0) target = $region5
  $region4: #{net_e_forward.9} parent=0 // pred_region
    _
  $region5: #{net_e_forward.9} parent=0 // pred_fallthru
    _
  // Predicated region
  $region6: #{net_e_forward.9} parent=0 // pred_check
    _
  $region7: #{net_e_forward.9} parent=0 // pred_check_branch
    %13 = sbr.rel (0) target = $region9
  $region8: #{net_e_forward.9} parent=0 // pred_region
    _
  $region9: #{net_e_forward.9} parent=0 // pred_fallthru
    _
  %v15 = vld [vmem:[%s0] sm:$0xff]
  %v16 = vld [vmem:[%s0 + $0x8] sm:$0xff]
  %v17 = vld [vmem:[%s0 + $0x10] sm:$0xff]
  %v18 = vld [vmem:[%s0 + $0x18] sm:$0xff]
  %v19 = vld [vmem:[%s0 + $0x20] sm:$0xff]
  %v20 = vld [vmem:[%s0 + $0x28] sm:$0xff]
  %v21 = vld [vmem:[%s0 + $0x30] sm:$0xff]
  %v22 = vld [vmem:[%s0 + $0x38] sm:$0xff]
  %v23 = vld [vmem:[%s0 + $0x40] sm:$0xff]
  %v24 = vld [vmem:[%s0 + $0x48] sm:$0xff]
  %v25 = vld [vmem:[%s0 + $0x50] sm:$0xff]
  %v26 = vld [vmem:[%s0 + $0x58] sm:$0xff]
  %v27 = vld [vmem:[%s0 + $0x60] sm:$0xff]
  %v28 = vld [vmem:[%s0 + $0x68] sm:$0xff]
  %v29 = vld [vmem:[%s0 + $0x70] sm:$0xff]
  %v30 = vld [vmem:[%s0 + $0x78] sm:$0xff]
  %v31 = vld [vmem:[%s1] sm:$0xf]
  %v32 = vld [vmem:[%s1 + $0x4] sm:$0xf]
  %v33 = vld [vmem:[%s1 + $0x8] sm:$0xf]
  %v34 = vld [vmem:[%s1 + $0xc] sm:$0xf]
  %v35 = vld [vmem:[%s1 + $0x10] sm:$0xf]
  %v36 = vld [vmem:[%s1 + $0x14] sm:$0xf]
  %v37 = vld [vmem:[%s1 + $0x18] sm:$0xf]
  %v38 = vld [vmem:[%s1 + $0x1c] sm:$0xf]
  %v39 = vld [vmem:[%s1 + $0x20] sm:$0xf]
  %v40 = vld [vmem:[%s1 + $0x24] sm:$0xf]
  %v41 = vld [vmem:[%s1 + $0x28] sm:$0xf]
  %v42 = vld [vmem:[%s1 + $0x2c] sm:$0xf]
  %v43 = vld [vmem:[%s1 + $0x30] sm:$0xf]
  %v44 = vld [vmem:[%s1 + $0x34] sm:$0xf]
  %v45 = vld [vmem:[%s1 + $0x38] sm:$0xf]
  %v46 = vld [vmem:[%s1 + $0x3c] sm:$0xf]
  %v47 = vld [vmem:[%s1 + $0x40] sm:$0xf]
  %v48 = vld [vmem:[%s1 + $0x44] sm:$0xf]
  %v49 = vld [vmem:[%s1 + $0x48] sm:$0xf]
  %v50 = vld [vmem:[%s1 + $0x4c] sm:$0xf]
  %v51 = vld [vmem:[%s1 + $0x50] sm:$0xf]
  %v52 = vld [vmem:[%s1 + $0x54] sm:$0xf]
  %v53 = vld [vmem:[%s1 + $0x58] sm:$0xf]
  %v54 = vld [vmem:[%s1 + $0x5c] sm:$0xf]
  %v55 = vld [vmem:[%s1 + $0x60] sm:$0xf]
  %v56 = vld [vmem:[%s1 + $0x64] sm:$0xf]
  %v57 = vld [vmem:[%s1 + $0x68] sm:$0xf]
  %v58 = vld [vmem:[%s1 + $0x6c] sm:$0xf]
  %v59 = vld [vmem:[%s1 + $0x70] sm:$0xf]
  %v60 = vld [vmem:[%s1 + $0x74] sm:$0xf]
  %v61 = vld [vmem:[%s1 + $0x78] sm:$0xf]
  %v62 = vld [vmem:[%s1 + $0x7c] sm:$0xf]
  %v79 = vunpack.c.l.b16 %v15
  %v80 = vunpack.c.h.b16 %v15
  %v81 = vunpack.c.l.b16 %v16
  %v82 = vunpack.c.h.b16 %v16
  %v83 = vunpack.c.l.b16 %v17
  %v84 = vunpack.c.h.b16 %v17
  %v85 = vunpack.c.l.b16 %v18
  %v86 = vunpack.c.h.b16 %v18
  %v87 = vunpack.c.l.b16 %v19
  %v88 = vunpack.c.h.b16 %v19
  %v89 = vunpack.c.l.b16 %v20
  %v90 = vunpack.c.h.b16 %v20
  %v91 = vunpack.c.l.b16 %v21
  %v92 = vunpack.c.h.b16 %v21
  %v93 = vunpack.c.l.b16 %v22
  %v94 = vunpack.c.h.b16 %v22
  %v95 = vunpack.c.l.b16 %v23
  %v96 = vunpack.c.h.b16 %v23
  %v97 = vunpack.c.l.b16 %v24
  %v98 = vunpack.c.h.b16 %v24
  %v99 = vunpack.c.l.b16 %v25
  %v100 = vunpack.c.h.b16 %v25
  %v101 = vunpack.c.l.b16 %v26
  %v102 = vunpack.c.h.b16 %v26
  %v103 = vunpack.c.l.b16 %v27
  %v104 = vunpack.c.h.b16 %v27
  %v105 = vunpack.c.l.b16 %v28
  %v106 = vunpack.c.h.b16 %v28
  %v107 = vunpack.c.l.b16 %v29
  %v108 = vunpack.c.h.b16 %v29
  %v109 = vunpack.c.l.b16 %v30
  %v110 = vunpack.c.h.b16 %v30
  %v111 = vpack.c.b16 %v81, %v79
  %v112 = vpack.c.b16 %v82, %v80
  %v113 = vpack.c.b16 %v85, %v83
  %v114 = vpack.c.b16 %v86, %v84
  %v115 = vpack.c.b16 %v89, %v87
  %v116 = vpack.c.b16 %v90, %v88
  %v117 = vpack.c.b16 %v93, %v91
  %v118 = vpack.c.b16 %v94, %v92
  %v119 = vpack.c.b16 %v97, %v95
  %v120 = vpack.c.b16 %v98, %v96
  %v121 = vpack.c.b16 %v101, %v99
  %v122 = vpack.c.b16 %v102, %v100
  %v123 = vpack.c.b16 %v105, %v103
  %v124 = vpack.c.b16 %v106, %v104
  %v125 = vpack.c.b16 %v109, %v107
  %v126 = vpack.c.b16 %v110, %v108
  %v175 = vunpack.c.l.b16 %v31
  %v176 = vunpack.c.l.b16 %v32
  %v177 = vunpack.c.l.b16 %v33
  %v178 = vunpack.c.l.b16 %v34
  %v179 = vunpack.c.l.b16 %v35
  %v180 = vunpack.c.l.b16 %v36
  %v181 = vunpack.c.l.b16 %v37
  %v182 = vunpack.c.l.b16 %v38
  %v183 = vunpack.c.l.b16 %v39
  %v184 = vunpack.c.l.b16 %v40
  %v185 = vunpack.c.l.b16 %v41
  %v186 = vunpack.c.l.b16 %v42
  %v187 = vunpack.c.l.b16 %v43
  %v188 = vunpack.c.l.b16 %v44
  %v189 = vunpack.c.l.b16 %v45
  %v190 = vunpack.c.l.b16 %v46
  %v191 = vunpack.c.l.b16 %v47
  %v192 = vunpack.c.l.b16 %v48
  %v193 = vunpack.c.l.b16 %v49
  %v194 = vunpack.c.l.b16 %v50
  %v195 = vunpack.c.l.b16 %v51
  %v196 = vunpack.c.l.b16 %v52
  %v197 = vunpack.c.l.b16 %v53
  %v198 = vunpack.c.l.b16 %v54
  %v199 = vunpack.c.l.b16 %v55
  %v200 = vunpack.c.l.b16 %v56
  %v201 = vunpack.c.l.b16 %v57
  %v202 = vunpack.c.l.b16 %v58
  %v203 = vunpack.c.l.b16 %v59
  %v204 = vunpack.c.l.b16 %v60
  %v205 = vunpack.c.l.b16 %v61
  %v206 = vunpack.c.l.b16 %v62
  %v207 = vpack.c.b16 %v176, %v175
  %v208 = vpack.c.b16 %v178, %v177
  %v209 = vpack.c.b16 %v180, %v179
  %v210 = vpack.c.b16 %v182, %v181
  %v211 = vpack.c.b16 %v184, %v183
  %v212 = vpack.c.b16 %v186, %v185
  %v213 = vpack.c.b16 %v188, %v187
  %v214 = vpack.c.b16 %v190, %v189
  %v215 = vpack.c.b16 %v192, %v191
  %v216 = vpack.c.b16 %v194, %v193
  %v217 = vpack.c.b16 %v196, %v195
  %v218 = vpack.c.b16 %v198, %v197
  %v219 = vpack.c.b16 %v200, %v199
  %v220 = vpack.c.b16 %v202, %v201
  %v221 = vpack.c.b16 %v204, %v203
  %v222 = vpack.c.b16 %v206, %v205
  %239 = vmatprep.subr.bf16.mxu0 0
  %240 = vmatpush1.bf16.msra.mxu0 %v207
  %241 = vmatprep.subr.bf16.mxu0 0
  %242 = vmatpush1.bf16.msra.mxu0 %v208
  %243 = vmatprep.subr.bf16.mxu0 0
  %244 = vmatpush1.bf16.msra.mxu0 %v209
  %245 = vmatprep.subr.bf16.mxu0 0
  %246 = vmatpush1.bf16.msra.mxu0 %v210
  %247 = vmatprep.subr.bf16.mxu0 0
  %248 = vmatpush1.bf16.msra.mxu0 %v211
  %249 = vmatprep.subr.bf16.mxu0 0
  %250 = vmatpush1.bf16.msra.mxu0 %v212
  %251 = vmatprep.subr.bf16.mxu0 0
  %252 = vmatpush1.bf16.msra.mxu0 %v213
  %253 = vmatprep.subr.bf16.mxu0 0
  %254 = vmatpush1.bf16.msra.mxu0 %v214
  %255 = vmatprep.subr.bf16.mxu0 0
  %256 = vmatpush1.bf16.msra.mxu0 %v215
  %257 = vmatprep.subr.bf16.mxu0 0
  %258 = vmatpush1.bf16.msra.mxu0 %v216
  %259 = vmatprep.subr.bf16.mxu0 0
  %260 = vmatpush1.bf16.msra.mxu0 %v217
  %261 = vmatprep.subr.bf16.mxu0 0
  %262 = vmatpush1.bf16.msra.mxu0 %v218
  %263 = vmatprep.subr.bf16.mxu0 0
  %264 = vmatpush1.bf16.msra.mxu0 %v219
  %265 = vmatprep.subr.bf16.mxu0 0
  %266 = vmatpush1.bf16.msra.mxu0 %v220
  %267 = vmatprep.subr.bf16.mxu0 0
  %268 = vmatpush1.bf16.msra.mxu0 %v221
  %269 = vmatprep.subr.bf16.mxu0 0
  %270 = vmatpush1.bf16.msra.mxu0 %v222
  %271 = vmatprep.mubr.bf16.mxu0 %v112
  %272 = vmatmul.mubr.bf16.gmra.mrb[0].mxu0 %v111
  %v273 = vpop.f32.mrb[0].mxu0
  %v274 = vadd.f32 0.0, %v273
  %v275 = vpop.f32.mrb[0].mxu0
  %v276 = vpop.f32.mrb[0].mxu0
  %v277 = vadd.f32 0.0, %v276
  %v278 = vpop.f32.mrb[0].mxu0
  %279 = vmatprep.mubr.bf16.mxu0 %v114
  %280 = vmatmul.mubr.bf16.gmra.mrb[0].mxu0 %v113
  %v281 = vpop.f32.mrb[0].mxu0
  %v282 = vadd.f32 0.0, %v281
  %v283 = vpop.f32.mrb[0].mxu0
  %v284 = vpop.f32.mrb[0].mxu0
  %v285 = vadd.f32 0.0, %v284
  %v286 = vpop.f32.mrb[0].mxu0
  %287 = vmatprep.mubr.bf16.mxu0 %v116
  %288 = vmatmul.mubr.bf16.gmra.mrb[0].mxu0 %v115
  %v289 = vpop.f32.mrb[0].mxu0
  %v290 = vadd.f32 0.0, %v289
  %v291 = vpop.f32.mrb[0].mxu0
  %v292 = vpop.f32.mrb[0].mxu0
  %v293 = vadd.f32 0.0, %v292
  %v294 = vpop.f32.mrb[0].mxu0
  %295 = vmatprep.mubr.bf16.mxu0 %v118
  %296 = vmatmul.mubr.bf16.gmra.mrb[0].mxu0 %v117
  %v297 = vpop.f32.mrb[0].mxu0
  %v298 = vadd.f32 0.0, %v297
  %v299 = vpop.f32.mrb[0].mxu0
  %v300 = vpop.f32.mrb[0].mxu0
  %v301 = vadd.f32 0.0, %v300
  %v302 = vpop.f32.mrb[0].mxu0
  %303 = vmatprep.mubr.bf16.mxu0 %v120
  %304 = vmatmul.mubr.bf16.gmra.mrb[0].mxu0 %v119
  %v305 = vpop.f32.mrb[0].mxu0
  %v306 = vadd.f32 0.0, %v305
  %v307 = vpop.f32.mrb[0].mxu0
  %v308 = vpop.f32.mrb[0].mxu0
  %v309 = vadd.f32 0.0, %v308
  %v310 = vpop.f32.mrb[0].mxu0
  %311 = vmatprep.mubr.bf16.mxu0 %v122
  %312 = vmatmul.mubr.bf16.gmra.mrb[0].mxu0 %v121
  %v313 = vpop.f32.mrb[0].mxu0
  %v314 = vadd.f32 0.0, %v313
  %v315 = vpop.f32.mrb[0].mxu0
  %v316 = vpop.f32.mrb[0].mxu0
  %v317 = vadd.f32 0.0, %v316
  %v318 = vpop.f32.mrb[0].mxu0
  %319 = vmatprep.mubr.bf16.mxu0 %v124
  %320 = vmatmul.mubr.bf16.gmra.mrb[0].mxu0 %v123
  %v321 = vpop.f32.mrb[0].mxu0
  %v322 = vadd.f32 0.0, %v321
  %v323 = vpop.f32.mrb[0].mxu0
  %v324 = vpop.f32.mrb[0].mxu0
  %v325 = vadd.f32 0.0, %v324
  %v326 = vpop.f32.mrb[0].mxu0
  %327 = vmatprep.mubr.bf16.mxu0 %v126
  %328 = vmatmul.mubr.bf16.gmra.mrb[0].mxu0 %v125
  %v329 = vpop.f32.mrb[0].mxu0
  %v330 = vadd.f32 0.0, %v329
  %v331 = vpop.f32.mrb[0].mxu0
  %v332 = vpop.f32.mrb[0].mxu0
  %v333 = vadd.f32 0.0, %v332
  %v334 = vpop.f32.mrb[0].mxu0
  %335 = vdwg.mxu0
  %v336 = vadd.f32 %v274, %v277
  %v337 = vadd.f32 %v336, %v282
  %v338 = vadd.f32 %v337, %v285
  %v339 = vadd.f32 %v338, %v290
  %v340 = vadd.f32 %v339, %v293
  %v341 = vadd.f32 %v340, %v298
  %v342 = vadd.f32 %v341, %v301
  %v343 = vadd.f32 %v342, %v306
  %v344 = vadd.f32 %v343, %v309
  %v345 = vadd.f32 %v344, %v314
  %v346 = vadd.f32 %v345, %v317
  %v347 = vadd.f32 %v346, %v322
  %v348 = vadd.f32 %v347, %v325
  %v349 = vadd.f32 %v348, %v330
  %v350 = vadd.f32 %v349, %v333
  %v351 = vrot.slane %v350, 4
  %v352 = vadd.f32 %v350, %v351
  %v353 = vrot.slane %v352, 2
  %v354 = vadd.f32 %v352, %v353
  %v355 = vrot.slane %v354, 1
  %v356 = vadd.f32 %v354, %v355
  %357 = vst [vmem:[%s3] sm:$0x1] %v356
  %v358 = vmul.f32 %v274, %v274
  %v359 = vmul.f32 %v277, %v277
  %v360 = vmul.f32 %v282, %v282
  %v361 = vmul.f32 %v285, %v285
  %v362 = vmul.f32 %v290, %v290
  %v363 = vmul.f32 %v293, %v293
  %v364 = vmul.f32 %v298, %v298
  %v365 = vmul.f32 %v301, %v301
  %v366 = vmul.f32 %v306, %v306
  %v367 = vmul.f32 %v309, %v309
  %v368 = vmul.f32 %v314, %v314
  %v369 = vmul.f32 %v317, %v317
  %v370 = vmul.f32 %v322, %v322
  %v371 = vmul.f32 %v325, %v325
  %v372 = vmul.f32 %v330, %v330
  %v373 = vmul.f32 %v333, %v333
  %v374 = vadd.f32 %v358, %v359
  %v375 = vadd.f32 %v374, %v360
  %v376 = vadd.f32 %v375, %v361
  %v377 = vadd.f32 %v376, %v362
  %v378 = vadd.f32 %v377, %v363
  %v379 = vadd.f32 %v378, %v364
  %v380 = vadd.f32 %v379, %v365
  %v381 = vadd.f32 %v380, %v366
  %v382 = vadd.f32 %v381, %v367
  %v383 = vadd.f32 %v382, %v368
  %v384 = vadd.f32 %v383, %v369
  %v385 = vadd.f32 %v384, %v370
  %v386 = vadd.f32 %v385, %v371
  %v387 = vadd.f32 %v386, %v372
  %v388 = vadd.f32 %v387, %v373
  %v389 = vrot.slane %v388, 4
  %v390 = vadd.f32 %v388, %v389
  %v391 = vrot.slane %v390, 2
  %v392 = vadd.f32 %v390, %v391
  %v393 = vrot.slane %v392, 1
  %v394 = vadd.f32 %v392, %v393
  %395 = vst [vmem:[%s4] sm:$0x1] %v394
  %v396 = vpack.c.bf16 %v277, %v274
  %v397 = vpack.c.bf16 %v285, %v282
  %v398 = vpack.c.bf16 %v293, %v290
  %v399 = vpack.c.bf16 %v301, %v298
  %v400 = vpack.c.bf16 %v309, %v306
  %v401 = vpack.c.bf16 %v317, %v314
  %v402 = vpack.c.bf16 %v325, %v322
  %v403 = vpack.c.bf16 %v333, %v330
  %v412 = vunpack.c.l.b16 %v396
  %v413 = vunpack.c.h.b16 %v396
  %v414 = vunpack.c.l.b16 %v397
  %v415 = vunpack.c.h.b16 %v397
  %v416 = vunpack.c.l.b16 %v398
  %v417 = vunpack.c.h.b16 %v398
  %v418 = vunpack.c.l.b16 %v399
  %v419 = vunpack.c.h.b16 %v399
  %v420 = vunpack.c.l.b16 %v400
  %v421 = vunpack.c.h.b16 %v400
  %v422 = vunpack.c.l.b16 %v401
  %v423 = vunpack.c.h.b16 %v401
  %v424 = vunpack.c.l.b16 %v402
  %v425 = vunpack.c.h.b16 %v402
  %v426 = vunpack.c.l.b16 %v403
  %v427 = vunpack.c.h.b16 %v403
  %v428 = vpack.c.b16 %v412, %v412
  %v429 = vpack.c.b16 %v413, %v413
  %v430 = vpack.c.b16 %v414, %v414
  %v431 = vpack.c.b16 %v415, %v415
  %v432 = vpack.c.b16 %v416, %v416
  %v433 = vpack.c.b16 %v417, %v417
  %v434 = vpack.c.b16 %v418, %v418
  %v435 = vpack.c.b16 %v419, %v419
  %v436 = vpack.c.b16 %v420, %v420
  %v437 = vpack.c.b16 %v421, %v421
  %v438 = vpack.c.b16 %v422, %v422
  %v439 = vpack.c.b16 %v423, %v423
  %v440 = vpack.c.b16 %v424, %v424
  %v441 = vpack.c.b16 %v425, %v425
  %v442 = vpack.c.b16 %v426, %v426
  %v443 = vpack.c.b16 %v427, %v427
  %460 = vst [vmem:[%s2] sm:$0xf] %v428
  %461 = vst [vmem:[%s2 + $0x4] sm:$0xf] %v429
  %462 = vst [vmem:[%s2 + $0x8] sm:$0xf] %v430
  %463 = vst [vmem:[%s2 + $0xc] sm:$0xf] %v431
  %464 = vst [vmem:[%s2 + $0x10] sm:$0xf] %v432
  %465 = vst [vmem:[%s2 + $0x14] sm:$0xf] %v433
  %466 = vst [vmem:[%s2 + $0x18] sm:$0xf] %v434
  %467 = vst [vmem:[%s2 + $0x1c] sm:$0xf] %v435
  %468 = vst [vmem:[%s2 + $0x20] sm:$0xf] %v436
  %469 = vst [vmem:[%s2 + $0x24] sm:$0xf] %v437
  %470 = vst [vmem:[%s2 + $0x28] sm:$0xf] %v438
  %471 = vst [vmem:[%s2 + $0x2c] sm:$0xf] %v439
  %472 = vst [vmem:[%s2 + $0x30] sm:$0xf] %v440
  %473 = vst [vmem:[%s2 + $0x34] sm:$0xf] %v441
  %474 = vst [vmem:[%s2 + $0x38] sm:$0xf] %v442
  %475 = vst [vmem:[%s2 + $0x3c] sm:$0xf] %v443
  // Predicated region
  $region10: #{net_e_forward.9} parent=0 // pred_check
    _
  $region11: #{net_e_forward.9} parent=0 // pred_check_branch
    %477 = sbr.rel (0) target = $region13
  $region12: #{net_e_forward.9} parent=0 // pred_region
    _
  $region13: #{net_e_forward.9} parent=0 // pred_fallthru
    _
  // Predicated region
  $region14: #{net_e_forward.9} parent=0 // pred_check
    _
  $region15: #{net_e_forward.9} parent=0 // pred_check_branch
    %479 = sbr.rel (0) target = $region17
  $region16: #{net_e_forward.9} parent=0 // pred_region
    _
  $region17: #{net_e_forward.9} parent=0 // pred_fallthru
    _
  // Predicated region
  $region18: #{net_e_forward.9} parent=0 // pred_check
    _
  $region19: #{net_e_forward.9} parent=0 // pred_check_branch
    %481 = sbr.rel (0) target = $region21
  $region20: #{net_e_forward.9} parent=0 // pred_region
    _
  $region21: #{net_e_forward.9} parent=0 // pred_fallthru
    _
  // Predicated region
  $region22: #{net_e_forward.9} parent=0 // pred_check
    _
  $region23: #{net_e_forward.9} parent=0 // pred_check_branch
    %483 = sbr.rel (0) target = $region25
  $region24: #{net_e_forward.9} parent=0 // pred_region
    _
  $region25: #{net_e_forward.9} parent=0 // pred_fallthru
    _
  // Predicated region
  $region26: #{net_e_forward.9} parent=0 // pred_check
    _
  $region27: #{net_e_forward.9} parent=0 // pred_check_branch
    %485 = sbr.rel (0) target = $region29
  $region28: #{net_e_forward.9} parent=0 // pred_region
    _
  $region29: #{net_e_forward.9} parent=0 // pred_fallthru
    _
  // Predicated region
  $region30: #{net_e_forward.9} parent=0 // pred_check
    _
  $region31: #{net_e_forward.9} parent=0 // pred_check_branch
    %487 = sbr.rel (0) target = $region33
  $region32: #{net_e_forward.9} parent=0 // pred_region
    _
  $region33: #{net_e_forward.9} parent=0 // pred_fallthru
    _

// kernel: net_e_forward.10
$region0: #{net_e_forward.10}
  #allocation0 [shape = 'u32[]', space=smem, size = 0x4, offset = 0x4, fixed_abs, tag = 'smem constant byte address 0x4 - core index']
  #allocation1 [shape = 'u32[144,128]{1,0:T(1,128)}', space=vmem, size = 0x12000, scoped, tag = 'internal scratch']
  %s0 = inlined_call_operand.vmem [shape: bf16[32,512], index: 0, kind: input, shape index: {}]
  %s1 = inlined_call_operand.vmem [shape: bf16[512,128], index: 1, kind: input, shape index: {}]
  %s2 = inlined_call_operand.vmem [shape: bf16[32,128], index: 2, kind: output, shape index: {0}]
  %s3 = inlined_call_operand.vmem [shape: f32[1,1,128], index: 3, kind: output, shape index: {1}]
  %s4 = inlined_call_operand.vmem [shape: f32[1,1,128], index: 4, kind: output, shape index: {2}]
  %5 = xla_tuple %s2, %s3, %s4
  %s6 = sld [smem:[#allocation0]]
  $region34: #{net_e_forward.10} parent=0
    _
  %s8 = ssub.s32 1, %s6
  %s9 = scalar_select 0, %s8, %s6
  // Predicated region
  $region2: #{net_e_forward.10} parent=0 // pred_check
    _
  $region3: #{net_e_forward.10} parent=0 // pred_check_branch
    %11 = sbr.rel (0) target = $region5
  $region4: #{net_e_forward.10} parent=0 // pred_region
    _
  $region5: #{net_e_forward.10} parent=0 // pred_fallthru
    _
  // Predicated region
  $region6: #{net_e_forward.10} parent=0 // pred_check
    _
  $region7: #{net_e_forward.10} parent=0 // pred_check_branch
    %13 = sbr.rel (0) target = $region9
  $region8: #{net_e_forward.10} parent=0 // pred_region
    _
  $region9: #{net_e_forward.10} parent=0 // pred_fallthru
    _
  %v15 = vld [vmem:[%s0] sm:$0xff]
  %v16 = vld [vmem:[%s0 + $0x8] sm:$0xff]
  %v17 = vld [vmem:[%s0 + $0x10] sm:$0xff]
  %v18 = vld [vmem:[%s0 + $0x18] sm:$0xff]
  %v19 = vld [vmem:[%s0 + $0x20] sm:$0xff]
  %v20 = vld [vmem:[%s0 + $0x28] sm:$0xff]
  %v21 = vld [vmem:[%s0 + $0x30] sm:$0xff]
  %v22 = vld [vmem:[%s0 + $0x38] sm:$0xff]
  %v23 = vld [vmem:[%s1] sm:$0xf]
  %v24 = vld [vmem:[%s1 + $0x4] sm:$0xf]
  %v25 = vld [vmem:[%s1 + $0x8] sm:$0xf]
  %v26 = vld [vmem:[%s1 + $0xc] sm:$0xf]
  %v27 = vld [vmem:[%s1 + $0x10] sm:$0xf]
  %v28 = vld [vmem:[%s1 + $0x14] sm:$0xf]
  %v29 = vld [vmem:[%s1 + $0x18] sm:$0xf]
  %v30 = vld [vmem:[%s1 + $0x1c] sm:$0xf]
  %v31 = vld [vmem:[%s1 + $0x20] sm:$0xf]
  %v32 = vld [vmem:[%s1 + $0x24] sm:$0xf]
  %v33 = vld [vmem:[%s1 + $0x28] sm:$0xf]
  %v34 = vld [vmem:[%s1 + $0x2c] sm:$0xf]
  %v35 = vld [vmem:[%s1 + $0x30] sm:$0xf]
  %v36 = vld [vmem:[%s1 + $0x34] sm:$0xf]
  %v37 = vld [vmem:[%s1 + $0x38] sm:$0xf]
  %v38 = vld [vmem:[%s1 + $0x3c] sm:$0xf]
  %v39 = vld [vmem:[%s1 + $0x40] sm:$0xf]
  %v40 = vld [vmem:[%s1 + $0x44] sm:$0xf]
  %v41 = vld [vmem:[%s1 + $0x48] sm:$0xf]
  %v42 = vld [vmem:[%s1 + $0x4c] sm:$0xf]
  %v43 = vld [vmem:[%s1 + $0x50] sm:$0xf]
  %v44 = vld [vmem:[%s1 + $0x54] sm:$0xf]
  %v45 = vld [vmem:[%s1 + $0x58] sm:$0xf]
  %v46 = vld [vmem:[%s1 + $0x5c] sm:$0xf]
  %v47 = vld [vmem:[%s1 + $0x60] sm:$0xf]
  %v48 = vld [vmem:[%s1 + $0x64] sm:$0xf]
  %v49 = vld [vmem:[%s1 + $0x68] sm:$0xf]
  %v50 = vld [vmem:[%s1 + $0x6c] sm:$0xf]
  %v51 = vld [vmem:[%s1 + $0x70] sm:$0xf]
  %v52 = vld [vmem:[%s1 + $0x74] sm:$0xf]
  %v53 = vld [vmem:[%s1 + $0x78] sm:$0xf]
  %v54 = vld [vmem:[%s1 + $0x7c] sm:$0xf]
  %v55 = vld [vmem:[%s1 + $0x80] sm:$0xf]
  %v56 = vld [vmem:[%s1 + $0x84] sm:$0xf]
  %v57 = vld [vmem:[%s1 + $0x88] sm:$0xf]
  %v58 = vld [vmem:[%s1 + $0x8c] sm:$0xf]
  %v59 = vld [vmem:[%s1 + $0x90] sm:$0xf]
  %v60 = vld [vmem:[%s1 + $0x94] sm:$0xf]
  %v61 = vld [vmem:[%s1 + $0x98] sm:$0xf]
  %v62 = vld [vmem:[%s1 + $0x9c] sm:$0xf]
  %v63 = vld [vmem:[%s1 + $0xa0] sm:$0xf]
  %v64 = vld [vmem:[%s1 + $0xa4] sm:$0xf]
  %v65 = vld [vmem:[%s1 + $0xa8] sm:$0xf]
  %v66 = vld [vmem:[%s1 + $0xac] sm:$0xf]
  %v67 = vld [vmem:[%s1 + $0xb0] sm:$0xf]
  %v68 = vld [vmem:[%s1 + $0xb4] sm:$0xf]
  %v69 = vld [vmem:[%s1 + $0xb8] sm:$0xf]
  %v70 = vld [vmem:[%s1 + $0xbc] sm:$0xf]
  %v71 = vld [vmem:[%s1 + $0xc0] sm:$0xf]
  %v72 = vld [vmem:[%s1 + $0xc4] sm:$0xf]
  %v73 = vld [vmem:[%s1 + $0xc8] sm:$0xf]
  %v74 = vld [vmem:[%s1 + $0xcc] sm:$0xf]
  %v75 = vld [vmem:[%s1 + $0xd0] sm:$0xf]
  %v76 = vld [vmem:[%s1 + $0xd4] sm:$0xf]
  %v77 = vld [vmem:[%s1 + $0xd8] sm:$0xf]
  %v78 = vld [vmem:[%s1 + $0xdc] sm:$0xf]
  %v79 = vld [vmem:[%s1 + $0xe0] sm:$0xf]
  %v80 = vld [vmem:[%s1 + $0xe4] sm:$0xf]
  %v81 = vld [vmem:[%s1 + $0xe8] sm:$0xf]
  %v82 = vld [vmem:[%s1 + $0xec] sm:$0xf]
  %v83 = vld [vmem:[%s1 + $0xf0] sm:$0xf]
  %v84 = vld [vmem:[%s1 + $0xf4] sm:$0xf]
  %v85 = vld [vmem:[%s1 + $0xf8] sm:$0xf]
  %v86 = vld [vmem:[%s1 + $0xfc] sm:$0xf]
  %v95 = vunpack.c.l.b16 %v15
  %v96 = vunpack.c.h.b16 %v15
  %v97 = vunpack.c.l.b16 %v16
  %v98 = vunpack.c.h.b16 %v16
  %v99 = vunpack.c.l.b16 %v17
  %v100 = vunpack.c.h.b16 %v17
  %v101 = vunpack.c.l.b16 %v18
  %v102 = vunpack.c.h.b16 %v18
  %v103 = vunpack.c.l.b16 %v19
  %v104 = vunpack.c.h.b16 %v19
  %v105 = vunpack.c.l.b16 %v20
  %v106 = vunpack.c.h.b16 %v20
  %v107 = vunpack.c.l.b16 %v21
  %v108 = vunpack.c.h.b16 %v21
  %v109 = vunpack.c.l.b16 %v22
  %v110 = vunpack.c.h.b16 %v22
  %v111 = vpack.c.b16 %v99, %v95
  %v112 = vpack.c.b16 %v100, %v96
  %v113 = vpack.c.b16 %v101, %v97
  %v114 = vpack.c.b16 %v102, %v98
  %v115 = vpack.c.b16 %v107, %v103
  %v116 = vpack.c.b16 %v108, %v104
  %v117 = vpack.c.b16 %v109, %v105
  %v118 = vpack.c.b16 %v110, %v106
  %v191 = vunpack.c.l.b16 %v23
  %v192 = vunpack.c.l.b16 %v24
  %v193 = vunpack.c.l.b16 %v25
  %v194 = vunpack.c.l.b16 %v26
  %v195 = vunpack.c.l.b16 %v27
  %v196 = vunpack.c.l.b16 %v28
  %v197 = vunpack.c.l.b16 %v29
  %v198 = vunpack.c.l.b16 %v30
  %v199 = vunpack.c.l.b16 %v31
  %v200 = vunpack.c.l.b16 %v32
  %v201 = vunpack.c.l.b16 %v33
  %v202 = vunpack.c.l.b16 %v34
  %v203 = vunpack.c.l.b16 %v35
  %v204 = vunpack.c.l.b16 %v36
  %v205 = vunpack.c.l.b16 %v37
  %v206 = vunpack.c.l.b16 %v38
  %v207 = vunpack.c.l.b16 %v39
  %v208 = vunpack.c.l.b16 %v40
  %v209 = vunpack.c.l.b16 %v41
  %v210 = vunpack.c.l.b16 %v42
  %v211 = vunpack.c.l.b16 %v43
  %v212 = vunpack.c.l.b16 %v44
  %v213 = vunpack.c.l.b16 %v45
  %v214 = vunpack.c.l.b16 %v46
  %v215 = vunpack.c.l.b16 %v47
  %v216 = vunpack.c.l.b16 %v48
  %v217 = vunpack.c.l.b16 %v49
  %v218 = vunpack.c.l.b16 %v50
  %v219 = vunpack.c.l.b16 %v51
  %v220 = vunpack.c.l.b16 %v52
  %v221 = vunpack.c.l.b16 %v53
  %v222 = vunpack.c.l.b16 %v54
  %v223 = vunpack.c.l.b16 %v55
  %v224 = vunpack.c.l.b16 %v56
  %v225 = vunpack.c.l.b16 %v57
  %v226 = vunpack.c.l.b16 %v58
  %v227 = vunpack.c.l.b16 %v59
  %v228 = vunpack.c.l.b16 %v60
  %v229 = vunpack.c.l.b16 %v61
  %v230 = vunpack.c.l.b16 %v62
  %v231 = vunpack.c.l.b16 %v63
  %v232 = vunpack.c.l.b16 %v64
  %v233 = vunpack.c.l.b16 %v65
  %v234 = vunpack.c.l.b16 %v66
  %v235 = vunpack.c.l.b16 %v67
  %v236 = vunpack.c.l.b16 %v68
  %v237 = vunpack.c.l.b16 %v69
  %v238 = vunpack.c.l.b16 %v70
  %v239 = vunpack.c.l.b16 %v71
  %v240 = vunpack.c.l.b16 %v72
  %v241 = vunpack.c.l.b16 %v73
  %v242 = vunpack.c.l.b16 %v74
  %v243 = vunpack.c.l.b16 %v75
  %v244 = vunpack.c.l.b16 %v76
  %v245 = vunpack.c.l.b16 %v77
  %v246 = vunpack.c.l.b16 %v78
  %v247 = vunpack.c.l.b16 %v79
  %v248 = vunpack.c.l.b16 %v80
  %v249 = vunpack.c.l.b16 %v81
  %v250 = vunpack.c.l.b16 %v82
  %v251 = vunpack.c.l.b16 %v83
  %v252 = vunpack.c.l.b16 %v84
  %v253 = vunpack.c.l.b16 %v85
  %v254 = vunpack.c.l.b16 %v86
  %v255 = vpack.c.b16 %v192, %v191
  %v256 = vpack.c.b16 %v194, %v193
  %v257 = vpack.c.b16 %v196, %v195
  %v258 = vpack.c.b16 %v198, %v197
  %v259 = vpack.c.b16 %v200, %v199
  %v260 = vpack.c.b16 %v202, %v201
  %v261 = vpack.c.b16 %v204, %v203
  %v262 = vpack.c.b16 %v206, %v205
  %v263 = vpack.c.b16 %v208, %v207
  %v264 = vpack.c.b16 %v210, %v209
  %v265 = vpack.c.b16 %v212, %v211
  %v266 = vpack.c.b16 %v214, %v213
  %v267 = vpack.c.b16 %v216, %v215
  %v268 = vpack.c.b16 %v218, %v217
  %v269 = vpack.c.b16 %v220, %v219
  %v270 = vpack.c.b16 %v222, %v221
  %v271 = vpack.c.b16 %v224, %v223
  %v272 = vpack.c.b16 %v226, %v225
  %v273 = vpack.c.b16 %v228, %v227
  %v274 = vpack.c.b16 %v230, %v229
  %v275 = vpack.c.b16 %v232, %v231
  %v276 = vpack.c.b16 %v234, %v233
  %v277 = vpack.c.b16 %v236, %v235
  %v278 = vpack.c.b16 %v238, %v237
  %v279 = vpack.c.b16 %v240, %v239
  %v280 = vpack.c.b16 %v242, %v241
  %v281 = vpack.c.b16 %v244, %v243
  %v282 = vpack.c.b16 %v246, %v245
  %v283 = vpack.c.b16 %v248, %v247
  %v284 = vpack.c.b16 %v250, %v249
  %v285 = vpack.c.b16 %v252, %v251
  %v286 = vpack.c.b16 %v254, %v253
  %319 = vmatprep.subr.bf16.mxu0 0
  %320 = vmatpush1.bf16.msra.mxu0 %v255
  %321 = vmatprep.subr.bf16.mxu0 0
  %322 = vmatpush1.bf16.msra.mxu0 %v256
  %323 = vmatprep.subr.bf16.mxu0 0
  %324 = vmatpush1.bf16.msra.mxu0 %v257
  %325 = vmatprep.subr.bf16.mxu0 0
  %326 = vmatpush1.bf16.msra.mxu0 %v258
  %327 = vmatprep.subr.bf16.mxu0 0
  %328 = vmatpush1.bf16.msra.mxu0 %v259
  %329 = vmatprep.subr.bf16.mxu0 0
  %330 = vmatpush1.bf16.msra.mxu0 %v260
  %331 = vmatprep.subr.bf16.mxu0 0
  %332 = vmatpush1.bf16.msra.mxu0 %v261
  %333 = vmatprep.subr.bf16.mxu0 0
  %334 = vmatpush1.bf16.msra.mxu0 %v262
  %335 = vmatprep.subr.bf16.mxu0 0
  %336 = vmatpush1.bf16.msra.mxu0 %v263
  %337 = vmatprep.subr.bf16.mxu0 0
  %338 = vmatpush1.bf16.msra.mxu0 %v264
  %339 = vmatprep.subr.bf16.mxu0 0
  %340 = vmatpush1.bf16.msra.mxu0 %v265
  %341 = vmatprep.subr.bf16.mxu0 0
  %342 = vmatpush1.bf16.msra.mxu0 %v266
  %343 = vmatprep.subr.bf16.mxu0 0
  %344 = vmatpush1.bf16.msra.mxu0 %v267
  %345 = vmatprep.subr.bf16.mxu0 0
  %346 = vmatpush1.bf16.msra.mxu0 %v268
  %347 = vmatprep.subr.bf16.mxu0 0
  %348 = vmatpush1.bf16.msra.mxu0 %v269
  %349 = vmatprep.subr.bf16.mxu0 0
  %350 = vmatpush1.bf16.msra.mxu0 %v270
  %351 = vmatprep.mubr.bf16.mxu0 %v112
  %352 = vmatmul.mubr.bf16.gmra.mrb[0].mxu0 %v111
  %v353 = vpop.f32.mrb[0].mxu0
  %v354 = vadd.f32 0.0, %v353
  %v355 = vpop.f32.mrb[0].mxu0
  %v356 = vpop.f32.mrb[0].mxu0
  %v357 = vadd.f32 0.0, %v356
  %v358 = vpop.f32.mrb[0].mxu0
  %359 = vmatprep.mubr.bf16.mxu0 %v116
  %360 = vmatmul.mubr.bf16.gmra.mrb[0].mxu0 %v115
  %v361 = vpop.f32.mrb[0].mxu0
  %v362 = vadd.f32 0.0, %v361
  %v363 = vpop.f32.mrb[0].mxu0
  %v364 = vpop.f32.mrb[0].mxu0
  %v365 = vadd.f32 0.0, %v364
  %v366 = vpop.f32.mrb[0].mxu0
  %367 = vdwg.mxu0
  %368 = vmatprep.subr.bf16.mxu0 0
  %369 = vmatpush1.bf16.msra.mxu0 %v271
  %370 = vmatprep.subr.bf16.mxu0 0
  %371 = vmatpush1.bf16.msra.mxu0 %v272
  %372 = vmatprep.subr.bf16.mxu0 0
  %373 = vmatpush1.bf16.msra.mxu0 %v273
  %374 = vmatprep.subr.bf16.mxu0 0
  %375 = vmatpush1.bf16.msra.mxu0 %v274
  %376 = vmatprep.subr.bf16.mxu0 0
  %377 = vmatpush1.bf16.msra.mxu0 %v275
  %378 = vmatprep.subr.bf16.mxu0 0
  %379 = vmatpush1.bf16.msra.mxu0 %v276
  %380 = vmatprep.subr.bf16.mxu0 0
  %381 = vmatpush1.bf16.msra.mxu0 %v277
  %382 = vmatprep.subr.bf16.mxu0 0
  %383 = vmatpush1.bf16.msra.mxu0 %v278
  %384 = vmatprep.subr.bf16.mxu0 0
  %385 = vmatpush1.bf16.msra.mxu0 %v279
  %386 = vmatprep.subr.bf16.mxu0 0
  %387 = vmatpush1.bf16.msra.mxu0 %v280
  %388 = vmatprep.subr.bf16.mxu0 0
  %389 = vmatpush1.bf16.msra.mxu0 %v281
  %390 = vmatprep.subr.bf16.mxu0 0
  %391 = vmatpush1.bf16.msra.mxu0 %v282
  %392 = vmatprep.subr.bf16.mxu0 0
  %393 = vmatpush1.bf16.msra.mxu0 %v283
  %394 = vmatprep.subr.bf16.mxu0 0
  %395 = vmatpush1.bf16.msra.mxu0 %v284
  %396 = vmatprep.subr.bf16.mxu0 0
  %397 = vmatpush1.bf16.msra.mxu0 %v285
  %398 = vmatprep.subr.bf16.mxu0 0
  %399 = vmatpush1.bf16.msra.mxu0 %v286
  %400 = vmatprep.mubr.bf16.mxu0 %v114
  %401 = vmatmul.mubr.bf16.gmra.mrb[0].mxu0 %v113
  %v402 = vpop.f32.mrb[0].mxu0
  %v403 = vadd.f32 %v354, %v402
  %v404 = vpop.f32.mrb[0].mxu0
  %v405 = vpop.f32.mrb[0].mxu0
  %v406 = vadd.f32 %v357, %v405
  %v407 = vpop.f32.mrb[0].mxu0
  %408 = vmatprep.mubr.bf16.mxu0 %v118
  %409 = vmatmul.mubr.bf16.gmra.mrb[0].mxu0 %v117
  %v410 = vpop.f32.mrb[0].mxu0
  %v411 = vadd.f32 %v362, %v410
  %v412 = vpop.f32.mrb[0].mxu0
  %v413 = vpop.f32.mrb[0].mxu0
  %v414 = vadd.f32 %v365, %v413
  %v415 = vpop.f32.mrb[0].mxu0
  %416 = vdwg.mxu0
  %v417 = vadd.f32 %v403, %v406
  %v418 = vadd.f32 %v417, %v411
  %v419 = vadd.f32 %v418, %v414
  %v420 = vrot.slane %v419, 4
  %v421 = vadd.f32 %v419, %v420
  %v422 = vrot.slane %v421, 2
  %v423 = vadd.f32 %v421, %v422
  %v424 = vrot.slane %v423, 1
  %v425 = vadd.f32 %v423, %v424
  %426 = vst [vmem:[%s3] sm:$0x1] %v425
  %v427 = vmul.f32 %v403, %v403
  %v428 = vmul.f32 %v406, %v406
  %v429 = vmul.f32 %v411, %v411
  %v430 = vmul.f32 %v414, %v414
  %v431 = vadd.f32 %v427, %v428
  %v432 = vadd.f32 %v431, %v429
  %v433 = vadd.f32 %v432, %v430
  %v434 = vrot.slane %v433, 4
  %v435 = vadd.f32 %v433, %v434
  %v436 = vrot.slane %v435, 2
  %v437 = vadd.f32 %v435, %v436
  %v438 = vrot.slane %v437, 1
  %v439 = vadd.f32 %v437, %v438
  %440 = vst [vmem:[%s4] sm:$0x1] %v439
  %v441 = vpack.c.bf16 %v406, %v403
  %v442 = vpack.c.bf16 %v414, %v411
  %v445 = vunpack.c.l.b16 %v441
  %v446 = vunpack.c.h.b16 %v441
  %v447 = vunpack.c.l.b16 %v442
  %v448 = vunpack.c.h.b16 %v442
  %v449 = vpack.c.b16 %v445, %v445
  %v450 = vpack.c.b16 %v446, %v446
  %v451 = vpack.c.b16 %v447, %v447
  %v452 = vpack.c.b16 %v448, %v448
  %457 = vst [vmem:[%s2] sm:$0xf] %v449
  %458 = vst [vmem:[%s2 + $0x4] sm:$0xf] %v450
  %459 = vst [vmem:[%s2 + $0x8] sm:$0xf] %v451
  %460 = vst [vmem:[%s2 + $0xc] sm:$0xf] %v452
  // Predicated region
  $region10: #{net_e_forward.10} parent=0 // pred_check
    _
  $region11: #{net_e_forward.10} parent=0 // pred_check_branch
    %462 = sbr.rel (0) target = $region13
  $region12: #{net_e_forward.10} parent=0 // pred_region
    _
  $region13: #{net_e_forward.10} parent=0 // pred_fallthru
    _
  // Predicated region
  $region14: #{net_e_forward.10} parent=0 // pred_check
    _
  $region15: #{net_e_forward.10} parent=0 // pred_check_branch
    %464 = sbr.rel (0) target = $region17
  $region16: #{net_e_forward.10} parent=0 // pred_region
    _
  $region17: #{net_e_forward.10} parent=0 // pred_fallthru
    _
  // Predicated region
  $region18: #{net_e_forward.10} parent=0 // pred_check
    _
  $region19: #{net_e_forward.10} parent=0 // pred_check_branch
    %466 = sbr.rel (0) target = $region21
  $region20: #{net_e_forward.10} parent=0 // pred_region
    _
  $region21: #{net_e_forward.10} parent=0 // pred_fallthru
    _
  // Predicated region
  $region22: #{net_e_forward.10} parent=0 // pred_check
    _
  $region23: #{net_e_forward.10} parent=0 // pred_check_branch
    %468 = sbr.rel (0) target = $region25
  $region24: #{net_e_forward.10} parent=0 // pred_region
    _
  $region25: #{net_e_forward.10} parent=0 // pred_fallthru
    _
  // Predicated region
  $region26: #{net_e_forward.10} parent=0 // pred_check
    _
  $region27: #{net_e_forward.10} parent=0 // pred_check_branch
    %470 = sbr.rel (0) target = $region29
  $region28: #{net_e_forward.10} parent=0 // pred_region
    _
  $region29: #{net_e_forward.10} parent=0 // pred_fallthru
    _
  // Predicated region
  $region30: #{net_e_forward.10} parent=0 // pred_check
    _
  $region31: #{net_e_forward.10} parent=0 // pred_check_branch
    %472 = sbr.rel (0) target = $region33
  $region32: #{net_e_forward.10} parent=0 // pred_region
    _
  $region33: #{net_e_forward.10} parent=0 // pred_fallthru
    _

// kernel: net_e_forward.11
$region0: #{net_e_forward.11}
  #allocation0 [shape = 'u32[]', space=smem, size = 0x4, offset = 0x4, fixed_abs, tag = 'smem constant byte address 0x4 - core index']
  #allocation1 [shape = 'u32[144,128]{1,0:T(1,128)}', space=vmem, size = 0x12000, scoped, tag = 'internal scratch']
  %s0 = inlined_call_operand.vmem [shape: bf16[16,1024], index: 0, kind: input, shape index: {}]
  %s1 = inlined_call_operand.vmem [shape: bf16[1024,128], index: 1, kind: input, shape index: {}]
  %s2 = inlined_call_operand.vmem [shape: f32[16,128], index: 2, kind: output, shape index: {}]
  %s3 = sld [smem:[#allocation0]]
  $region18: #{net_e_forward.11} parent=0
    _
  %s5 = ssub.s32 1, %s3
  %s6 = scalar_select 0, %s5, %s3
  // Predicated region
  $region2: #{net_e_forward.11} parent=0 // pred_check
    _
  $region3: #{net_e_forward.11} parent=0 // pred_check_branch
    %8 = sbr.rel (0) target = $region5
  $region4: #{net_e_forward.11} parent=0 // pred_region
    _
  $region5: #{net_e_forward.11} parent=0 // pred_fallthru
    _
  // Predicated region
  $region6: #{net_e_forward.11} parent=0 // pred_check
    _
  $region7: #{net_e_forward.11} parent=0 // pred_check_branch
    %10 = sbr.rel (0) target = $region9
  $region8: #{net_e_forward.11} parent=0 // pred_region
    _
  $region9: #{net_e_forward.11} parent=0 // pred_fallthru
    _
  %v12 = vld [vmem:[%s0] sm:$0xff]
  %v13 = vld [vmem:[%s0 + $0x8] sm:$0xff]
  %v14 = vld [vmem:[%s0 + $0x10] sm:$0xff]
  %v15 = vld [vmem:[%s0 + $0x18] sm:$0xff]
  %v16 = vld [vmem:[%s0 + $0x20] sm:$0xff]
  %v17 = vld [vmem:[%s0 + $0x28] sm:$0xff]
  %v18 = vld [vmem:[%s0 + $0x30] sm:$0xff]
  %v19 = vld [vmem:[%s0 + $0x38] sm:$0xff]
  %v20 = vld [vmem:[%s1] sm:$0xf]
  %v21 = vld [vmem:[%s1 + $0x4] sm:$0xf]
  %v22 = vld [vmem:[%s1 + $0x8] sm:$0xf]
  %v23 = vld [vmem:[%s1 + $0xc] sm:$0xf]
  %v24 = vld [vmem:[%s1 + $0x10] sm:$0xf]
  %v25 = vld [vmem:[%s1 + $0x14] sm:$0xf]
  %v26 = vld [vmem:[%s1 + $0x18] sm:$0xf]
  %v27 = vld [vmem:[%s1 + $0x1c] sm:$0xf]
  %v28 = vld [vmem:[%s1 + $0x20] sm:$0xf]
  %v29 = vld [vmem:[%s1 + $0x24] sm:$0xf]
  %v30 = vld [vmem:[%s1 + $0x28] sm:$0xf]
  %v31 = vld [vmem:[%s1 + $0x2c] sm:$0xf]
  %v32 = vld [vmem:[%s1 + $0x30] sm:$0xf]
  %v33 = vld [vmem:[%s1 + $0x34] sm:$0xf]
  %v34 = vld [vmem:[%s1 + $0x38] sm:$0xf]
  %v35 = vld [vmem:[%s1 + $0x3c] sm:$0xf]
  %v36 = vld [vmem:[%s1 + $0x40] sm:$0xf]
  %v37 = vld [vmem:[%s1 + $0x44] sm:$0xf]
  %v38 = vld [vmem:[%s1 + $0x48] sm:$0xf]
  %v39 = vld [vmem:[%s1 + $0x4c] sm:$0xf]
  %v40 = vld [vmem:[%s1 + $0x50] sm:$0xf]
  %v41 = vld [vmem:[%s1 + $0x54] sm:$0xf]
  %v42 = vld [vmem:[%s1 + $0x58] sm:$0xf]
  %v43 = vld [vmem:[%s1 + $0x5c] sm:$0xf]
  %v44 = vld [vmem:[%s1 + $0x60] sm:$0xf]
  %v45 = vld [vmem:[%s1 + $0x64] sm:$0xf]
  %v46 = vld [vmem:[%s1 + $0x68] sm:$0xf]
  %v47 = vld [vmem:[%s1 + $0x6c] sm:$0xf]
  %v48 = vld [vmem:[%s1 + $0x70] sm:$0xf]
  %v49 = vld [vmem:[%s1 + $0x74] sm:$0xf]
  %v50 = vld [vmem:[%s1 + $0x78] sm:$0xf]
  %v51 = vld [vmem:[%s1 + $0x7c] sm:$0xf]
  %v52 = vld [vmem:[%s1 + $0x80] sm:$0xf]
  %v53 = vld [vmem:[%s1 + $0x84] sm:$0xf]
  %v54 = vld [vmem:[%s1 + $0x88] sm:$0xf]
  %v55 = vld [vmem:[%s1 + $0x8c] sm:$0xf]
  %v56 = vld [vmem:[%s1 + $0x90] sm:$0xf]
  %v57 = vld [vmem:[%s1 + $0x94] sm:$0xf]
  %v58 = vld [vmem:[%s1 + $0x98] sm:$0xf]
  %v59 = vld [vmem:[%s1 + $0x9c] sm:$0xf]
  %v60 = vld [vmem:[%s1 + $0xa0] sm:$0xf]
  %v61 = vld [vmem:[%s1 + $0xa4] sm:$0xf]
  %v62 = vld [vmem:[%s1 + $0xa8] sm:$0xf]
  %v63 = vld [vmem:[%s1 + $0xac] sm:$0xf]
  %v64 = vld [vmem:[%s1 + $0xb0] sm:$0xf]
  %v65 = vld [vmem:[%s1 + $0xb4] sm:$0xf]
  %v66 = vld [vmem:[%s1 + $0xb8] sm:$0xf]
  %v67 = vld [vmem:[%s1 + $0xbc] sm:$0xf]
  %v68 = vld [vmem:[%s1 + $0xc0] sm:$0xf]
  %v69 = vld [vmem:[%s1 + $0xc4] sm:$0xf]
  %v70 = vld [vmem:[%s1 + $0xc8] sm:$0xf]
  %v71 = vld [vmem:[%s1 + $0xcc] sm:$0xf]
  %v72 = vld [vmem:[%s1 + $0xd0] sm:$0xf]
  %v73 = vld [vmem:[%s1 + $0xd4] sm:$0xf]
  %v74 = vld [vmem:[%s1 + $0xd8] sm:$0xf]
  %v75 = vld [vmem:[%s1 + $0xdc] sm:$0xf]
  %v76 = vld [vmem:[%s1 + $0xe0] sm:$0xf]
  %v77 = vld [vmem:[%s1 + $0xe4] sm:$0xf]
  %v78 = vld [vmem:[%s1 + $0xe8] sm:$0xf]
  %v79 = vld [vmem:[%s1 + $0xec] sm:$0xf]
  %v80 = vld [vmem:[%s1 + $0xf0] sm:$0xf]
  %v81 = vld [vmem:[%s1 + $0xf4] sm:$0xf]
  %v82 = vld [vmem:[%s1 + $0xf8] sm:$0xf]
  %v83 = vld [vmem:[%s1 + $0xfc] sm:$0xf]
  %v84 = vld [vmem:[%s1 + $0x100] sm:$0xf]
  %v85 = vld [vmem:[%s1 + $0x104] sm:$0xf]
  %v86 = vld [vmem:[%s1 + $0x108] sm:$0xf]
  %v87 = vld [vmem:[%s1 + $0x10c] sm:$0xf]
  %v88 = vld [vmem:[%s1 + $0x110] sm:$0xf]
  %v89 = vld [vmem:[%s1 + $0x114] sm:$0xf]
  %v90 = vld [vmem:[%s1 + $0x118] sm:$0xf]
  %v91 = vld [vmem:[%s1 + $0x11c] sm:$0xf]
  %v92 = vld [vmem:[%s1 + $0x120] sm:$0xf]
  %v93 = vld [vmem:[%s1 + $0x124] sm:$0xf]
  %v94 = vld [vmem:[%s1 + $0x128] sm:$0xf]
  %v95 = vld [vmem:[%s1 + $0x12c] sm:$0xf]
  %v96 = vld [vmem:[%s1 + $0x130] sm:$0xf]
  %v97 = vld [vmem:[%s1 + $0x134] sm:$0xf]
  %v98 = vld [vmem:[%s1 + $0x138] sm:$0xf]
  %v99 = vld [vmem:[%s1 + $0x13c] sm:$0xf]
  %v100 = vld [vmem:[%s1 + $0x140] sm:$0xf]
  %v101 = vld [vmem:[%s1 + $0x144] sm:$0xf]
  %v102 = vld [vmem:[%s1 + $0x148] sm:$0xf]
  %v103 = vld [vmem:[%s1 + $0x14c] sm:$0xf]
  %v104 = vld [vmem:[%s1 + $0x150] sm:$0xf]
  %v105 = vld [vmem:[%s1 + $0x154] sm:$0xf]
  %v106 = vld [vmem:[%s1 + $0x158] sm:$0xf]
  %v107 = vld [vmem:[%s1 + $0x15c] sm:$0xf]
  %v108 = vld [vmem:[%s1 + $0x160] sm:$0xf]
  %v109 = vld [vmem:[%s1 + $0x164] sm:$0xf]
  %v110 = vld [vmem:[%s1 + $0x168] sm:$0xf]
  %v111 = vld [vmem:[%s1 + $0x16c] sm:$0xf]
  %v112 = vld [vmem:[%s1 + $0x170] sm:$0xf]
  %v113 = vld [vmem:[%s1 + $0x174] sm:$0xf]
  %v114 = vld [vmem:[%s1 + $0x178] sm:$0xf]
  %v115 = vld [vmem:[%s1 + $0x17c] sm:$0xf]
  %v116 = vld [vmem:[%s1 + $0x180] sm:$0xf]
  %v117 = vld [vmem:[%s1 + $0x184] sm:$0xf]
  %v118 = vld [vmem:[%s1 + $0x188] sm:$0xf]
  %v119 = vld [vmem:[%s1 + $0x18c] sm:$0xf]
  %v120 = vld [vmem:[%s1 + $0x190] sm:$0xf]
  %v121 = vld [vmem:[%s1 + $0x194] sm:$0xf]
  %v122 = vld [vmem:[%s1 + $0x198] sm:$0xf]
  %v123 = vld [vmem:[%s1 + $0x19c] sm:$0xf]
  %v124 = vld [vmem:[%s1 + $0x1a0] sm:$0xf]
  %v125 = vld [vmem:[%s1 + $0x1a4] sm:$0xf]
  %v126 = vld [vmem:[%s1 + $0x1a8] sm:$0xf]
  %v127 = vld [vmem:[%s1 + $0x1ac] sm:$0xf]
  %v128 = vld [vmem:[%s1 + $0x1b0] sm:$0xf]
  %v129 = vld [vmem:[%s1 + $0x1b4] sm:$0xf]
  %v130 = vld [vmem:[%s1 + $0x1b8] sm:$0xf]
  %v131 = vld [vmem:[%s1 + $0x1bc] sm:$0xf]
  %v132 = vld [vmem:[%s1 + $0x1c0] sm:$0xf]
  %v133 = vld [vmem:[%s1 + $0x1c4] sm:$0xf]
  %v134 = vld [vmem:[%s1 + $0x1c8] sm:$0xf]
  %v135 = vld [vmem:[%s1 + $0x1cc] sm:$0xf]
  %v136 = vld [vmem:[%s1 + $0x1d0] sm:$0xf]
  %v137 = vld [vmem:[%s1 + $0x1d4] sm:$0xf]
  %v138 = vld [vmem:[%s1 + $0x1d8] sm:$0xf]
  %v139 = vld [vmem:[%s1 + $0x1dc] sm:$0xf]
  %v140 = vld [vmem:[%s1 + $0x1e0] sm:$0xf]
  %v141 = vld [vmem:[%s1 + $0x1e4] sm:$0xf]
  %v142 = vld [vmem:[%s1 + $0x1e8] sm:$0xf]
  %v143 = vld [vmem:[%s1 + $0x1ec] sm:$0xf]
  %v144 = vld [vmem:[%s1 + $0x1f0] sm:$0xf]
  %v145 = vld [vmem:[%s1 + $0x1f4] sm:$0xf]
  %v146 = vld [vmem:[%s1 + $0x1f8] sm:$0xf]
  %v147 = vld [vmem:[%s1 + $0x1fc] sm:$0xf]
  %v156 = vunpack.c.l.b16 %v12
  %v157 = vunpack.c.h.b16 %v12
  %v158 = vunpack.c.l.b16 %v13
  %v159 = vunpack.c.h.b16 %v13
  %v160 = vunpack.c.l.b16 %v14
  %v161 = vunpack.c.h.b16 %v14
  %v162 = vunpack.c.l.b16 %v15
  %v163 = vunpack.c.h.b16 %v15
  %v164 = vunpack.c.l.b16 %v16
  %v165 = vunpack.c.h.b16 %v16
  %v166 = vunpack.c.l.b16 %v17
  %v167 = vunpack.c.h.b16 %v17
  %v168 = vunpack.c.l.b16 %v18
  %v169 = vunpack.c.h.b16 %v18
  %v170 = vunpack.c.l.b16 %v19
  %v171 = vunpack.c.h.b16 %v19
  %v172 = vpack.c.b16 %v164, %v156
  %v173 = vpack.c.b16 %v165, %v157
  %v174 = vpack.c.b16 %v166, %v158
  %v175 = vpack.c.b16 %v167, %v159
  %v176 = vpack.c.b16 %v168, %v160
  %v177 = vpack.c.b16 %v169, %v161
  %v178 = vpack.c.b16 %v170, %v162
  %v179 = vpack.c.b16 %v171, %v163
  %v316 = vunpack.c.l.b16 %v20
  %v317 = vunpack.c.l.b16 %v21
  %v318 = vunpack.c.l.b16 %v22
  %v319 = vunpack.c.l.b16 %v23
  %v320 = vunpack.c.l.b16 %v24
  %v321 = vunpack.c.l.b16 %v25
  %v322 = vunpack.c.l.b16 %v26
  %v323 = vunpack.c.l.b16 %v27
  %v324 = vunpack.c.l.b16 %v28
  %v325 = vunpack.c.l.b16 %v29
  %v326 = vunpack.c.l.b16 %v30
  %v327 = vunpack.c.l.b16 %v31
  %v328 = vunpack.c.l.b16 %v32
  %v329 = vunpack.c.l.b16 %v33
  %v330 = vunpack.c.l.b16 %v34
  %v331 = vunpack.c.l.b16 %v35
  %v332 = vunpack.c.l.b16 %v36
  %v333 = vunpack.c.l.b16 %v37
  %v334 = vunpack.c.l.b16 %v38
  %v335 = vunpack.c.l.b16 %v39
  %v336 = vunpack.c.l.b16 %v40
  %v337 = vunpack.c.l.b16 %v41
  %v338 = vunpack.c.l.b16 %v42
  %v339 = vunpack.c.l.b16 %v43
  %v340 = vunpack.c.l.b16 %v44
  %v341 = vunpack.c.l.b16 %v45
  %v342 = vunpack.c.l.b16 %v46
  %v343 = vunpack.c.l.b16 %v47
  %v344 = vunpack.c.l.b16 %v48
  %v345 = vunpack.c.l.b16 %v49
  %v346 = vunpack.c.l.b16 %v50
  %v347 = vunpack.c.l.b16 %v51
  %v348 = vunpack.c.l.b16 %v52
  %v349 = vunpack.c.l.b16 %v53
  %v350 = vunpack.c.l.b16 %v54
  %v351 = vunpack.c.l.b16 %v55
  %v352 = vunpack.c.l.b16 %v56
  %v353 = vunpack.c.l.b16 %v57
  %v354 = vunpack.c.l.b16 %v58
  %v355 = vunpack.c.l.b16 %v59
  %v356 = vunpack.c.l.b16 %v60
  %v357 = vunpack.c.l.b16 %v61
  %v358 = vunpack.c.l.b16 %v62
  %v359 = vunpack.c.l.b16 %v63
  %v360 = vunpack.c.l.b16 %v64
  %v361 = vunpack.c.l.b16 %v65
  %v362 = vunpack.c.l.b16 %v66
  %v363 = vunpack.c.l.b16 %v67
  %v364 = vunpack.c.l.b16 %v68
  %v365 = vunpack.c.l.b16 %v69
  %v366 = vunpack.c.l.b16 %v70
  %v367 = vunpack.c.l.b16 %v71
  %v368 = vunpack.c.l.b16 %v72
  %v369 = vunpack.c.l.b16 %v73
  %v370 = vunpack.c.l.b16 %v74
  %v371 = vunpack.c.l.b16 %v75
  %v372 = vunpack.c.l.b16 %v76
  %v373 = vunpack.c.l.b16 %v77
  %v374 = vunpack.c.l.b16 %v78
  %v375 = vunpack.c.l.b16 %v79
  %v376 = vunpack.c.l.b16 %v80
  %v377 = vunpack.c.l.b16 %v81
  %v378 = vunpack.c.l.b16 %v82
  %v379 = vunpack.c.l.b16 %v83
  %v380 = vunpack.c.l.b16 %v84
  %v381 = vunpack.c.l.b16 %v85
  %v382 = vunpack.c.l.b16 %v86
  %v383 = vunpack.c.l.b16 %v87
  %v384 = vunpack.c.l.b16 %v88
  %v385 = vunpack.c.l.b16 %v89
  %v386 = vunpack.c.l.b16 %v90
  %v387 = vunpack.c.l.b16 %v91
  %v388 = vunpack.c.l.b16 %v92
  %v389 = vunpack.c.l.b16 %v93
  %v390 = vunpack.c.l.b16 %v94
  %v391 = vunpack.c.l.b16 %v95
  %v392 = vunpack.c.l.b16 %v96
  %v393 = vunpack.c.l.b16 %v97
  %v394 = vunpack.c.l.b16 %v98
  %v395 = vunpack.c.l.b16 %v99
  %v396 = vunpack.c.l.b16 %v100
  %v397 = vunpack.c.l.b16 %v101
  %v398 = vunpack.c.l.b16 %v102
  %v399 = vunpack.c.l.b16 %v103
  %v400 = vunpack.c.l.b16 %v104
  %v401 = vunpack.c.l.b16 %v105
  %v402 = vunpack.c.l.b16 %v106
  %v403 = vunpack.c.l.b16 %v107
  %v404 = vunpack.c.l.b16 %v108
  %v405 = vunpack.c.l.b16 %v109
  %v406 = vunpack.c.l.b16 %v110
  %v407 = vunpack.c.l.b16 %v111
  %v408 = vunpack.c.l.b16 %v112
  %v409 = vunpack.c.l.b16 %v113
  %v410 = vunpack.c.l.b16 %v114
  %v411 = vunpack.c.l.b16 %v115
  %v412 = vunpack.c.l.b16 %v116
  %v413 = vunpack.c.l.b16 %v117
  %v414 = vunpack.c.l.b16 %v118
  %v415 = vunpack.c.l.b16 %v119
  %v416 = vunpack.c.l.b16 %v120
  %v417 = vunpack.c.l.b16 %v121
  %v418 = vunpack.c.l.b16 %v122
  %v419 = vunpack.c.l.b16 %v123
  %v420 = vunpack.c.l.b16 %v124
  %v421 = vunpack.c.l.b16 %v125
  %v422 = vunpack.c.l.b16 %v126
  %v423 = vunpack.c.l.b16 %v127
  %v424 = vunpack.c.l.b16 %v128
  %v425 = vunpack.c.l.b16 %v129
  %v426 = vunpack.c.l.b16 %v130
  %v427 = vunpack.c.l.b16 %v131
  %v428 = vunpack.c.l.b16 %v132
  %v429 = vunpack.c.l.b16 %v133
  %v430 = vunpack.c.l.b16 %v134
  %v431 = vunpack.c.l.b16 %v135
  %v432 = vunpack.c.l.b16 %v136
  %v433 = vunpack.c.l.b16 %v137
  %v434 = vunpack.c.l.b16 %v138
  %v435 = vunpack.c.l.b16 %v139
  %v436 = vunpack.c.l.b16 %v140
  %v437 = vunpack.c.l.b16 %v141
  %v438 = vunpack.c.l.b16 %v142
  %v439 = vunpack.c.l.b16 %v143
  %v440 = vunpack.c.l.b16 %v144
  %v441 = vunpack.c.l.b16 %v145
  %v442 = vunpack.c.l.b16 %v146
  %v443 = vunpack.c.l.b16 %v147
  %v444 = vpack.c.b16 %v317, %v316
  %v445 = vpack.c.b16 %v319, %v318
  %v446 = vpack.c.b16 %v321, %v320
  %v447 = vpack.c.b16 %v323, %v322
  %v448 = vpack.c.b16 %v325, %v324
  %v449 = vpack.c.b16 %v327, %v326
  %v450 = vpack.c.b16 %v329, %v328
  %v451 = vpack.c.b16 %v331, %v330
  %v452 = vpack.c.b16 %v333, %v332
  %v453 = vpack.c.b16 %v335, %v334
  %v454 = vpack.c.b16 %v337, %v336
  %v455 = vpack.c.b16 %v339, %v338
  %v456 = vpack.c.b16 %v341, %v340
  %v457 = vpack.c.b16 %v343, %v342
  %v458 = vpack.c.b16 %v345, %v344
  %v459 = vpack.c.b16 %v347, %v346
  %v460 = vpack.c.b16 %v349, %v348
  %v461 = vpack.c.b16 %v351, %v350
  %v462 = vpack.c.b16 %v353, %v352
  %v463 = vpack.c.b16 %v355, %v354
  %v464 = vpack.c.b16 %v357, %v356
  %v465 = vpack.c.b16 %v359, %v358
  %v466 = vpack.c.b16 %v361, %v360
  %v467 = vpack.c.b16 %v363, %v362
  %v468 = vpack.c.b16 %v365, %v364
  %v469 = vpack.c.b16 %v367, %v366
  %v470 = vpack.c.b16 %v369, %v368
  %v471 = vpack.c.b16 %v371, %v370
  %v472 = vpack.c.b16 %v373, %v372
  %v473 = vpack.c.b16 %v375, %v374
  %v474 = vpack.c.b16 %v377, %v376
  %v475 = vpack.c.b16 %v379, %v378
  %v476 = vpack.c.b16 %v381, %v380
  %v477 = vpack.c.b16 %v383, %v382
  %v478 = vpack.c.b16 %v385, %v384
  %v479 = vpack.c.b16 %v387, %v386
  %v480 = vpack.c.b16 %v389, %v388
  %v481 = vpack.c.b16 %v391, %v390
  %v482 = vpack.c.b16 %v393, %v392
  %v483 = vpack.c.b16 %v395, %v394
  %v484 = vpack.c.b16 %v397, %v396
  %v485 = vpack.c.b16 %v399, %v398
  %v486 = vpack.c.b16 %v401, %v400
  %v487 = vpack.c.b16 %v403, %v402
  %v488 = vpack.c.b16 %v405, %v404
  %v489 = vpack.c.b16 %v407, %v406
  %v490 = vpack.c.b16 %v409, %v408
  %v491 = vpack.c.b16 %v411, %v410
  %v492 = vpack.c.b16 %v413, %v412
  %v493 = vpack.c.b16 %v415, %v414
  %v494 = vpack.c.b16 %v417, %v416
  %v495 = vpack.c.b16 %v419, %v418
  %v496 = vpack.c.b16 %v421, %v420
  %v497 = vpack.c.b16 %v423, %v422
  %v498 = vpack.c.b16 %v425, %v424
  %v499 = vpack.c.b16 %v427, %v426
  %v500 = vpack.c.b16 %v429, %v428
  %v501 = vpack.c.b16 %v431, %v430
  %v502 = vpack.c.b16 %v433, %v432
  %v503 = vpack.c.b16 %v435, %v434
  %v504 = vpack.c.b16 %v437, %v436
  %v505 = vpack.c.b16 %v439, %v438
  %v506 = vpack.c.b16 %v441, %v440
  %v507 = vpack.c.b16 %v443, %v442
  %572 = vmatprep.subr.bf16.mxu0 0
  %573 = vmatpush1.bf16.msra.mxu0 %v444
  %574 = vmatprep.subr.bf16.mxu0 0
  %575 = vmatpush1.bf16.msra.mxu0 %v445
  %576 = vmatprep.subr.bf16.mxu0 0
  %577 = vmatpush1.bf16.msra.mxu0 %v446
  %578 = vmatprep.subr.bf16.mxu0 0
  %579 = vmatpush1.bf16.msra.mxu0 %v447
  %580 = vmatprep.subr.bf16.mxu0 0
  %581 = vmatpush1.bf16.msra.mxu0 %v448
  %582 = vmatprep.subr.bf16.mxu0 0
  %583 = vmatpush1.bf16.msra.mxu0 %v449
  %584 = vmatprep.subr.bf16.mxu0 0
  %585 = vmatpush1.bf16.msra.mxu0 %v450
  %586 = vmatprep.subr.bf16.mxu0 0
  %587 = vmatpush1.bf16.msra.mxu0 %v451
  %588 = vmatprep.subr.bf16.mxu0 0
  %589 = vmatpush1.bf16.msra.mxu0 %v452
  %590 = vmatprep.subr.bf16.mxu0 0
  %591 = vmatpush1.bf16.msra.mxu0 %v453
  %592 = vmatprep.subr.bf16.mxu0 0
  %593 = vmatpush1.bf16.msra.mxu0 %v454
  %594 = vmatprep.subr.bf16.mxu0 0
  %595 = vmatpush1.bf16.msra.mxu0 %v455
  %596 = vmatprep.subr.bf16.mxu0 0
  %597 = vmatpush1.bf16.msra.mxu0 %v456
  %598 = vmatprep.subr.bf16.mxu0 0
  %599 = vmatpush1.bf16.msra.mxu0 %v457
  %600 = vmatprep.subr.bf16.mxu0 0
  %601 = vmatpush1.bf16.msra.mxu0 %v458
  %602 = vmatprep.subr.bf16.mxu0 0
  %603 = vmatpush1.bf16.msra.mxu0 %v459
  %604 = vmatprep.mubr.bf16.mxu0 %v173
  %605 = vmatmul.mubr.bf16.gmra.mrb[0].mxu0 %v172
  %v606 = vpop.f32.mrb[0].mxu0
  %v607 = vadd.f32 0.0, %v606
  %v608 = vpop.f32.mrb[0].mxu0
  %v609 = vpop.f32.mrb[0].mxu0
  %v610 = vadd.f32 0.0, %v609
  %v611 = vpop.f32.mrb[0].mxu0
  %612 = vdwg.mxu0
  %613 = vmatprep.subr.bf16.mxu0 0
  %614 = vmatpush1.bf16.msra.mxu0 %v460
  %615 = vmatprep.subr.bf16.mxu0 0
  %616 = vmatpush1.bf16.msra.mxu0 %v461
  %617 = vmatprep.subr.bf16.mxu0 0
  %618 = vmatpush1.bf16.msra.mxu0 %v462
  %619 = vmatprep.subr.bf16.mxu0 0
  %620 = vmatpush1.bf16.msra.mxu0 %v463
  %621 = vmatprep.subr.bf16.mxu0 0
  %622 = vmatpush1.bf16.msra.mxu0 %v464
  %623 = vmatprep.subr.bf16.mxu0 0
  %624 = vmatpush1.bf16.msra.mxu0 %v465
  %625 = vmatprep.subr.bf16.mxu0 0
  %626 = vmatpush1.bf16.msra.mxu0 %v466
  %627 = vmatprep.subr.bf16.mxu0 0
  %628 = vmatpush1.bf16.msra.mxu0 %v467
  %629 = vmatprep.subr.bf16.mxu0 0
  %630 = vmatpush1.bf16.msra.mxu0 %v468
  %631 = vmatprep.subr.bf16.mxu0 0
  %632 = vmatpush1.bf16.msra.mxu0 %v469
  %633 = vmatprep.subr.bf16.mxu0 0
  %634 = vmatpush1.bf16.msra.mxu0 %v470
  %635 = vmatprep.subr.bf16.mxu0 0
  %636 = vmatpush1.bf16.msra.mxu0 %v471
  %637 = vmatprep.subr.bf16.mxu0 0
  %638 = vmatpush1.bf16.msra.mxu0 %v472
  %639 = vmatprep.subr.bf16.mxu0 0
  %640 = vmatpush1.bf16.msra.mxu0 %v473
  %641 = vmatprep.subr.bf16.mxu0 0
  %642 = vmatpush1.bf16.msra.mxu0 %v474
  %643 = vmatprep.subr.bf16.mxu0 0
  %644 = vmatpush1.bf16.msra.mxu0 %v475
  %645 = vmatprep.mubr.bf16.mxu0 %v175
  %646 = vmatmul.mubr.bf16.gmra.mrb[0].mxu0 %v174
  %v647 = vpop.f32.mrb[0].mxu0
  %v648 = vadd.f32 %v607, %v647
  %v649 = vpop.f32.mrb[0].mxu0
  %v650 = vpop.f32.mrb[0].mxu0
  %v651 = vadd.f32 %v610, %v650
  %v652 = vpop.f32.mrb[0].mxu0
  %653 = vdwg.mxu0
  %654 = vmatprep.subr.bf16.mxu0 0
  %655 = vmatpush1.bf16.msra.mxu0 %v476
  %656 = vmatprep.subr.bf16.mxu0 0
  %657 = vmatpush1.bf16.msra.mxu0 %v477
  %658 = vmatprep.subr.bf16.mxu0 0
  %659 = vmatpush1.bf16.msra.mxu0 %v478
  %660 = vmatprep.subr.bf16.mxu0 0
  %661 = vmatpush1.bf16.msra.mxu0 %v479
  %662 = vmatprep.subr.bf16.mxu0 0
  %663 = vmatpush1.bf16.msra.mxu0 %v480
  %664 = vmatprep.subr.bf16.mxu0 0
  %665 = vmatpush1.bf16.msra.mxu0 %v481
  %666 = vmatprep.subr.bf16.mxu0 0
  %667 = vmatpush1.bf16.msra.mxu0 %v482
  %668 = vmatprep.subr.bf16.mxu0 0
  %669 = vmatpush1.bf16.msra.mxu0 %v483
  %670 = vmatprep.subr.bf16.mxu0 0
  %671 = vmatpush1.bf16.msra.mxu0 %v484
  %672 = vmatprep.subr.bf16.mxu0 0
  %673 = vmatpush1.bf16.msra.mxu0 %v485
  %674 = vmatprep.subr.bf16.mxu0 0
  %675 = vmatpush1.bf16.msra.mxu0 %v486
  %676 = vmatprep.subr.bf16.mxu0 0
  %677 = vmatpush1.bf16.msra.mxu0 %v487
  %678 = vmatprep.subr.bf16.mxu0 0
  %679 = vmatpush1.bf16.msra.mxu0 %v488
  %680 = vmatprep.subr.bf16.mxu0 0
  %681 = vmatpush1.bf16.msra.mxu0 %v489
  %682 = vmatprep.subr.bf16.mxu0 0
  %683 = vmatpush1.bf16.msra.mxu0 %v490
  %684 = vmatprep.subr.bf16.mxu0 0
  %685 = vmatpush1.bf16.msra.mxu0 %v491
  %686 = vmatprep.mubr.bf16.mxu0 %v177
  %687 = vmatmul.mubr.bf16.gmra.mrb[0].mxu0 %v176
  %v688 = vpop.f32.mrb[0].mxu0
  %v689 = vadd.f32 %v648, %v688
  %v690 = vpop.f32.mrb[0].mxu0
  %v691 = vpop.f32.mrb[0].mxu0
  %v692 = vadd.f32 %v651, %v691
  %v693 = vpop.f32.mrb[0].mxu0
  %694 = vdwg.mxu0
  %695 = vmatprep.subr.bf16.mxu0 0
  %696 = vmatpush1.bf16.msra.mxu0 %v492
  %697 = vmatprep.subr.bf16.mxu0 0
  %698 = vmatpush1.bf16.msra.mxu0 %v493
  %699 = vmatprep.subr.bf16.mxu0 0
  %700 = vmatpush1.bf16.msra.mxu0 %v494
  %701 = vmatprep.subr.bf16.mxu0 0
  %702 = vmatpush1.bf16.msra.mxu0 %v495
  %703 = vmatprep.subr.bf16.mxu0 0
  %704 = vmatpush1.bf16.msra.mxu0 %v496
  %705 = vmatprep.subr.bf16.mxu0 0
  %706 = vmatpush1.bf16.msra.mxu0 %v497
  %707 = vmatprep.subr.bf16.mxu0 0
  %708 = vmatpush1.bf16.msra.mxu0 %v498
  %709 = vmatprep.subr.bf16.mxu0 0
  %710 = vmatpush1.bf16.msra.mxu0 %v499
  %711 = vmatprep.subr.bf16.mxu0 0
  %712 = vmatpush1.bf16.msra.mxu0 %v500
  %713 = vmatprep.subr.bf16.mxu0 0
  %714 = vmatpush1.bf16.msra.mxu0 %v501
  %715 = vmatprep.subr.bf16.mxu0 0
  %716 = vmatpush1.bf16.msra.mxu0 %v502
  %717 = vmatprep.subr.bf16.mxu0 0
  %718 = vmatpush1.bf16.msra.mxu0 %v503
  %719 = vmatprep.subr.bf16.mxu0 0
  %720 = vmatpush1.bf16.msra.mxu0 %v504
  %721 = vmatprep.subr.bf16.mxu0 0
  %722 = vmatpush1.bf16.msra.mxu0 %v505
  %723 = vmatprep.subr.bf16.mxu0 0
  %724 = vmatpush1.bf16.msra.mxu0 %v506
  %725 = vmatprep.subr.bf16.mxu0 0
  %726 = vmatpush1.bf16.msra.mxu0 %v507
  %727 = vmatprep.mubr.bf16.mxu0 %v179
  %728 = vmatmul.mubr.bf16.gmra.mrb[0].mxu0 %v178
  %v729 = vpop.f32.mrb[0].mxu0
  %v730 = vadd.f32 %v689, %v729
  %v731 = vpop.f32.mrb[0].mxu0
  %v732 = vpop.f32.mrb[0].mxu0
  %v733 = vadd.f32 %v692, %v732
  %v734 = vpop.f32.mrb[0].mxu0
  %735 = vdwg.mxu0
  %736 = vst [vmem:[%s2] sm:$0xff] %v730
  %737 = vst [vmem:[%s2 + $0x8] sm:$0xff] %v733
  // Predicated region
  $region10: #{net_e_forward.11} parent=0 // pred_check
    _
  $region11: #{net_e_forward.11} parent=0 // pred_check_branch
    %739 = sbr.rel (0) target = $region13
  $region12: #{net_e_forward.11} parent=0 // pred_region
    _
  $region13: #{net_e_forward.11} parent=0 // pred_fallthru
    _
  // Predicated region
  $region14: #{net_e_forward.11} parent=0 // pred_check
    _
  $region15: #{net_e_forward.11} parent=0 // pred_check_branch
    %741 = sbr.rel (0) target = $region17
  $region16: #{net_e_forward.11} parent=0 // pred_region
    _
  $region17: #{net_e_forward.11} parent=0 // pred_fallthru
    _

</llo_original>
